<compile_context>
chip_gen: v7x
topology: tpu7x:2x2x1
jax: 0.10.0
libtpu: 0.0.40
codegen_flags: <defaults>
</compile_context>

<pallas_src>
import functools

import jax
import jax.numpy as jnp
from jax.experimental import pallas as pl
from jax.experimental.pallas import tpu as pltpu


# ----------------------------- VMEM budgeting --------------------------------
def _vmem_capacity_bytes():
    try:
        info = pltpu.get_tpu_info()
        cap = getattr(info, "vmem_capacity_bytes", None)
        if cap:
            return int(cap)
    except Exception:
        pass
    return 64 * 1024 * 1024      # conservative fallback (v7x-sized)


_VMEM_CAP = _vmem_capacity_bytes()
_VMEM_LIMIT = min(int(_VMEM_CAP * 3 // 4), 96 * 1024 * 1024)


def _choose_tp(P, row_bytes, fixed_bytes=0, *, min_tp=256):
    """Largest power-of-two P-tile whose double-buffered streamed blocks plus
    the (double-buffered) resident weights fit the VMEM budget, preferring an
    even number of grid steps (v7x has two TensorCores)."""
    budget = max(_VMEM_LIMIT - 2 * fixed_bytes - (8 << 20), 2 << 20)
    max_tp = 4096 if _VMEM_CAP >= (96 << 20) else 2048
    tp = max_tp
    while tp > min_tp and 2 * tp * row_bytes > budget:
        tp //= 2
    while tp > min_tp:
        steps = pl.cdiv(P, tp)
        if steps >= 2 and steps % 2 == 0:
            break
        tp //= 2
    return tp


# ---------------- Kernel A: conv1 (1x1x1) + folded BN + ReLU -----------------
def _conv1_kernel(x_ref, w_ref, s_ref, b_ref, o_ref):
    acc = jnp.dot(x_ref[...], w_ref[...], preferred_element_type=jnp.float32)
    o_ref[...] = jnp.maximum(acc * s_ref[...] + b_ref[...], 0.0).astype(o_ref.dtype)


def conv1_bn_relu(x2d, w, scale, bias):
    """x2d: (P, Cxs) bf16 -> (P, Cin) bf16 after folded BN + ReLU."""
    P, Cxs = x2d.shape
    Cin = w.shape[1]
    row_bytes = 2 * Cxs + 2 * Cin
    fixed = 2 * (w.size * 2 + scale.size * 4 + bias.size * 4)
    tp = _choose_tp(P, row_bytes, fixed)
    Pp = pl.cdiv(P, tp) * tp
    if Pp != P:
        x2d = jnp.pad(x2d, ((0, Pp - P), (0, 0)))
    out = pl.pallas_call(
        _conv1_kernel,
        out_shape=jax.ShapeDtypeStruct((Pp, Cin), jnp.bfloat16),
        grid=(Pp // tp,),
        in_specs=[
            pl.BlockSpec((tp, Cxs), lambda i: (i, 0)),
            pl.BlockSpec((Cxs, Cin), lambda i: (0, 0)),
            pl.BlockSpec((1, Cin), lambda i: (0, 0)),
            pl.BlockSpec((1, Cin), lambda i: (0, 0)),
        ],
        out_specs=pl.BlockSpec((tp, Cin), lambda i: (i, 0)),
        compiler_params=pltpu.CompilerParams(
            dimension_semantics=("parallel",),
            vmem_limit_bytes=_VMEM_LIMIT),
        cost_estimate=pl.CostEstimate(
            flops=int(2 * Pp * Cxs * Cin), transcendentals=0,
            bytes_accessed=int(2 * Pp * Cxs + 2 * Cxs * Cin + 2 * Pp * Cin)),
    )(x2d, w, scale, bias)
    return out[:P] if Pp != P else out


# ---- Kernel B: conv2 (in-VMEM im2col) + BN + ReLU + conv3 + BN + shortcut ----
# ---- conv/BN + DPN concat-combine + ReLU, fused in one pallas_call        ----
def _fused_tail_kernel(*refs, s, d, shortcut_conv):
    if shortcut_conv:
        (p0_ref, p1_ref, p2_ref, xs_ref, w2_ref, w3_ref, wsc_ref,
         s2_ref, b2_ref, s3_ref, b3_ref, ssc_ref, bsc_ref, out_ref) = refs
    else:
        (p0_ref, p1_ref, p2_ref, xs_ref, w2_ref, w3_ref,
         s2_ref, b2_ref, s3_ref, b3_ref, out_ref) = refs

    planes = (p0_ref, p1_ref, p2_ref)            # each (Hp, Wp, Cin) bf16
    Ho, Wo, _ = xs_ref.shape
    n_chunks, _, Cc = w2_ref.shape               # per-chunk grouped-conv width
    cpd = w3_ref.shape[-1]
    P = Ho * Wo

    # conv2 (3x3x3 grouped) + bn2 + relu + conv3 (1x1x1), chunked over whole
    # groups so each block-diagonal matmul has ~128 output lanes.
    o3 = jnp.zeros((P, cpd), jnp.float32)
    for c in range(n_chunks):
        ch0 = c * Cc
        taps = []
        for kd in range(3):
            pk = planes[kd]
            for kh in range(3):
                for kw in range(3):
                    if s == 1:
                        taps.append(pk[kh:kh + Ho, kw:kw + Wo, ch0:ch0 + Cc])
                    else:
                        # TODO(synk): stride>1 strided window; validate lowering.
                        taps.append(pk[...][kh:kh + (Ho - 1) * s + 1:s,
                                            kw:kw + (Wo - 1) * s + 1:s,
                                            ch0:ch0 + Cc])
        # im2col built entirely in VMEM/vregs: (P, 27*Cc) never touches HBM.
        xt = jnp.concatenate(taps, axis=-1).reshape(P, 27 * Cc)
        h2 = jnp.dot(xt, w2_ref[c], preferred_element_type=jnp.float32)
        h2 = jnp.maximum(h2 * s2_ref[:, ch0:ch0 + Cc] + b2_ref[:, ch0:ch0 + Cc], 0.0)
        o3 = o3 + jnp.dot(h2.astype(w3_ref.dtype), w3_ref[ch0:ch0 + Cc, :],
                          preferred_element_type=jnp.float32)
    o3 = o3 * s3_ref[...] + b3_ref[...]

    # Shortcut: 1x1x1 conv + bn (first layer) or identity.
    xs2 = xs_ref[...].reshape(P, xs_ref.shape[-1])
    if shortcut_conv:
        sc = jnp.dot(xs2, wsc_ref[...], preferred_element_type=jnp.float32)
        sc = sc * ssc_ref[...] + bsc_ref[...]
    else:
        sc = xs2.astype(jnp.float32)

    # DPN combine + ReLU, assembled in registers -> ONE lane-dense store.
    out = jnp.concatenate([sc[:, :d] + o3[:, :d], sc[:, d:], o3[:, d:]], axis=-1)
    out = jnp.maximum(out, 0.0).astype(out_ref.dtype)
    out_ref[...] = out.reshape(Ho, Wo, out.shape[-1])


def fused_conv2_conv3_shortcut_combine(x1p, xs, params, *, stride, first_layer,
                                       d, out_spatial):
    """x1p: (N, D+2, H+2, W+2, Cin) bf16 padded conv1 activation.
    xs:  (N, Do, Ho, Wo, Cxs) bf16 shortcut input (already strided).
    Returns (N, Do, Ho, Wo, Cf) bf16."""
    N, _, Hp, Wp, Cin = x1p.shape
    Do, Ho, Wo = out_spatial
    Cxs = xs.shape[-1]
    w2c, w3 = params["w2"], params["w3"]
    cpd = w3.shape[1]
    C1 = cpd if first_layer else Cxs
    Cf = C1 + cpd - d
    s = stride

    def plane_idx(n, do, kd):
        return (n, do * s + kd, 0, 0, 0)

    inputs = [x1p, x1p, x1p, xs, w2c, w3]
    in_specs = [pl.BlockSpec((None, None, Hp, Wp, Cin),
                             functools.partial(plane_idx, kd=kd))
                for kd in range(3)]
    in_specs += [
        pl.BlockSpec((None, None, Ho, Wo, Cxs), lambda n, do: (n, do, 0, 0, 0)),
        pl.BlockSpec(w2c.shape, lambda n, do: (0, 0, 0)),
        pl.BlockSpec(w3.shape, lambda n, do: (0, 0)),
    ]
    if first_layer:
        inputs.append(params["wsc"])
        in_specs.append(pl.BlockSpec(params["wsc"].shape, lambda n, do: (0, 0)))
    names = ("s2", "b2", "s3", "b3") + (("ssc", "bsc") if first_layer else ())
    for name in names:
        inputs.append(params[name])
        in_specs.append(pl.BlockSpec(params[name].shape, lambda n, do: (0, 0)))

    Cc = Cin // w2c.shape[0]
    flops = 2 * N * Do * Ho * Wo * (27 * Cc * Cin + Cin * cpd
                                    + (Cxs * cpd if first_layer else 0))
    bytes_accessed = (3 * N * Do * Hp * Wp * Cin * 2 + N * Do * Ho * Wo * Cxs * 2
                      + 2 * int(w2c.size + w3.size) + 2 * N * Do * Ho * Wo * Cf)
    return pl.pallas_call(
        functools.partial(_fused_tail_kernel, s=s, d=d, shortcut_conv=first_layer),
        out_shape=jax.ShapeDtypeStruct((N, Do, Ho, Wo, Cf), jnp.bfloat16),
        grid=(N, Do),
        in_specs=in_specs,
        out_specs=pl.BlockSpec((None, None, Ho, Wo, Cf),
                               lambda n, do: (n, do, 0, 0, 0)),
        compiler_params=pltpu.CompilerParams(
            dimension_semantics=("parallel", "parallel"),
            vmem_limit_bytes=_VMEM_LIMIT),
        cost_estimate=pl.CostEstimate(flops=int(flops), transcendentals=0,
                                      bytes_accessed=int(bytes_accessed)),
    )(*inputs)


# -----------------------------------------------------------------------------
# Parameter construction (deterministic, mirrors the PyTorch module's shapes)
# -----------------------------------------------------------------------------
def _fold_bn(gamma, beta, mean, var, eps=1e-5):
    scale = gamma / jnp.sqrt(var + eps)
    bias = beta - mean * scale
    return scale, bias


def _bn_params(key, c):
    k1, k2, k3, k4 = jax.random.split(key, 4)
    gamma = jax.random.uniform(k1, (c,), jnp.float32, 0.5, 1.5)
    beta = 0.1 * jax.random.normal(k2, (c,), jnp.float32)
    mean = 0.1 * jax.random.normal(k3, (c,), jnp.float32)
    var = jax.random.uniform(k4, (c,), jnp.float32, 0.5, 1.5)
    scale, bias = _fold_bn(gamma, beta, mean, var)
    return scale.reshape(1, c), bias.reshape(1, c)      # f32, applied on f32 acc


def _num_group_chunks(in_planes, groups, target_chunk_width=128):
    """Chunk the grouped conv into whole groups so each per-chunk dense weight
    has ~target_chunk_width output lanes (good MXU fill, small VMEM)."""
    n, cand = 1, 2
    while cand <= groups:
        if (groups % cand == 0 and in_planes % cand == 0
                and in_planes // cand >= target_chunk_width):
            n = cand
        cand *= 2
    return n


def _grouped_weight_chunks(w2, groups, n_chunks):
    """PyTorch grouped weight (Cout, Cg, 3, 3, 3) -> per-chunk block-diagonal
    dense weights (n_chunks, 27*Gb*Cg, Gb*CoG) with the 27 taps folded into the
    contraction dim (tap-major, channel-minor); Gb = groups // n_chunks."""
    cout, cg = w2.shape[0], w2.shape[1]
    cog = cout // groups
    gb = groups // n_chunks
    wg = w2.reshape(n_chunks, gb, cog, cg, 27)
    wg = jnp.transpose(wg, (0, 4, 1, 3, 2))              # (nc, 27, gb, cg, cog)
    eye = jnp.eye(gb, dtype=w2.dtype)
    dense = jnp.einsum("gh,ntgcd->ntgchd", eye, wg)      # (nc, 27, gb, cg, gb, cog)
    return dense.reshape(n_chunks, 27 * gb * cg, gb * cog)


def init_params(key, last_planes, in_planes, out_planes, dense_depth, first_layer):
    cpd = out_planes + dense_depth
    groups = 32
    assert in_planes % groups == 0
    cg = in_planes // groups
    n_chunks = _num_group_chunks(in_planes, groups)
    ks = jax.random.split(key, 9)
    w1 = 0.1 * jax.random.normal(ks[0], (in_planes, last_planes, 1, 1, 1), jnp.float32)
    w2 = 0.1 * jax.random.normal(ks[1], (in_planes, cg, 3, 3, 3), jnp.float32)
    w3 = 0.1 * jax.random.normal(ks[2], (cpd, in_planes, 1, 1, 1), jnp.float32)
    params = {
        "w1": jnp.transpose(w1[:, :, 0, 0, 0], (1, 0)).astype(jnp.bfloat16),
        "w2": _grouped_weight_chunks(w2, groups, n_chunks).astype(jnp.bfloat16),
        "w3": jnp.transpose(w3[:, :, 0, 0, 0], (1, 0)).astype(jnp.bfloat16),
    }
    params["s1"], params["b1"] = _bn_params(ks[3], in_planes)
    params["s2"], params["b2"] = _bn_params(ks[4], in_planes)
    params["s3"], params["b3"] = _bn_params(ks[5], cpd)
    if first_layer:
        wsc = 0.1 * jax.random.normal(ks[6], (cpd, last_planes, 1, 1, 1), jnp.float32)
        params["wsc"] = jnp.transpose(wsc[:, :, 0, 0, 0], (1, 0)).astype(jnp.bfloat16)
        params["ssc"], params["bsc"] = _bn_params(ks[7], cpd)
    return params


# -----------------------------------------------------------------------------
# Forward pass
# -----------------------------------------------------------------------------
def bottleneck_forward_ndhwc(xl, params, *, stride, first_layer, out_planes):
    """xl: (N, D, H, W, C) channels-last input.  Returns NDHWC bf16 output.
    Use this entry point between stacked blocks to avoid per-block transposes."""
    N, D, H, W, Cxs = xl.shape
    s = stride
    xl = xl.astype(jnp.bfloat16)       # cast the activation stream once

    # conv1 (1x1x1) + bn1 + relu  -- Pallas kernel A.
    out1 = conv1_bn_relu(xl.reshape(N * D * H * W, Cxs),
                         params["w1"], params["s1"], params["b1"])
    Cin = out1.shape[1]
    # Zero-pad AFTER bn1+relu (matches the conv2 padding semantics); this is the
    # only extra activation copy -- the 27-tap im2col itself stays in VMEM.
    x1p = jnp.pad(out1.reshape(N, D, H, W, Cin),
                  ((0, 0), (1, 1), (1, 1), (1, 1), (0, 0)))

    Do = (D - 1) // s + 1
    Ho = (H - 1) // s + 1
    Wo = (W - 1) // s + 1
    xs = xl[:, ::s, ::s, ::s, :]
    if not first_layer:
        assert s == 1, "identity shortcut requires stride == 1"

    return fused_conv2_conv3_shortcut_combine(
        x1p, xs, params, stride=s, first_layer=first_layer,
        d=out_planes, out_spatial=(Do, Ho, Wo))


def bottleneck_forward(x, params, *, stride, first_layer, out_planes):
    """x: (N, C, D, H, W) (PyTorch NCDHW).  Returns NCDHW output in bf16."""
    xl = jnp.transpose(x, (0, 2, 3, 4, 1))
    out = bottleneck_forward_ndhwc(xl, params, stride=stride,
                                   first_layer=first_layer, out_planes=out_planes)
    return jnp.transpose(out, (0, 4, 1, 2, 3))


# -----------------------------------------------------------------------------
# Pure-JAX f32 reference (eval-mode BN), used only for the numerical check.
# -----------------------------------------------------------------------------
def _reference_forward(x, params, *, stride, first_layer, out_planes):
    s = stride
    xl = jnp.transpose(x, (0, 2, 3, 4, 1)).astype(jnp.float32)
    out1 = jnp.maximum((xl @ params["w1"].astype(jnp.float32))
                       * params["s1"][0] + params["b1"][0], 0.0)
    N, D, H, W, Cin = out1.shape
    Do = (D - 1) // s + 1
    Ho = (H - 1) // s + 1
    Wo = (W - 1) // s + 1
    xp = jnp.pad(out1, ((0, 0), (1, 1), (1, 1), (1, 1), (0, 0)))
    taps = []
    for kd in range(3):
        for kh in range(3):
            for kw in range(3):
                taps.append(xp[:, kd:kd + (Do - 1) * s + 1:s,
                               kh:kh + (Ho - 1) * s + 1:s,
                               kw:kw + (Wo - 1) * s + 1:s, :])
    t = jnp.stack(taps, axis=-2)                         # (N,Do,Ho,Wo,27,Cin)
    w2c = params["w2"].astype(jnp.float32)
    nc = w2c.shape[0]
    Cc = Cin // nc
    h2 = jnp.concatenate(
        [t[..., c * Cc:(c + 1) * Cc].reshape(N, Do, Ho, Wo, 27 * Cc) @ w2c[c]
         for c in range(nc)], axis=-1)
    h2 = jnp.maximum(h2 * params["s2"][0] + params["b2"][0], 0.0)
    o3 = (h2 @ params["w3"].astype(jnp.float32)) * params["s3"][0] + params["b3"][0]
    xs = xl[:, ::s, ::s, ::s, :]
    if first_layer:
        sc = (xs @ params["wsc"].astype(jnp.float32)) * params["ssc"][0] + params["bsc"][0]
    else:
        sc = xs
    d = out_planes
    out = jnp.maximum(jnp.concatenate(
        [sc[..., :d] + o3[..., :d], sc[..., d:], o3[..., d:]], axis=-1), 0.0)
    return jnp.transpose(out, (0, 4, 1, 2, 3))


if __name__ == "__main__":
    key = jax.random.PRNGKey(0)
    kx, kp = jax.random.split(key)

    # Small shapes consistent with the module: groups=32 requires in_planes % 32 == 0.
    N, last_planes, D, H, W = 2, 16, 8, 8, 8
    in_planes, out_planes, dense_depth = 32, 16, 8
    stride, first_layer = 1, True

    x = jax.random.normal(kx, (N, last_planes, D, H, W), jnp.float32)
    params = init_params(kp, last_planes, in_planes, out_planes, dense_depth, first_layer)

    fwd = jax.jit(functools.partial(
        bottleneck_forward, stride=stride, first_layer=first_layer,
        out_planes=out_planes))
    out = fwd(x, params)
    jax.block_until_ready(out)
    assert out.shape == (N, 2 * (out_planes + dense_depth) - out_planes, D, H, W)

    # Loose numerical check against a pure-JAX f32 reference (bf16 MXU path).
    ref = _reference_forward(x, params, stride=stride, first_layer=first_layer,
                             out_planes=out_planes)
    err = float(jnp.max(jnp.abs(out.astype(jnp.float32) - ref)))
    tol = 0.05 + 0.05 * float(jnp.max(jnp.abs(ref)))
    assert err < tol, f"max abs err {err} exceeds tol {tol}"

    print("KERNEL_OK")
</pallas_src>

<mosaic_0001>
module attributes {stable_mosaic.version = 11 : i64} {
  func.func @_conv1_kernel(%arg0: i32, %arg1: memref<512x16xbf16, #tpu.memory_space<vmem>>, %arg2: memref<16x32xbf16, #tpu.memory_space<vmem>>, %arg3: memref<1x32xf32, #tpu.memory_space<vmem>>, %arg4: memref<1x32xf32, #tpu.memory_space<vmem>>, %arg5: memref<512x32xbf16, #tpu.memory_space<vmem>>) attributes {dimension_semantics = [#tpu.dimension_semantics<parallel>], iteration_bounds = array<i64: 2>, scalar_prefetch = 0 : i64, scratch_operands = 0 : i64, tpu.core_type = #tpu.core_type<tc>, window_params = [{transform_indices = @transform_0, window_bounds = array<i64: 512, 16>}, {pipeline_mode = #tpu.pipeline_mode<synchronous>, transform_indices = @transform_1, window_bounds = array<i64: 16, 32>}, {pipeline_mode = #tpu.pipeline_mode<synchronous>, transform_indices = @transform_2, window_bounds = array<i64: 1, 32>}, {pipeline_mode = #tpu.pipeline_mode<synchronous>, transform_indices = @transform_3, window_bounds = array<i64: 1, 32>}, {transform_indices = @transform_4, window_bounds = array<i64: 512, 32>}]} {
    %c0 = arith.constant 0 : index
    %c0_0 = arith.constant 0 : index
    %0 = vector.load %arg1[%c0, %c0_0] : memref<512x16xbf16, #tpu.memory_space<vmem>>, vector<512x16xbf16>
    %c0_1 = arith.constant 0 : index
    %c0_2 = arith.constant 0 : index
    %1 = vector.load %arg2[%c0_1, %c0_2] : memref<16x32xbf16, #tpu.memory_space<vmem>>, vector<16x32xbf16>
    %cst = arith.constant dense<0.000000e+00> : vector<512x32xf32>
    %2 = tpu.matmul %0, %1, %cst {dimension_numbers = #tpu.dot_dimension_numbers<[1], [0], [0], [1], [0, 0, 1, 1], [], []>} : vector<512x16xbf16>, vector<16x32xbf16>, vector<512x32xf32> -> vector<512x32xf32>
    %c0_3 = arith.constant 0 : index
    %c0_4 = arith.constant 0 : index
    %3 = vector.load %arg3[%c0_3, %c0_4] : memref<1x32xf32, #tpu.memory_space<vmem>>, vector<1x32xf32>
    %4 = vector.broadcast %3 : vector<1x32xf32> to vector<512x32xf32>
    %5 = arith.mulf %2, %4 : vector<512x32xf32>
    %c0_5 = arith.constant 0 : index
    %c0_6 = arith.constant 0 : index
    %6 = vector.load %arg4[%c0_5, %c0_6] : memref<1x32xf32, #tpu.memory_space<vmem>>, vector<1x32xf32>
    %7 = vector.broadcast %6 : vector<1x32xf32> to vector<512x32xf32>
    %8 = arith.addf %5, %7 : vector<512x32xf32>
    %cst_7 = arith.constant 0.000000e+00 : f32
    %9 = vector.broadcast %cst_7 : f32 to vector<512x32xf32>
    %10 = arith.maximumf %8, %9 : vector<512x32xf32>
    %11 = arith.truncf %10 : vector<512x32xf32> to vector<512x32xbf16>
    %c0_8 = arith.constant 0 : index
    %c0_9 = arith.constant 0 : index
    %12 = vector.load %arg5[%c0_8, %c0_9] : memref<512x32xbf16, #tpu.memory_space<vmem>>, vector<512x32xbf16>
    tpu.vector_store %arg5[%c0_8, %c0_9], %11 {strides = array<i32>} : memref<512x32xbf16, #tpu.memory_space<vmem>>, vector<512x32xbf16>,
    return
  }
  func.func @transform_0(%arg0: i32) -> (i32, i32) {
    %c0_i32 = arith.constant 0 : i32
    %c0_i32_0 = arith.constant 0 : i32
    return %arg0, %c0_i32 : i32, i32
  }
  func.func @transform_1(%arg0: i32) -> (i32, i32) {
    %c0_i32 = arith.constant 0 : i32
    %c0_i32_0 = arith.constant 0 : i32
    %c0_i32_1 = arith.constant 0 : i32
    return %c0_i32, %c0_i32_0 : i32, i32
  }
  func.func @transform_2(%arg0: i32) -> (i32, i32) {
    %c0_i32 = arith.constant 0 : i32
    %c0_i32_0 = arith.constant 0 : i32
    %c0_i32_1 = arith.constant 0 : i32
    return %c0_i32, %c0_i32_0 : i32, i32
  }
  func.func @transform_3(%arg0: i32) -> (i32, i32) {
    %c0_i32 = arith.constant 0 : i32
    %c0_i32_0 = arith.constant 0 : i32
    %c0_i32_1 = arith.constant 0 : i32
    return %c0_i32, %c0_i32_0 : i32, i32
  }
  func.func @transform_4(%arg0: i32) -> (i32, i32) {
    %c0_i32 = arith.constant 0 : i32
    %c0_i32_0 = arith.constant 0 : i32
    return %arg0, %c0_i32 : i32, i32
  }
}

module attributes {stable_mosaic.version = 11 : i64} {
  func.func @_fused_tail_kernel(%arg0: i32, %arg1: i32, %arg2: memref<1x1x10x10x32xbf16, #tpu.memory_space<vmem>>, %arg3: memref<1x1x10x10x32xbf16, #tpu.memory_space<vmem>>, %arg4: memref<1x1x10x10x32xbf16, #tpu.memory_space<vmem>>, %arg5: memref<1x1x8x8x16xbf16, #tpu.memory_space<vmem>>, %arg6: memref<1x864x32xbf16, #tpu.memory_space<vmem>>, %arg7: memref<32x24xbf16, #tpu.memory_space<vmem>>, %arg8: memref<16x24xbf16, #tpu.memory_space<vmem>>, %arg9: memref<1x32xf32, #tpu.memory_space<vmem>>, %arg10: memref<1x32xf32, #tpu.memory_space<vmem>>, %arg11: memref<1x24xf32, #tpu.memory_space<vmem>>, %arg12: memref<1x24xf32, #tpu.memory_space<vmem>>, %arg13: memref<1x24xf32, #tpu.memory_space<vmem>>, %arg14: memref<1x24xf32, #tpu.memory_space<vmem>>, %arg15: memref<1x1x8x8x32xbf16, #tpu.memory_space<vmem>>) attributes {dimension_semantics = [#tpu.dimension_semantics<parallel>, #tpu.dimension_semantics<parallel>], iteration_bounds = array<i64: 2, 8>, scalar_prefetch = 0 : i64, scratch_operands = 0 : i64, tpu.core_type = #tpu.core_type<tc>, window_params = [{transform_indices = @transform_0, window_bounds = array<i64: 1, 1, 10, 10, 32>}, {transform_indices = @transform_1, window_bounds = array<i64: 1, 1, 10, 10, 32>}, {transform_indices = @transform_2, window_bounds = array<i64: 1, 1, 10, 10, 32>}, {transform_indices = @transform_3, window_bounds = array<i64: 1, 1, 8, 8, 16>}, {pipeline_mode = #tpu.pipeline_mode<synchronous>, transform_indices = @transform_4, window_bounds = array<i64: 1, 864, 32>}, {pipeline_mode = #tpu.pipeline_mode<synchronous>, transform_indices = @transform_5, window_bounds = array<i64: 32, 24>}, {pipeline_mode = #tpu.pipeline_mode<synchronous>, transform_indices = @transform_6, window_bounds = array<i64: 16, 24>}, {pipeline_mode = #tpu.pipeline_mode<synchronous>, transform_indices = @transform_7, window_bounds = array<i64: 1, 32>}, {pipeline_mode = #tpu.pipeline_mode<synchronous>, transform_indices = @transform_8, window_bounds = array<i64: 1, 32>}, {pipeline_mode = #tpu.pipeline_mode<synchronous>, transform_indices = @transform_9, window_bounds = array<i64: 1, 24>}, {pipeline_mode = #tpu.pipeline_mode<synchronous>, transform_indices = @transform_10, window_bounds = array<i64: 1, 24>}, {pipeline_mode = #tpu.pipeline_mode<synchronous>, transform_indices = @transform_11, window_bounds = array<i64: 1, 24>}, {pipeline_mode = #tpu.pipeline_mode<synchronous>, transform_indices = @transform_12, window_bounds = array<i64: 1, 24>}, {transform_indices = @transform_13, window_bounds = array<i64: 1, 1, 8, 8, 32>}]} {
    %cst = arith.constant 0.000000e+00 : f32
    %0 = vector.broadcast %cst : f32 to vector<64x24xf32>
    %c0 = arith.constant 0 : index
    %c0_0 = arith.constant 0 : index
    %c0_1 = arith.constant 0 : index
    %c0_2 = arith.constant 0 : index
    %c0_3 = arith.constant 0 : index
    %1 = vector.load %arg2[%c0, %c0_0, %c0_1, %c0_2, %c0_3] : memref<1x1x10x10x32xbf16, #tpu.memory_space<vmem>>, vector<1x1x8x8x32xbf16>
    %2 = vector.shape_cast %1 : vector<1x1x8x8x32xbf16> to vector<8x8x32xbf16>
    %c0_4 = arith.constant 0 : index
    %c0_5 = arith.constant 0 : index
    %c0_6 = arith.constant 0 : index
    %c1 = arith.constant 1 : index
    %c0_7 = arith.constant 0 : index
    %3 = vector.load %arg2[%c0_4, %c0_5, %c0_6, %c1, %c0_7] : memref<1x1x10x10x32xbf16, #tpu.memory_space<vmem>>, vector<1x1x8x8x32xbf16>
    %4 = vector.shape_cast %3 : vector<1x1x8x8x32xbf16> to vector<8x8x32xbf16>
    %c0_8 = arith.constant 0 : index
    %c0_9 = arith.constant 0 : index
    %c0_10 = arith.constant 0 : index
    %c2 = arith.constant 2 : index
    %c0_11 = arith.constant 0 : index
    %5 = vector.load %arg2[%c0_8, %c0_9, %c0_10, %c2, %c0_11] : memref<1x1x10x10x32xbf16, #tpu.memory_space<vmem>>, vector<1x1x8x8x32xbf16>
    %6 = vector.shape_cast %5 : vector<1x1x8x8x32xbf16> to vector<8x8x32xbf16>
    %c0_12 = arith.constant 0 : index
    %c0_13 = arith.constant 0 : index
    %c1_14 = arith.constant 1 : index
    %c0_15 = arith.constant 0 : index
    %c0_16 = arith.constant 0 : index
    %7 = vector.load %arg2[%c0_12, %c0_13, %c1_14, %c0_15, %c0_16] : memref<1x1x10x10x32xbf16, #tpu.memory_space<vmem>>, vector<1x1x8x8x32xbf16>
    %8 = vector.shape_cast %7 : vector<1x1x8x8x32xbf16> to vector<8x8x32xbf16>
    %c0_17 = arith.constant 0 : index
    %c0_18 = arith.constant 0 : index
    %c1_19 = arith.constant 1 : index
    %c1_20 = arith.constant 1 : index
    %c0_21 = arith.constant 0 : index
    %9 = vector.load %arg2[%c0_17, %c0_18, %c1_19, %c1_20, %c0_21] : memref<1x1x10x10x32xbf16, #tpu.memory_space<vmem>>, vector<1x1x8x8x32xbf16>
    %10 = vector.shape_cast %9 : vector<1x1x8x8x32xbf16> to vector<8x8x32xbf16>
    %c0_22 = arith.constant 0 : index
    %c0_23 = arith.constant 0 : index
    %c1_24 = arith.constant 1 : index
    %c2_25 = arith.constant 2 : index
    %c0_26 = arith.constant 0 : index
    %11 = vector.load %arg2[%c0_22, %c0_23, %c1_24, %c2_25, %c0_26] : memref<1x1x10x10x32xbf16, #tpu.memory_space<vmem>>, vector<1x1x8x8x32xbf16>
    %12 = vector.shape_cast %11 : vector<1x1x8x8x32xbf16> to vector<8x8x32xbf16>
    %c0_27 = arith.constant 0 : index
    %c0_28 = arith.constant 0 : index
    %c2_29 = arith.constant 2 : index
    %c0_30 = arith.constant 0 : index
    %c0_31 = arith.constant 0 : index
    %13 = vector.load %arg2[%c0_27, %c0_28, %c2_29, %c0_30, %c0_31] : memref<1x1x10x10x32xbf16, #tpu.memory_space<vmem>>, vector<1x1x8x8x32xbf16>
    %14 = vector.shape_cast %13 : vector<1x1x8x8x32xbf16> to vector<8x8x32xbf16>
    %c0_32 = arith.constant 0 : index
    %c0_33 = arith.constant 0 : index
    %c2_34 = arith.constant 2 : index
    %c1_35 = arith.constant 1 : index
    %c0_36 = arith.constant 0 : index
    %15 = vector.load %arg2[%c0_32, %c0_33, %c2_34, %c1_35, %c0_36] : memref<1x1x10x10x32xbf16, #tpu.memory_space<vmem>>, vector<1x1x8x8x32xbf16>
    %16 = vector.shape_cast %15 : vector<1x1x8x8x32xbf16> to vector<8x8x32xbf16>
    %c0_37 = arith.constant 0 : index
    %c0_38 = arith.constant 0 : index
    %c2_39 = arith.constant 2 : index
    %c2_40 = arith.constant 2 : index
    %c0_41 = arith.constant 0 : index
    %17 = vector.load %arg2[%c0_37, %c0_38, %c2_39, %c2_40, %c0_41] : memref<1x1x10x10x32xbf16, #tpu.memory_space<vmem>>, vector<1x1x8x8x32xbf16>
    %18 = vector.shape_cast %17 : vector<1x1x8x8x32xbf16> to vector<8x8x32xbf16>
    %c0_42 = arith.constant 0 : index
    %c0_43 = arith.constant 0 : index
    %c0_44 = arith.constant 0 : index
    %c0_45 = arith.constant 0 : index
    %c0_46 = arith.constant 0 : index
    %19 = vector.load %arg3[%c0_42, %c0_43, %c0_44, %c0_45, %c0_46] : memref<1x1x10x10x32xbf16, #tpu.memory_space<vmem>>, vector<1x1x8x8x32xbf16>
    %20 = vector.shape_cast %19 : vector<1x1x8x8x32xbf16> to vector<8x8x32xbf16>
    %c0_47 = arith.constant 0 : index
    %c0_48 = arith.constant 0 : index
    %c0_49 = arith.constant 0 : index
    %c1_50 = arith.constant 1 : index
    %c0_51 = arith.constant 0 : index
    %21 = vector.load %arg3[%c0_47, %c0_48, %c0_49, %c1_50, %c0_51] : memref<1x1x10x10x32xbf16, #tpu.memory_space<vmem>>, vector<1x1x8x8x32xbf16>
    %22 = vector.shape_cast %21 : vector<1x1x8x8x32xbf16> to vector<8x8x32xbf16>
    %c0_52 = arith.constant 0 : index
    %c0_53 = arith.constant 0 : index
    %c0_54 = arith.constant 0 : index
    %c2_55 = arith.constant 2 : index
    %c0_56 = arith.constant 0 : index
    %23 = vector.load %arg3[%c0_52, %c0_53, %c0_54, %c2_55, %c0_56] : memref<1x1x10x10x32xbf16, #tpu.memory_space<vmem>>, vector<1x1x8x8x32xbf16>
    %24 = vector.shape_cast %23 : vector<1x1x8x8x32xbf16> to vector<8x8x32xbf16>
    %c0_57 = arith.constant 0 : index
    %c0_58 = arith.constant 0 : index
    %c1_59 = arith.constant 1 : index
    %c0_60 = arith.constant 0 : index
    %c0_61 = arith.constant 0 : index
    %25 = vector.load %arg3[%c0_57, %c0_58, %c1_59, %c0_60, %c0_61] : memref<1x1x10x10x32xbf16, #tpu.memory_space<vmem>>, vector<1x1x8x8x32xbf16>
    %26 = vector.shape_cast %25 : vector<1x1x8x8x32xbf16> to vector<8x8x32xbf16>
    %c0_62 = arith.constant 0 : index
    %c0_63 = arith.constant 0 : index
    %c1_64 = arith.constant 1 : index
    %c1_65 = arith.constant 1 : index
    %c0_66 = arith.constant 0 : index
    %27 = vector.load %arg3[%c0_62, %c0_63, %c1_64, %c1_65, %c0_66] : memref<1x1x10x10x32xbf16, #tpu.memory_space<vmem>>, vector<1x1x8x8x32xbf16>
    %28 = vector.shape_cast %27 : vector<1x1x8x8x32xbf16> to vector<8x8x32xbf16>
    %c0_67 = arith.constant 0 : index
    %c0_68 = arith.constant 0 : index
    %c1_69 = arith.constant 1 : index
    %c2_70 = arith.constant 2 : index
    %c0_71 = arith.constant 0 : index
    %29 = vector.load %arg3[%c0_67, %c0_68, %c1_69, %c2_70, %c0_71] : memref<1x1x10x10x32xbf16, #tpu.memory_space<vmem>>, vector<1x1x8x8x32xbf16>
    %30 = vector.shape_cast %29 : vector<1x1x8x8x32xbf16> to vector<8x8x32xbf16>
    %c0_72 = arith.constant 0 : index
    %c0_73 = arith.constant 0 : index
    %c2_74 = arith.constant 2 : index
    %c0_75 = arith.constant 0 : index
    %c0_76 = arith.constant 0 : index
    %31 = vector.load %arg3[%c0_72, %c0_73, %c2_74, %c0_75, %c0_76] : memref<1x1x10x10x32xbf16, #tpu.memory_space<vmem>>, vector<1x1x8x8x32xbf16>
    %32 = vector.shape_cast %31 : vector<1x1x8x8x32xbf16> to vector<8x8x32xbf16>
    %c0_77 = arith.constant 0 : index
    %c0_78 = arith.constant 0 : index
    %c2_79 = arith.constant 2 : index
    %c1_80 = arith.constant 1 : index
    %c0_81 = arith.constant 0 : index
    %33 = vector.load %arg3[%c0_77, %c0_78, %c2_79, %c1_80, %c0_81] : memref<1x1x10x10x32xbf16, #tpu.memory_space<vmem>>, vector<1x1x8x8x32xbf16>
    %34 = vector.shape_cast %33 : vector<1x1x8x8x32xbf16> to vector<8x8x32xbf16>
    %c0_82 = arith.constant 0 : index
    %c0_83 = arith.constant 0 : index
    %c2_84 = arith.constant 2 : index
    %c2_85 = arith.constant 2 : index
    %c0_86 = arith.constant 0 : index
    %35 = vector.load %arg3[%c0_82, %c0_83, %c2_84, %c2_85, %c0_86] : memref<1x1x10x10x32xbf16, #tpu.memory_space<vmem>>, vector<1x1x8x8x32xbf16>
    %36 = vector.shape_cast %35 : vector<1x1x8x8x32xbf16> to vector<8x8x32xbf16>
    %c0_87 = arith.constant 0 : index
    %c0_88 = arith.constant 0 : index
    %c0_89 = arith.constant 0 : index
    %c0_90 = arith.constant 0 : index
    %c0_91 = arith.constant 0 : index
    %37 = vector.load %arg4[%c0_87, %c0_88, %c0_89, %c0_90, %c0_91] : memref<1x1x10x10x32xbf16, #tpu.memory_space<vmem>>, vector<1x1x8x8x32xbf16>
    %38 = vector.shape_cast %37 : vector<1x1x8x8x32xbf16> to vector<8x8x32xbf16>
    %c0_92 = arith.constant 0 : index
    %c0_93 = arith.constant 0 : index
    %c0_94 = arith.constant 0 : index
    %c1_95 = arith.constant 1 : index
    %c0_96 = arith.constant 0 : index
    %39 = vector.load %arg4[%c0_92, %c0_93, %c0_94, %c1_95, %c0_96] : memref<1x1x10x10x32xbf16, #tpu.memory_space<vmem>>, vector<1x1x8x8x32xbf16>
    %40 = vector.shape_cast %39 : vector<1x1x8x8x32xbf16> to vector<8x8x32xbf16>
    %c0_97 = arith.constant 0 : index
    %c0_98 = arith.constant 0 : index
    %c0_99 = arith.constant 0 : index
    %c2_100 = arith.constant 2 : index
    %c0_101 = arith.constant 0 : index
    %41 = vector.load %arg4[%c0_97, %c0_98, %c0_99, %c2_100, %c0_101] : memref<1x1x10x10x32xbf16, #tpu.memory_space<vmem>>, vector<1x1x8x8x32xbf16>
    %42 = vector.shape_cast %41 : vector<1x1x8x8x32xbf16> to vector<8x8x32xbf16>
    %c0_102 = arith.constant 0 : index
    %c0_103 = arith.constant 0 : index
    %c1_104 = arith.constant 1 : index
    %c0_105 = arith.constant 0 : index
    %c0_106 = arith.constant 0 : index
    %43 = vector.load %arg4[%c0_102, %c0_103, %c1_104, %c0_105, %c0_106] : memref<1x1x10x10x32xbf16, #tpu.memory_space<vmem>>, vector<1x1x8x8x32xbf16>
    %44 = vector.shape_cast %43 : vector<1x1x8x8x32xbf16> to vector<8x8x32xbf16>
    %c0_107 = arith.constant 0 : index
    %c0_108 = arith.constant 0 : index
    %c1_109 = arith.constant 1 : index
    %c1_110 = arith.constant 1 : index
    %c0_111 = arith.constant 0 : index
    %45 = vector.load %arg4[%c0_107, %c0_108, %c1_109, %c1_110, %c0_111] : memref<1x1x10x10x32xbf16, #tpu.memory_space<vmem>>, vector<1x1x8x8x32xbf16>
    %46 = vector.shape_cast %45 : vector<1x1x8x8x32xbf16> to vector<8x8x32xbf16>
    %c0_112 = arith.constant 0 : index
    %c0_113 = arith.constant 0 : index
    %c1_114 = arith.constant 1 : index
    %c2_115 = arith.constant 2 : index
    %c0_116 = arith.constant 0 : index
    %47 = vector.load %arg4[%c0_112, %c0_113, %c1_114, %c2_115, %c0_116] : memref<1x1x10x10x32xbf16, #tpu.memory_space<vmem>>, vector<1x1x8x8x32xbf16>
    %48 = vector.shape_cast %47 : vector<1x1x8x8x32xbf16> to vector<8x8x32xbf16>
    %c0_117 = arith.constant 0 : index
    %c0_118 = arith.constant 0 : index
    %c2_119 = arith.constant 2 : index
    %c0_120 = arith.constant 0 : index
    %c0_121 = arith.constant 0 : index
    %49 = vector.load %arg4[%c0_117, %c0_118, %c2_119, %c0_120, %c0_121] : memref<1x1x10x10x32xbf16, #tpu.memory_space<vmem>>, vector<1x1x8x8x32xbf16>
    %50 = vector.shape_cast %49 : vector<1x1x8x8x32xbf16> to vector<8x8x32xbf16>
    %c0_122 = arith.constant 0 : index
    %c0_123 = arith.constant 0 : index
    %c2_124 = arith.constant 2 : index
    %c1_125 = arith.constant 1 : index
    %c0_126 = arith.constant 0 : index
    %51 = vector.load %arg4[%c0_122, %c0_123, %c2_124, %c1_125, %c0_126] : memref<1x1x10x10x32xbf16, #tpu.memory_space<vmem>>, vector<1x1x8x8x32xbf16>
    %52 = vector.shape_cast %51 : vector<1x1x8x8x32xbf16> to vector<8x8x32xbf16>
    %c0_127 = arith.constant 0 : index
    %c0_128 = arith.constant 0 : index
    %c2_129 = arith.constant 2 : index
    %c2_130 = arith.constant 2 : index
    %c0_131 = arith.constant 0 : index
    %53 = vector.load %arg4[%c0_127, %c0_128, %c2_129, %c2_130, %c0_131] : memref<1x1x10x10x32xbf16, #tpu.memory_space<vmem>>, vector<1x1x8x8x32xbf16>
    %54 = vector.shape_cast %53 : vector<1x1x8x8x32xbf16> to vector<8x8x32xbf16>
    %55 = tpu.concatenate %2, %4, %6, %8, %10, %12, %14, %16, %18, %20, %22, %24, %26, %28, %30, %32 in 2 : vector<8x8x32xbf16>, vector<8x8x32xbf16>, vector<8x8x32xbf16>, vector<8x8x32xbf16>, vector<8x8x32xbf16>, vector<8x8x32xbf16>, vector<8x8x32xbf16>, vector<8x8x32xbf16>, vector<8x8x32xbf16>, vector<8x8x32xbf16>, vector<8x8x32xbf16>, vector<8x8x32xbf16>, vector<8x8x32xbf16>, vector<8x8x32xbf16>, vector<8x8x32xbf16>, vector<8x8x32xbf16> -> vector<8x8x512xbf16>
    %56 = tpu.concatenate %34, %36, %38, %40, %42, %44, %46, %48, %50, %52, %54 in 2 : vector<8x8x32xbf16>, vector<8x8x32xbf16>, vector<8x8x32xbf16>, vector<8x8x32xbf16>, vector<8x8x32xbf16>, vector<8x8x32xbf16>, vector<8x8x32xbf16>, vector<8x8x32xbf16>, vector<8x8x32xbf16>, vector<8x8x32xbf16>, vector<8x8x32xbf16> -> vector<8x8x352xbf16>
    %57 = tpu.concatenate %55, %56 in 2 : vector<8x8x512xbf16>, vector<8x8x352xbf16> -> vector<8x8x864xbf16>
    %58 = vector.shape_cast %57 : vector<8x8x864xbf16> to vector<64x864xbf16>
    %c0_132 = arith.constant 0 : index
    %c0_133 = arith.constant 0 : index
    %c0_134 = arith.constant 0 : index
    %59 = vector.load %arg6[%c0_132, %c0_133, %c0_134] : memref<1x864x32xbf16, #tpu.memory_space<vmem>>, vector<1x864x32xbf16>
    %60 = vector.shape_cast %59 : vector<1x864x32xbf16> to vector<864x32xbf16>
    %cst_135 = arith.constant dense<0.000000e+00> : vector<64x32xf32>
    %61 = tpu.matmul %58, %60, %cst_135 {dimension_numbers = #tpu.dot_dimension_numbers<[1], [0], [0], [1], [0, 0, 1, 1], [], []>} : vector<64x864xbf16>, vector<864x32xbf16>, vector<64x32xf32> -> vector<64x32xf32>
    %c0_136 = arith.constant 0 : index
    %c0_137 = arith.constant 0 : index
    %62 = vector.load %arg9[%c0_136, %c0_137] : memref<1x32xf32, #tpu.memory_space<vmem>>, vector<1x32xf32>
    %63 = vector.broadcast %62 : vector<1x32xf32> to vector<64x32xf32>
    %64 = arith.mulf %61, %63 : vector<64x32xf32>
    %c0_138 = arith.constant 0 : index
    %c0_139 = arith.constant 0 : index
    %65 = vector.load %arg10[%c0_138, %c0_139] : memref<1x32xf32, #tpu.memory_space<vmem>>, vector<1x32xf32>
    %66 = vector.broadcast %65 : vector<1x32xf32> to vector<64x32xf32>
    %67 = arith.addf %64, %66 : vector<64x32xf32>
    %cst_140 = arith.constant 0.000000e+00 : f32
    %68 = vector.broadcast %cst_140 : f32 to vector<64x32xf32>
    %69 = arith.maximumf %67, %68 : vector<64x32xf32>
    %70 = arith.truncf %69 : vector<64x32xf32> to vector<64x32xbf16>
    %c0_141 = arith.constant 0 : index
    %c0_142 = arith.constant 0 : index
    %71 = vector.load %arg7[%c0_141, %c0_142] : memref<32x24xbf16, #tpu.memory_space<vmem>>, vector<32x24xbf16>
    %cst_143 = arith.constant dense<0.000000e+00> : vector<64x24xf32>
    %72 = tpu.matmul %70, %71, %cst_143 {dimension_numbers = #tpu.dot_dimension_numbers<[1], [0], [0], [1], [0, 0, 1, 1], [], []>} : vector<64x32xbf16>, vector<32x24xbf16>, vector<64x24xf32> -> vector<64x24xf32>
    %73 = arith.addf %0, %72 : vector<64x24xf32>
    %c0_144 = arith.constant 0 : index
    %c0_145 = arith.constant 0 : index
    %74 = vector.load %arg11[%c0_144, %c0_145] : memref<1x24xf32, #tpu.memory_space<vmem>>, vector<1x24xf32>
    %75 = vector.broadcast %74 : vector<1x24xf32> to vector<64x24xf32>
    %76 = arith.mulf %73, %75 : vector<64x24xf32>
    %c0_146 = arith.constant 0 : index
    %c0_147 = arith.constant 0 : index
    %77 = vector.load %arg12[%c0_146, %c0_147] : memref<1x24xf32, #tpu.memory_space<vmem>>, vector<1x24xf32>
    %78 = vector.broadcast %77 : vector<1x24xf32> to vector<64x24xf32>
    %79 = arith.addf %76, %78 : vector<64x24xf32>
    %c0_148 = arith.constant 0 : index
    %c0_149 = arith.constant 0 : index
    %c0_150 = arith.constant 0 : index
    %c0_151 = arith.constant 0 : index
    %c0_152 = arith.constant 0 : index
    %80 = vector.load %arg5[%c0_148, %c0_149, %c0_150, %c0_151, %c0_152] : memref<1x1x8x8x16xbf16, #tpu.memory_space<vmem>>, vector<1x1x8x8x16xbf16>
    %81 = vector.shape_cast %80 : vector<1x1x8x8x16xbf16> to vector<8x8x16xbf16>
    %82 = vector.shape_cast %81 : vector<8x8x16xbf16> to vector<64x16xbf16>
    %c0_153 = arith.constant 0 : index
    %c0_154 = arith.constant 0 : index
    %83 = vector.load %arg8[%c0_153, %c0_154] : memref<16x24xbf16, #tpu.memory_space<vmem>>, vector<16x24xbf16>
    %cst_155 = arith.constant dense<0.000000e+00> : vector<64x24xf32>
    %84 = tpu.matmul %82, %83, %cst_155 {dimension_numbers = #tpu.dot_dimension_numbers<[1], [0], [0], [1], [0, 0, 1, 1], [], []>} : vector<64x16xbf16>, vector<16x24xbf16>, vector<64x24xf32> -> vector<64x24xf32>
    %c0_156 = arith.constant 0 : index
    %c0_157 = arith.constant 0 : index
    %85 = vector.load %arg13[%c0_156, %c0_157] : memref<1x24xf32, #tpu.memory_space<vmem>>, vector<1x24xf32>
    %86 = vector.broadcast %85 : vector<1x24xf32> to vector<64x24xf32>
    %87 = arith.mulf %84, %86 : vector<64x24xf32>
    %c0_158 = arith.constant 0 : index
    %c0_159 = arith.constant 0 : index
    %88 = vector.load %arg14[%c0_158, %c0_159] : memref<1x24xf32, #tpu.memory_space<vmem>>, vector<1x24xf32>
    %89 = vector.broadcast %88 : vector<1x24xf32> to vector<64x24xf32>
    %90 = arith.addf %87, %89 : vector<64x24xf32>
    %91 = vector.extract_strided_slice %90 {offsets = [0, 0], sizes = [64, 16], strides = [1, 1]} : vector<64x24xf32> to vector<64x16xf32>
    %92 = vector.extract_strided_slice %79 {offsets = [0, 0], sizes = [64, 16], strides = [1, 1]} : vector<64x24xf32> to vector<64x16xf32>
    %93 = arith.addf %91, %92 : vector<64x16xf32>
    %94 = vector.extract_strided_slice %90 {offsets = [0, 16], sizes = [64, 8], strides = [1, 1]} : vector<64x24xf32> to vector<64x8xf32>
    %95 = vector.extract_strided_slice %79 {offsets = [0, 16], sizes = [64, 8], strides = [1, 1]} : vector<64x24xf32> to vector<64x8xf32>
    %96 = tpu.concatenate %93, %94, %95 in 1 : vector<64x16xf32>, vector<64x8xf32>, vector<64x8xf32> -> vector<64x32xf32>
    %cst_160 = arith.constant 0.000000e+00 : f32
    %97 = vector.broadcast %cst_160 : f32 to vector<64x32xf32>
    %98 = arith.maximumf %96, %97 : vector<64x32xf32>
    %99 = arith.truncf %98 : vector<64x32xf32> to vector<64x32xbf16>
    %100 = vector.shape_cast %99 : vector<64x32xbf16> to vector<8x8x32xbf16>
    %c0_161 = arith.constant 0 : index
    %c0_162 = arith.constant 0 : index
    %c0_163 = arith.constant 0 : index
    %c0_164 = arith.constant 0 : index
    %c0_165 = arith.constant 0 : index
    %101 = vector.load %arg15[%c0_161, %c0_162, %c0_163, %c0_164, %c0_165] : memref<1x1x8x8x32xbf16, #tpu.memory_space<vmem>>, vector<1x1x8x8x32xbf16>
    %102 = vector.shape_cast %101 : vector<1x1x8x8x32xbf16> to vector<8x8x32xbf16>
    %103 = vector.shape_cast %100 : vector<8x8x32xbf16> to vector<1x1x8x8x32xbf16>
    tpu.vector_store %arg15[%c0_161, %c0_162, %c0_163, %c0_164, %c0_165], %103 {strides = array<i32>} : memref<1x1x8x8x32xbf16, #tpu.memory_space<vmem>>, vector<1x1x8x8x32xbf16>,
    return
  }
  func.func @transform_0(%arg0: i32, %arg1: i32) -> (i32, i32, i32, i32, i32) {
    %c1_i32 = arith.constant 1 : i32
    %0 = arith.muli %arg1, %c1_i32 : i32
    %c0_i32 = arith.constant 0 : i32
    %1 = arith.addi %0, %c0_i32 : i32
    %c0_i32_0 = arith.constant 0 : i32
    %c0_i32_1 = arith.constant 0 : i32
    %c0_i32_2 = arith.constant 0 : i32
    %c0_i32_3 = arith.constant 0 : i32
    return %arg0, %1, %c0_i32_0, %c0_i32_1, %c0_i32_2 : i32, i32, i32, i32, i32
  }
  func.func @transform_1(%arg0: i32, %arg1: i32) -> (i32, i32, i32, i32, i32) {
    %c1_i32 = arith.constant 1 : i32
    %0 = arith.muli %arg1, %c1_i32 : i32
    %c1_i32_0 = arith.constant 1 : i32
    %1 = arith.addi %0, %c1_i32_0 : i32
    %c0_i32 = arith.constant 0 : i32
    %c0_i32_1 = arith.constant 0 : i32
    %c0_i32_2 = arith.constant 0 : i32
    %c0_i32_3 = arith.constant 0 : i32
    return %arg0, %1, %c0_i32, %c0_i32_1, %c0_i32_2 : i32, i32, i32, i32, i32
  }
  func.func @transform_2(%arg0: i32, %arg1: i32) -> (i32, i32, i32, i32, i32) {
    %c1_i32 = arith.constant 1 : i32
    %0 = arith.muli %arg1, %c1_i32 : i32
    %c2_i32 = arith.constant 2 : i32
    %1 = arith.addi %0, %c2_i32 : i32
    %c0_i32 = arith.constant 0 : i32
    %c0_i32_0 = arith.constant 0 : i32
    %c0_i32_1 = arith.constant 0 : i32
    %c0_i32_2 = arith.constant 0 : i32
    return %arg0, %1, %c0_i32, %c0_i32_0, %c0_i32_1 : i32, i32, i32, i32, i32
  }
  func.func @transform_3(%arg0: i32, %arg1: i32) -> (i32, i32, i32, i32, i32) {
    %c0_i32 = arith.constant 0 : i32
    %c0_i32_0 = arith.constant 0 : i32
    %c0_i32_1 = arith.constant 0 : i32
    %c0_i32_2 = arith.constant 0 : i32
    return %arg0, %arg1, %c0_i32, %c0_i32_0, %c0_i32_1 : i32, i32, i32, i32, i32
  }
  func.func @transform_4(%arg0: i32, %arg1: i32) -> (i32, i32, i32) {
    %c0_i32 = arith.constant 0 : i32
    %c0_i32_0 = arith.constant 0 : i32
    %c0_i32_1 = arith.constant 0 : i32
    %c0_i32_2 = arith.constant 0 : i32
    return %c0_i32, %c0_i32_0, %c0_i32_1 : i32, i32, i32
  }
  func.func @transform_5(%arg0: i32, %arg1: i32) -> (i32, i32) {
    %c0_i32 = arith.constant 0 : i32
    %c0_i32_0 = arith.constant 0 : i32
    %c0_i32_1 = arith.constant 0 : i32
    return %c0_i32, %c0_i32_0 : i32, i32
  }
  func.func @transform_6(%arg0: i32, %arg1: i32) -> (i32, i32) {
    %c0_i32 = arith.constant 0 : i32
    %c0_i32_0 = arith.constant 0 : i32
    %c0_i32_1 = arith.constant 0 : i32
    return %c0_i32, %c0_i32_0 : i32, i32
  }
  func.func @transform_7(%arg0: i32, %arg1: i32) -> (i32, i32) {
    %c0_i32 = arith.constant 0 : i32
    %c0_i32_0 = arith.constant 0 : i32
    %c0_i32_1 = arith.constant 0 : i32
    return %c0_i32, %c0_i32_0 : i32, i32
  }
  func.func @transform_8(%arg0: i32, %arg1: i32) -> (i32, i32) {
    %c0_i32 = arith.constant 0 : i32
    %c0_i32_0 = arith.constant 0 : i32
    %c0_i32_1 = arith.constant 0 : i32
    return %c0_i32, %c0_i32_0 : i32, i32
  }
  func.func @transform_9(%arg0: i32, %arg1: i32) -> (i32, i32) {
    %c0_i32 = arith.constant 0 : i32
    %c0_i32_0 = arith.constant 0 : i32
    %c0_i32_1 = arith.constant 0 : i32
    return %c0_i32, %c0_i32_0 : i32, i32
  }
  func.func @transform_10(%arg0: i32, %arg1: i32) -> (i32, i32) {
    %c0_i32 = arith.constant 0 : i32
    %c0_i32_0 = arith.constant 0 : i32
    %c0_i32_1 = arith.constant 0 : i32
    return %c0_i32, %c0_i32_0 : i32, i32
  }
  func.func @transform_11(%arg0: i32, %arg1: i32) -> (i32, i32) {
    %c0_i32 = arith.constant 0 : i32
    %c0_i32_0 = arith.constant 0 : i32
    %c0_i32_1 = arith.constant 0 : i32
    return %c0_i32, %c0_i32_0 : i32, i32
  }
  func.func @transform_12(%arg0: i32, %arg1: i32) -> (i32, i32) {
    %c0_i32 = arith.constant 0 : i32
    %c0_i32_0 = arith.constant 0 : i32
    %c0_i32_1 = arith.constant 0 : i32
    return %c0_i32, %c0_i32_0 : i32, i32
  }
  func.func @transform_13(%arg0: i32, %arg1: i32) -> (i32, i32, i32, i32, i32) {
    %c0_i32 = arith.constant 0 : i32
    %c0_i32_0 = arith.constant 0 : i32
    %c0_i32_1 = arith.constant 0 : i32
    %c0_i32_2 = arith.constant 0 : i32
    return %arg0, %arg1, %c0_i32, %c0_i32_0, %c0_i32_1 : i32, i32, i32, i32, i32
  }
}

</mosaic_0001>

<llo_original>
// kernel: bottleneck_forward.2
$region0: #{bottleneck_forward.2}
  #allocation0 [shape = 'u32[]', space=smem, size = 0x4, offset = 0x4, fixed_abs, tag = 'smem constant byte address 0x4 - core index']
  #allocation1 [shape = 'u32[144,128]{1,0:T(1,128)}', space=vmem, size = 0x12000, scoped, tag = 'internal scratch']
  %s0 = inlined_call_operand.vmem [shape: bf16[1024,16], index: 0, kind: input, shape index: {}]
  %s1 = inlined_call_operand.vmem [shape: bf16[16,32], index: 1, kind: input, shape index: {}]
  %s2 = inlined_call_operand.vmem [shape: f32[1,32], index: 2, kind: input, shape index: {}]
  %s3 = inlined_call_operand.vmem [shape: f32[1,32], index: 3, kind: input, shape index: {}]
  %s4 = inlined_call_operand.vmem [shape: bf16[1024,32], index: 4, kind: output, shape index: {}]
  %s5 = sld [smem:[#allocation0]]
  $region49: #{bottleneck_forward.2} parent=0
    _
  %s7 = ssub.s32 1, %s5
  %s8 = scalar_select 0, %s7, %s5
  loop: start=0, step=1, limit=4
  $region2: #{bottleneck_forward.2} parent=0 // loop_pre_header
    _
  $region3: #{bottleneck_forward.2} parent=0 // loop_header
    %s10 = sphi 0, %s14
    %p11 = scmp.ge.s32.totalorder %s10, 4
    %s20 = sphi 0, %s22
    %s23 = sphi 0, %s20
    %s24 = sphi 0, %s23
    %s40 = sphi 0, %s24
    %s44 = sphi 0, %s44
    %s46 = sphi 0, %s44
    %s47 = sphi 0, %s46
    %s61 = sphi 0, %s47
    %s65 = sphi 0, %s65
    %s67 = sphi 0, %s65
    %s68 = sphi 0, %s67
    %s82 = sphi 0, %s68
    %s86 = sphi 0, %s86
    %s88 = sphi 0, %s86
    %s89 = sphi 0, %s88
    %s103 = sphi 0, %s89
    %s109 = sphi 0, %s111
    %s112 = sphi 0, %s109
    %s113 = sphi 0, %s112
    %s129 = sphi 0, %s113
  $region4: #{bottleneck_forward.2} parent=0 // loop_header_branch
    %13 = sbr.rel (%p11) target = $region8
  $region5: #{bottleneck_forward.2} parent=0 // loop_body
    %s15 = ssub.s32 %s10, 1
    %s16 = ssub.s32 %s10, 2
    %s17 = sadd.s32 %s10, 1
    %s18 = ssub.s32 %s10, %s17
    %p19 = scmp.eq.s32.totalorder %s18, 0
    %s21 = sadd.s32 %s20, 1
    %s22 = scalar_select %p19, %s20, %s21
    %p25 = pneg %p19
    %p26 = scmp.eq.s32.totalorder %s10, 1
    %p27 = por %p25, %p26
    %p28 = scmp.ne.s32.totalorder %s20, %s23
    %p29 = scmp.eq.s32.totalorder %s10, 0
    %p30 = por %p28, %p29
    %p31 = scmp.ne.s32.totalorder %s20, %s23
    %p32 = scmp.eq.s32.totalorder %s15, 1
    %p33 = por %p31, %p32
    %p34 = scmp.ne.s32.totalorder %s23, %s24
    %p35 = scmp.eq.s32.totalorder %s15, 0
    %p36 = por %p34, %p35
    %p37 = scmp.ne.s32.totalorder %s23, %s24
    %p38 = scmp.eq.s32.totalorder %s16, 1
    %p39 = por %p37, %p38
    %p41 = scmp.ne.s32.totalorder %s24, %s40
    %p42 = scmp.eq.s32.totalorder %s16, 0
    %p43 = por %p41, %p42
    %s45 = sadd.s32 %s44, 1
    %p48 = scmp.eq.s32.totalorder %s10, 1
    %p49 = scmp.ne.s32.totalorder %s44, %s46
    %p50 = scmp.eq.s32.totalorder %s10, 0
    %p51 = por %p49, %p50
    %p52 = scmp.ne.s32.totalorder %s44, %s46
    %p53 = scmp.eq.s32.totalorder %s15, 1
    %p54 = por %p52, %p53
    %p55 = scmp.ne.s32.totalorder %s46, %s47
    %p56 = scmp.eq.s32.totalorder %s15, 0
    %p57 = por %p55, %p56
    %p58 = scmp.ne.s32.totalorder %s46, %s47
    %p59 = scmp.eq.s32.totalorder %s16, 1
    %p60 = por %p58, %p59
    %p62 = scmp.ne.s32.totalorder %s47, %s61
    %p63 = scmp.eq.s32.totalorder %s16, 0
    %p64 = por %p62, %p63
    %s66 = sadd.s32 %s65, 1
    %p69 = scmp.eq.s32.totalorder %s10, 1
    %p70 = scmp.ne.s32.totalorder %s65, %s67
    %p71 = scmp.eq.s32.totalorder %s10, 0
    %p72 = por %p70, %p71
    %p73 = scmp.ne.s32.totalorder %s65, %s67
    %p74 = scmp.eq.s32.totalorder %s15, 1
    %p75 = por %p73, %p74
    %p76 = scmp.ne.s32.totalorder %s67, %s68
    %p77 = scmp.eq.s32.totalorder %s15, 0
    %p78 = por %p76, %p77
    %p79 = scmp.ne.s32.totalorder %s67, %s68
    %p80 = scmp.eq.s32.totalorder %s16, 1
    %p81 = por %p79, %p80
    %p83 = scmp.ne.s32.totalorder %s68, %s82
    %p84 = scmp.eq.s32.totalorder %s16, 0
    %p85 = por %p83, %p84
    %s87 = sadd.s32 %s86, 1
    %p90 = scmp.eq.s32.totalorder %s10, 1
    %p91 = scmp.ne.s32.totalorder %s86, %s88
    %p92 = scmp.eq.s32.totalorder %s10, 0
    %p93 = por %p91, %p92
    %p94 = scmp.ne.s32.totalorder %s86, %s88
    %p95 = scmp.eq.s32.totalorder %s15, 1
    %p96 = por %p94, %p95
    %p97 = scmp.ne.s32.totalorder %s88, %s89
    %p98 = scmp.eq.s32.totalorder %s15, 0
    %p99 = por %p97, %p98
    %p100 = scmp.ne.s32.totalorder %s88, %s89
    %p101 = scmp.eq.s32.totalorder %s16, 1
    %p102 = por %p100, %p101
    %p104 = scmp.ne.s32.totalorder %s89, %s103
    %p105 = scmp.eq.s32.totalorder %s16, 0
    %p106 = por %p104, %p105
    %s107 = ssub.s32 %s10, %s17
    %p108 = scmp.eq.s32.totalorder %s107, 0
    %s110 = sadd.s32 %s109, 1
    %s111 = scalar_select %p108, %s109, %s110
    %p114 = pneg %p108
    %p115 = scmp.eq.s32.totalorder %s10, 1
    %p116 = por %p114, %p115
    %p117 = scmp.ne.s32.totalorder %s109, %s112
    %p118 = scmp.eq.s32.totalorder %s10, 0
    %p119 = por %p117, %p118
    %p120 = scmp.ne.s32.totalorder %s109, %s112
    %p121 = scmp.eq.s32.totalorder %s15, 1
    %p122 = por %p120, %p121
    %p123 = scmp.ne.s32.totalorder %s112, %s113
    %p124 = scmp.eq.s32.totalorder %s15, 0
    %p125 = por %p123, %p124
    %p126 = scmp.ne.s32.totalorder %s112, %s113
    %p127 = scmp.eq.s32.totalorder %s16, 1
    %p128 = por %p126, %p127
    %p130 = scmp.ne.s32.totalorder %s113, %s129
    %p131 = scmp.eq.s32.totalorder %s16, 0
    %p132 = por %p130, %p131
    %p133 = scmp.le.s32.totalorder 1, %s10
    %p134 = scmp.lt.s32.totalorder %s10, 3
    %p135 = pnand %p133, %p134
    %p136 = pneg %p135
    // Predicated region
    $region9: #{bottleneck_forward.2} parent=5 // pred_check
      _
    $region10: #{bottleneck_forward.2} parent=5 // pred_check_branch
      %138 = sbr.rel (%p135) target = $region12
    $region11: #{bottleneck_forward.2} parent=5 // pred_region
      %s139 = ssub.s32 %s10, 1
      // Predicated region
      $region13: #{bottleneck_forward.2} parent=11 // pred_check
        %p140 = pneg %p57
      $region14: #{bottleneck_forward.2} parent=11 // pred_check_branch
        %142 = sbr.rel (%p140) target = $region16
      $region15: #{bottleneck_forward.2} parent=11 // pred_region
        _
      $region16: #{bottleneck_forward.2} parent=11 // pred_fallthru
        _
      // Predicated region
      $region17: #{bottleneck_forward.2} parent=11 // pred_check
        %p143 = pneg %p78
      $region18: #{bottleneck_forward.2} parent=11 // pred_check_branch
        %145 = sbr.rel (%p143) target = $region20
      $region19: #{bottleneck_forward.2} parent=11 // pred_region
        _
      $region20: #{bottleneck_forward.2} parent=11 // pred_fallthru
        _
      // Predicated region
      $region21: #{bottleneck_forward.2} parent=11 // pred_check
        %p146 = pneg %p99
      $region22: #{bottleneck_forward.2} parent=11 // pred_check_branch
        %148 = sbr.rel (%p146) target = $region24
      $region23: #{bottleneck_forward.2} parent=11 // pred_region
        _
      $region24: #{bottleneck_forward.2} parent=11 // pred_fallthru
        _
    $region12: #{bottleneck_forward.2} parent=5 // pred_fallthru
      _
    %p149 = scmp.lt.s32.totalorder %s10, 2
    // Predicated region
    $region25: #{bottleneck_forward.2} parent=5 // pred_check
      %p150 = pneg %p149
    $region26: #{bottleneck_forward.2} parent=5 // pred_check_branch
      %152 = sbr.rel (%p150) target = $region28
    $region27: #{bottleneck_forward.2} parent=5 // pred_region
      // Predicated region
      $region29: #{bottleneck_forward.2} parent=27 // pred_check
        %p153 = pneg %p30
      $region30: #{bottleneck_forward.2} parent=27 // pred_check_branch
        %155 = sbr.rel (%p153) target = $region32
      $region31: #{bottleneck_forward.2} parent=27 // pred_region
        %s156 = smul.u32 64, %s10
        %p157 = scmp.lt.s32.totalorder %s156, 127
        %s158 = scalar_select %p157, %s156, 127
        %s159 = smul.addr %s158, 4
        %s160 = scalar_lea.vmem %s0, %s159
        %s161 = smul.u32 64, %s10
      $region32: #{bottleneck_forward.2} parent=27 // pred_fallthru
        _
    $region28: #{bottleneck_forward.2} parent=5 // pred_fallthru
      _
    %p162 = scmp.le.s32.totalorder 1, %s10
    %p163 = scmp.lt.s32.totalorder %s10, 3
    %p164 = pnand %p162, %p163
    %p165 = pneg %p164
    // Predicated region
    $region33: #{bottleneck_forward.2} parent=5 // pred_check
      _
    $region34: #{bottleneck_forward.2} parent=5 // pred_check_branch
      %167 = sbr.rel (%p164) target = $region36
    $region35: #{bottleneck_forward.2} parent=5 // pred_region
      %s168 = ssub.s32 %s10, 1
      %s169 = smul.u32 64, %s15
      %p170 = scmp.lt.s32.totalorder %s169, 127
      %s171 = scalar_select %p170, %s169, 127
      %s172 = smul.addr %s171, 4
      %s173 = scalar_lea.vmem %s0, %s172
      %p174 = pneg %p36
      %p175 = pneg %p33
      %p176 = pneg %p57
      %p177 = pneg %p54
      %p178 = pneg %p78
      %p179 = pneg %p75
      %p180 = pneg %p99
      %p181 = pneg %p96
      %p182 = pneg %p125
      %p183 = pneg %p122
      %s184 = smul.u32 64, %s15
      %p185 = scmp.lt.s32.totalorder %s184, 127
      %s186 = scalar_select %p185, %s184, 127
      %s187 = smul.addr %s186, 4
      %s188 = scalar_lea.vmem %s4, %s187
      %s189 = smul.u32 64, %s15
      %p190 = scmp.lt.s32.totalorder %s189, 127
      %s191 = scalar_select %p190, %s189, 127
      %s192 = smul.addr %s191, 4
      %s193 = scalar_lea.vmem %s0, %s192
      %s194 = smul.u32 64, %s15
      %s195 = smul.u32 64, %s15
      %p196 = scmp.lt.s32.totalorder %s195, 127
      %s197 = scalar_select %p196, %s195, 127
      %s198 = smul.addr %s197, 4
      %s199 = scalar_lea.vmem %s4, %s198
      %s200 = smul.u32 64, %s15
      %v202 = vld [vmem:[%s193] sm:$0xf]
      %v203 = vld [vmem:[%s193 + $0x4] sm:$0xf]
      %v204 = vld [vmem:[%s193 + $0x8] sm:$0xf]
      %v205 = vld [vmem:[%s193 + $0xc] sm:$0xf]
      %v206 = vld [vmem:[%s193 + $0x10] sm:$0xf]
      %v207 = vld [vmem:[%s193 + $0x14] sm:$0xf]
      %v208 = vld [vmem:[%s193 + $0x18] sm:$0xf]
      %v209 = vld [vmem:[%s193 + $0x1c] sm:$0xf]
      %v210 = vld [vmem:[%s193 + $0x20] sm:$0xf]
      %v211 = vld [vmem:[%s193 + $0x24] sm:$0xf]
      %v212 = vld [vmem:[%s193 + $0x28] sm:$0xf]
      %v213 = vld [vmem:[%s193 + $0x2c] sm:$0xf]
      %v214 = vld [vmem:[%s193 + $0x30] sm:$0xf]
      %v215 = vld [vmem:[%s193 + $0x34] sm:$0xf]
      %v216 = vld [vmem:[%s193 + $0x38] sm:$0xf]
      %v217 = vld [vmem:[%s193 + $0x3c] sm:$0xf]
      %v218 = vld [vmem:[%s193 + $0x40] sm:$0xf]
      %v219 = vld [vmem:[%s193 + $0x44] sm:$0xf]
      %v220 = vld [vmem:[%s193 + $0x48] sm:$0xf]
      %v221 = vld [vmem:[%s193 + $0x4c] sm:$0xf]
      %v222 = vld [vmem:[%s193 + $0x50] sm:$0xf]
      %v223 = vld [vmem:[%s193 + $0x54] sm:$0xf]
      %v224 = vld [vmem:[%s193 + $0x58] sm:$0xf]
      %v225 = vld [vmem:[%s193 + $0x5c] sm:$0xf]
      %v226 = vld [vmem:[%s193 + $0x60] sm:$0xf]
      %v227 = vld [vmem:[%s193 + $0x64] sm:$0xf]
      %v228 = vld [vmem:[%s193 + $0x68] sm:$0xf]
      %v229 = vld [vmem:[%s193 + $0x6c] sm:$0xf]
      %v230 = vld [vmem:[%s193 + $0x70] sm:$0xf]
      %v231 = vld [vmem:[%s193 + $0x74] sm:$0xf]
      %v232 = vld [vmem:[%s193 + $0x78] sm:$0xf]
      %v233 = vld [vmem:[%s193 + $0x7c] sm:$0xf]
      %v234 = vld [vmem:[%s193 + $0x80] sm:$0xf]
      %v235 = vld [vmem:[%s193 + $0x84] sm:$0xf]
      %v236 = vld [vmem:[%s193 + $0x88] sm:$0xf]
      %v237 = vld [vmem:[%s193 + $0x8c] sm:$0xf]
      %v238 = vld [vmem:[%s193 + $0x90] sm:$0xf]
      %v239 = vld [vmem:[%s193 + $0x94] sm:$0xf]
      %v240 = vld [vmem:[%s193 + $0x98] sm:$0xf]
      %v241 = vld [vmem:[%s193 + $0x9c] sm:$0xf]
      %v242 = vld [vmem:[%s193 + $0xa0] sm:$0xf]
      %v243 = vld [vmem:[%s193 + $0xa4] sm:$0xf]
      %v244 = vld [vmem:[%s193 + $0xa8] sm:$0xf]
      %v245 = vld [vmem:[%s193 + $0xac] sm:$0xf]
      %v246 = vld [vmem:[%s193 + $0xb0] sm:$0xf]
      %v247 = vld [vmem:[%s193 + $0xb4] sm:$0xf]
      %v248 = vld [vmem:[%s193 + $0xb8] sm:$0xf]
      %v249 = vld [vmem:[%s193 + $0xbc] sm:$0xf]
      %v250 = vld [vmem:[%s193 + $0xc0] sm:$0xf]
      %v251 = vld [vmem:[%s193 + $0xc4] sm:$0xf]
      %v252 = vld [vmem:[%s193 + $0xc8] sm:$0xf]
      %v253 = vld [vmem:[%s193 + $0xcc] sm:$0xf]
      %v254 = vld [vmem:[%s193 + $0xd0] sm:$0xf]
      %v255 = vld [vmem:[%s193 + $0xd4] sm:$0xf]
      %v256 = vld [vmem:[%s193 + $0xd8] sm:$0xf]
      %v257 = vld [vmem:[%s193 + $0xdc] sm:$0xf]
      %v258 = vld [vmem:[%s193 + $0xe0] sm:$0xf]
      %v259 = vld [vmem:[%s193 + $0xe4] sm:$0xf]
      %v260 = vld [vmem:[%s193 + $0xe8] sm:$0xf]
      %v261 = vld [vmem:[%s193 + $0xec] sm:$0xf]
      %v262 = vld [vmem:[%s193 + $0xf0] sm:$0xf]
      %v263 = vld [vmem:[%s193 + $0xf4] sm:$0xf]
      %v264 = vld [vmem:[%s193 + $0xf8] sm:$0xf]
      %v265 = vld [vmem:[%s193 + $0xfc] sm:$0xf]
      %v266 = vld [vmem:[%s1] sm:$0xf]
      %v267 = vld [vmem:[%s1 + $0x4] sm:$0xf]
      %v332 = vunpack.c.l.b16 %v202
      %v333 = vunpack.c.l.b16 %v203
      %v334 = vunpack.c.l.b16 %v204
      %v335 = vunpack.c.l.b16 %v205
      %v336 = vunpack.c.l.b16 %v206
      %v337 = vunpack.c.l.b16 %v207
      %v338 = vunpack.c.l.b16 %v208
      %v339 = vunpack.c.l.b16 %v209
      %v340 = vunpack.c.l.b16 %v210
      %v341 = vunpack.c.l.b16 %v211
      %v342 = vunpack.c.l.b16 %v212
      %v343 = vunpack.c.l.b16 %v213
      %v344 = vunpack.c.l.b16 %v214
      %v345 = vunpack.c.l.b16 %v215
      %v346 = vunpack.c.l.b16 %v216
      %v347 = vunpack.c.l.b16 %v217
      %v348 = vunpack.c.l.b16 %v218
      %v349 = vunpack.c.l.b16 %v219
      %v350 = vunpack.c.l.b16 %v220
      %v351 = vunpack.c.l.b16 %v221
      %v352 = vunpack.c.l.b16 %v222
      %v353 = vunpack.c.l.b16 %v223
      %v354 = vunpack.c.l.b16 %v224
      %v355 = vunpack.c.l.b16 %v225
      %v356 = vunpack.c.l.b16 %v226
      %v357 = vunpack.c.l.b16 %v227
      %v358 = vunpack.c.l.b16 %v228
      %v359 = vunpack.c.l.b16 %v229
      %v360 = vunpack.c.l.b16 %v230
      %v361 = vunpack.c.l.b16 %v231
      %v362 = vunpack.c.l.b16 %v232
      %v363 = vunpack.c.l.b16 %v233
      %v364 = vunpack.c.l.b16 %v234
      %v365 = vunpack.c.l.b16 %v235
      %v366 = vunpack.c.l.b16 %v236
      %v367 = vunpack.c.l.b16 %v237
      %v368 = vunpack.c.l.b16 %v238
      %v369 = vunpack.c.l.b16 %v239
      %v370 = vunpack.c.l.b16 %v240
      %v371 = vunpack.c.l.b16 %v241
      %v372 = vunpack.c.l.b16 %v242
      %v373 = vunpack.c.l.b16 %v243
      %v374 = vunpack.c.l.b16 %v244
      %v375 = vunpack.c.l.b16 %v245
      %v376 = vunpack.c.l.b16 %v246
      %v377 = vunpack.c.l.b16 %v247
      %v378 = vunpack.c.l.b16 %v248
      %v379 = vunpack.c.l.b16 %v249
      %v380 = vunpack.c.l.b16 %v250
      %v381 = vunpack.c.l.b16 %v251
      %v382 = vunpack.c.l.b16 %v252
      %v383 = vunpack.c.l.b16 %v253
      %v384 = vunpack.c.l.b16 %v254
      %v385 = vunpack.c.l.b16 %v255
      %v386 = vunpack.c.l.b16 %v256
      %v387 = vunpack.c.l.b16 %v257
      %v388 = vunpack.c.l.b16 %v258
      %v389 = vunpack.c.l.b16 %v259
      %v390 = vunpack.c.l.b16 %v260
      %v391 = vunpack.c.l.b16 %v261
      %v392 = vunpack.c.l.b16 %v262
      %v393 = vunpack.c.l.b16 %v263
      %v394 = vunpack.c.l.b16 %v264
      %v395 = vunpack.c.l.b16 %v265
      %v396 = vpack.c.b16 %v333, %v332
      %v397 = vpack.c.b16 %v335, %v334
      %v398 = vpack.c.b16 %v337, %v336
      %v399 = vpack.c.b16 %v339, %v338
      %v400 = vpack.c.b16 %v341, %v340
      %v401 = vpack.c.b16 %v343, %v342
      %v402 = vpack.c.b16 %v345, %v344
      %v403 = vpack.c.b16 %v347, %v346
      %v404 = vpack.c.b16 %v349, %v348
      %v405 = vpack.c.b16 %v351, %v350
      %v406 = vpack.c.b16 %v353, %v352
      %v407 = vpack.c.b16 %v355, %v354
      %v408 = vpack.c.b16 %v357, %v356
      %v409 = vpack.c.b16 %v359, %v358
      %v410 = vpack.c.b16 %v361, %v360
      %v411 = vpack.c.b16 %v363, %v362
      %v412 = vpack.c.b16 %v365, %v364
      %v413 = vpack.c.b16 %v367, %v366
      %v414 = vpack.c.b16 %v369, %v368
      %v415 = vpack.c.b16 %v371, %v370
      %v416 = vpack.c.b16 %v373, %v372
      %v417 = vpack.c.b16 %v375, %v374
      %v418 = vpack.c.b16 %v377, %v376
      %v419 = vpack.c.b16 %v379, %v378
      %v420 = vpack.c.b16 %v381, %v380
      %v421 = vpack.c.b16 %v383, %v382
      %v422 = vpack.c.b16 %v385, %v384
      %v423 = vpack.c.b16 %v387, %v386
      %v424 = vpack.c.b16 %v389, %v388
      %v425 = vpack.c.b16 %v391, %v390
      %v426 = vpack.c.b16 %v393, %v392
      %v427 = vpack.c.b16 %v395, %v394
      %v430 = vunpack.c.l.b16 %v266
      %v431 = vunpack.c.l.b16 %v267
      %v432 = vpack.c.b16 %v431, %v430
      %vm434 = vcmask 130048
      %v436 = vsel %vm434, %v396, 0
      %v439 = vsel %vm434, %v397, 0
      %v442 = vsel %vm434, %v398, 0
      %v445 = vsel %vm434, %v399, 0
      %v448 = vsel %vm434, %v400, 0
      %v451 = vsel %vm434, %v401, 0
      %v454 = vsel %vm434, %v402, 0
      %v457 = vsel %vm434, %v403, 0
      %v460 = vsel %vm434, %v404, 0
      %v463 = vsel %vm434, %v405, 0
      %v466 = vsel %vm434, %v406, 0
      %v469 = vsel %vm434, %v407, 0
      %v472 = vsel %vm434, %v408, 0
      %v475 = vsel %vm434, %v409, 0
      %v478 = vsel %vm434, %v410, 0
      %v481 = vsel %vm434, %v411, 0
      %v484 = vsel %vm434, %v412, 0
      %v487 = vsel %vm434, %v413, 0
      %v490 = vsel %vm434, %v414, 0
      %v493 = vsel %vm434, %v415, 0
      %v496 = vsel %vm434, %v416, 0
      %v499 = vsel %vm434, %v417, 0
      %v502 = vsel %vm434, %v418, 0
      %v505 = vsel %vm434, %v419, 0
      %v508 = vsel %vm434, %v420, 0
      %v511 = vsel %vm434, %v421, 0
      %v514 = vsel %vm434, %v422, 0
      %v517 = vsel %vm434, %v423, 0
      %v520 = vsel %vm434, %v424, 0
      %v523 = vsel %vm434, %v425, 0
      %v526 = vsel %vm434, %v426, 0
      %v529 = vsel %vm434, %v427, 0
      %531 = vmatprep.subr.bf16.mxu0 0
      %532 = vmatpush1.bf16.msra.mxu0 %v432
      %533 = vmatprep.subr.bf16.mxu0 0
      %534 = vmatpush1.bf16.msra.mxu0 0
      %535 = vmatprep.subr.bf16.mxu0 0
      %536 = vmatpush1.bf16.msra.mxu0 0
      %537 = vmatprep.subr.bf16.mxu0 0
      %538 = vmatpush1.bf16.msra.mxu0 0
      %539 = vmatprep.subr.bf16.mxu0 0
      %540 = vmatpush1.bf16.msra.mxu0 0
      %541 = vmatprep.subr.bf16.mxu0 0
      %542 = vmatpush1.bf16.msra.mxu0 0
      %543 = vmatprep.subr.bf16.mxu0 0
      %544 = vmatpush1.bf16.msra.mxu0 0
      %545 = vmatprep.subr.bf16.mxu0 0
      %546 = vmatpush1.bf16.msra.mxu0 0
      %547 = vmatprep.subr.bf16.mxu0 0
      %548 = vmatpush1.bf16.msra.mxu0 0
      %549 = vmatprep.subr.bf16.mxu0 0
      %550 = vmatpush1.bf16.msra.mxu0 0
      %551 = vmatprep.subr.bf16.mxu0 0
      %552 = vmatpush1.bf16.msra.mxu0 0
      %553 = vmatprep.subr.bf16.mxu0 0
      %554 = vmatpush1.bf16.msra.mxu0 0
      %555 = vmatprep.subr.bf16.mxu0 0
      %556 = vmatpush1.bf16.msra.mxu0 0
      %557 = vmatprep.subr.bf16.mxu0 0
      %558 = vmatpush1.bf16.msra.mxu0 0
      %559 = vmatprep.subr.bf16.mxu0 0
      %560 = vmatpush1.bf16.msra.mxu0 0
      %561 = vmatprep.subr.bf16.mxu0 0
      %562 = vmatpush1.bf16.msra.mxu0 0
      %563 = vmatprep.mubr.bf16.mxu0 0
      %564 = vmatmul.mubr.bf16.gmra.mrb[0].mxu0 %v436
      %v565 = vpop.f32.mrb[0].mxu0
      %v566 = vadd.f32 0.0, %v565
      %v567 = vpop.f32.mrb[0].mxu0
      %v568 = vpop.f32.mrb[0].mxu0
      %v569 = vadd.f32 0.0, %v568
      %v570 = vpop.f32.mrb[0].mxu0
      %571 = vmatprep.mubr.bf16.mxu0 0
      %572 = vmatmul.mubr.bf16.gmra.mrb[0].mxu0 %v439
      %v573 = vpop.f32.mrb[0].mxu0
      %v574 = vadd.f32 0.0, %v573
      %v575 = vpop.f32.mrb[0].mxu0
      %v576 = vpop.f32.mrb[0].mxu0
      %v577 = vadd.f32 0.0, %v576
      %v578 = vpop.f32.mrb[0].mxu0
      %579 = vmatprep.mubr.bf16.mxu0 0
      %580 = vmatmul.mubr.bf16.gmra.mrb[0].mxu0 %v442
      %v581 = vpop.f32.mrb[0].mxu0
      %v582 = vadd.f32 0.0, %v581
      %v583 = vpop.f32.mrb[0].mxu0
      %v584 = vpop.f32.mrb[0].mxu0
      %v585 = vadd.f32 0.0, %v584
      %v586 = vpop.f32.mrb[0].mxu0
      %587 = vmatprep.mubr.bf16.mxu0 0
      %588 = vmatmul.mubr.bf16.gmra.mrb[0].mxu0 %v445
      %v589 = vpop.f32.mrb[0].mxu0
      %v590 = vadd.f32 0.0, %v589
      %v591 = vpop.f32.mrb[0].mxu0
      %v592 = vpop.f32.mrb[0].mxu0
      %v593 = vadd.f32 0.0, %v592
      %v594 = vpop.f32.mrb[0].mxu0
      %595 = vmatprep.mubr.bf16.mxu0 0
      %596 = vmatmul.mubr.bf16.gmra.mrb[0].mxu0 %v448
      %v597 = vpop.f32.mrb[0].mxu0
      %v598 = vadd.f32 0.0, %v597
      %v599 = vpop.f32.mrb[0].mxu0
      %v600 = vpop.f32.mrb[0].mxu0
      %v601 = vadd.f32 0.0, %v600
      %v602 = vpop.f32.mrb[0].mxu0
      %603 = vmatprep.mubr.bf16.mxu0 0
      %604 = vmatmul.mubr.bf16.gmra.mrb[0].mxu0 %v451
      %v605 = vpop.f32.mrb[0].mxu0
      %v606 = vadd.f32 0.0, %v605
      %v607 = vpop.f32.mrb[0].mxu0
      %v608 = vpop.f32.mrb[0].mxu0
      %v609 = vadd.f32 0.0, %v608
      %v610 = vpop.f32.mrb[0].mxu0
      %611 = vmatprep.mubr.bf16.mxu0 0
      %612 = vmatmul.mubr.bf16.gmra.mrb[0].mxu0 %v454
      %v613 = vpop.f32.mrb[0].mxu0
      %v614 = vadd.f32 0.0, %v613
      %v615 = vpop.f32.mrb[0].mxu0
      %v616 = vpop.f32.mrb[0].mxu0
      %v617 = vadd.f32 0.0, %v616
      %v618 = vpop.f32.mrb[0].mxu0
      %619 = vmatprep.mubr.bf16.mxu0 0
      %620 = vmatmul.mubr.bf16.gmra.mrb[0].mxu0 %v457
      %v621 = vpop.f32.mrb[0].mxu0
      %v622 = vadd.f32 0.0, %v621
      %v623 = vpop.f32.mrb[0].mxu0
      %v624 = vpop.f32.mrb[0].mxu0
      %v625 = vadd.f32 0.0, %v624
      %v626 = vpop.f32.mrb[0].mxu0
      %627 = vmatprep.mubr.bf16.mxu0 0
      %628 = vmatmul.mubr.bf16.gmra.mrb[0].mxu0 %v460
      %v629 = vpop.f32.mrb[0].mxu0
      %v630 = vadd.f32 0.0, %v629
      %v631 = vpop.f32.mrb[0].mxu0
      %v632 = vpop.f32.mrb[0].mxu0
      %v633 = vadd.f32 0.0, %v632
      %v634 = vpop.f32.mrb[0].mxu0
      %635 = vmatprep.mubr.bf16.mxu0 0
      %636 = vmatmul.mubr.bf16.gmra.mrb[0].mxu0 %v463
      %v637 = vpop.f32.mrb[0].mxu0
      %v638 = vadd.f32 0.0, %v637
      %v639 = vpop.f32.mrb[0].mxu0
      %v640 = vpop.f32.mrb[0].mxu0
      %v641 = vadd.f32 0.0, %v640
      %v642 = vpop.f32.mrb[0].mxu0
      %643 = vmatprep.mubr.bf16.mxu0 0
      %644 = vmatmul.mubr.bf16.gmra.mrb[0].mxu0 %v466
      %v645 = vpop.f32.mrb[0].mxu0
      %v646 = vadd.f32 0.0, %v645
      %v647 = vpop.f32.mrb[0].mxu0
      %v648 = vpop.f32.mrb[0].mxu0
      %v649 = vadd.f32 0.0, %v648
      %v650 = vpop.f32.mrb[0].mxu0
      %651 = vmatprep.mubr.bf16.mxu0 0
      %652 = vmatmul.mubr.bf16.gmra.mrb[0].mxu0 %v469
      %v653 = vpop.f32.mrb[0].mxu0
      %v654 = vadd.f32 0.0, %v653
      %v655 = vpop.f32.mrb[0].mxu0
      %v656 = vpop.f32.mrb[0].mxu0
      %v657 = vadd.f32 0.0, %v656
      %v658 = vpop.f32.mrb[0].mxu0
      %659 = vmatprep.mubr.bf16.mxu0 0
      %660 = vmatmul.mubr.bf16.gmra.mrb[0].mxu0 %v472
      %v661 = vpop.f32.mrb[0].mxu0
      %v662 = vadd.f32 0.0, %v661
      %v663 = vpop.f32.mrb[0].mxu0
      %v664 = vpop.f32.mrb[0].mxu0
      %v665 = vadd.f32 0.0, %v664
      %v666 = vpop.f32.mrb[0].mxu0
      %667 = vmatprep.mubr.bf16.mxu0 0
      %668 = vmatmul.mubr.bf16.gmra.mrb[0].mxu0 %v475
      %v669 = vpop.f32.mrb[0].mxu0
      %v670 = vadd.f32 0.0, %v669
      %v671 = vpop.f32.mrb[0].mxu0
      %v672 = vpop.f32.mrb[0].mxu0
      %v673 = vadd.f32 0.0, %v672
      %v674 = vpop.f32.mrb[0].mxu0
      %675 = vmatprep.mubr.bf16.mxu0 0
      %676 = vmatmul.mubr.bf16.gmra.mrb[0].mxu0 %v478
      %v677 = vpop.f32.mrb[0].mxu0
      %v678 = vadd.f32 0.0, %v677
      %v679 = vpop.f32.mrb[0].mxu0
      %v680 = vpop.f32.mrb[0].mxu0
      %v681 = vadd.f32 0.0, %v680
      %v682 = vpop.f32.mrb[0].mxu0
      %683 = vmatprep.mubr.bf16.mxu0 0
      %684 = vmatmul.mubr.bf16.gmra.mrb[0].mxu0 %v481
      %v685 = vpop.f32.mrb[0].mxu0
      %v686 = vadd.f32 0.0, %v685
      %v687 = vpop.f32.mrb[0].mxu0
      %v688 = vpop.f32.mrb[0].mxu0
      %v689 = vadd.f32 0.0, %v688
      %v690 = vpop.f32.mrb[0].mxu0
      %691 = vmatprep.mubr.bf16.mxu0 0
      %692 = vmatmul.mubr.bf16.gmra.mrb[0].mxu0 %v484
      %v693 = vpop.f32.mrb[0].mxu0
      %v694 = vadd.f32 0.0, %v693
      %v695 = vpop.f32.mrb[0].mxu0
      %v696 = vpop.f32.mrb[0].mxu0
      %v697 = vadd.f32 0.0, %v696
      %v698 = vpop.f32.mrb[0].mxu0
      %699 = vmatprep.mubr.bf16.mxu0 0
      %700 = vmatmul.mubr.bf16.gmra.mrb[0].mxu0 %v487
      %v701 = vpop.f32.mrb[0].mxu0
      %v702 = vadd.f32 0.0, %v701
      %v703 = vpop.f32.mrb[0].mxu0
      %v704 = vpop.f32.mrb[0].mxu0
      %v705 = vadd.f32 0.0, %v704
      %v706 = vpop.f32.mrb[0].mxu0
      %707 = vmatprep.mubr.bf16.mxu0 0
      %708 = vmatmul.mubr.bf16.gmra.mrb[0].mxu0 %v490
      %v709 = vpop.f32.mrb[0].mxu0
      %v710 = vadd.f32 0.0, %v709
      %v711 = vpop.f32.mrb[0].mxu0
      %v712 = vpop.f32.mrb[0].mxu0
      %v713 = vadd.f32 0.0, %v712
      %v714 = vpop.f32.mrb[0].mxu0
      %715 = vmatprep.mubr.bf16.mxu0 0
      %716 = vmatmul.mubr.bf16.gmra.mrb[0].mxu0 %v493
      %v717 = vpop.f32.mrb[0].mxu0
      %v718 = vadd.f32 0.0, %v717
      %v719 = vpop.f32.mrb[0].mxu0
      %v720 = vpop.f32.mrb[0].mxu0
      %v721 = vadd.f32 0.0, %v720
      %v722 = vpop.f32.mrb[0].mxu0
      %723 = vmatprep.mubr.bf16.mxu0 0
      %724 = vmatmul.mubr.bf16.gmra.mrb[0].mxu0 %v496
      %v725 = vpop.f32.mrb[0].mxu0
      %v726 = vadd.f32 0.0, %v725
      %v727 = vpop.f32.mrb[0].mxu0
      %v728 = vpop.f32.mrb[0].mxu0
      %v729 = vadd.f32 0.0, %v728
      %v730 = vpop.f32.mrb[0].mxu0
      %731 = vmatprep.mubr.bf16.mxu0 0
      %732 = vmatmul.mubr.bf16.gmra.mrb[0].mxu0 %v499
      %v733 = vpop.f32.mrb[0].mxu0
      %v734 = vadd.f32 0.0, %v733
      %v735 = vpop.f32.mrb[0].mxu0
      %v736 = vpop.f32.mrb[0].mxu0
      %v737 = vadd.f32 0.0, %v736
      %v738 = vpop.f32.mrb[0].mxu0
      %739 = vmatprep.mubr.bf16.mxu0 0
      %740 = vmatmul.mubr.bf16.gmra.mrb[0].mxu0 %v502
      %v741 = vpop.f32.mrb[0].mxu0
      %v742 = vadd.f32 0.0, %v741
      %v743 = vpop.f32.mrb[0].mxu0
      %v744 = vpop.f32.mrb[0].mxu0
      %v745 = vadd.f32 0.0, %v744
      %v746 = vpop.f32.mrb[0].mxu0
      %747 = vmatprep.mubr.bf16.mxu0 0
      %748 = vmatmul.mubr.bf16.gmra.mrb[0].mxu0 %v505
      %v749 = vpop.f32.mrb[0].mxu0
      %v750 = vadd.f32 0.0, %v749
      %v751 = vpop.f32.mrb[0].mxu0
      %v752 = vpop.f32.mrb[0].mxu0
      %v753 = vadd.f32 0.0, %v752
      %v754 = vpop.f32.mrb[0].mxu0
      %755 = vmatprep.mubr.bf16.mxu0 0
      %756 = vmatmul.mubr.bf16.gmra.mrb[0].mxu0 %v508
      %v757 = vpop.f32.mrb[0].mxu0
      %v758 = vadd.f32 0.0, %v757
      %v759 = vpop.f32.mrb[0].mxu0
      %v760 = vpop.f32.mrb[0].mxu0
      %v761 = vadd.f32 0.0, %v760
      %v762 = vpop.f32.mrb[0].mxu0
      %763 = vmatprep.mubr.bf16.mxu0 0
      %764 = vmatmul.mubr.bf16.gmra.mrb[0].mxu0 %v511
      %v765 = vpop.f32.mrb[0].mxu0
      %v766 = vadd.f32 0.0, %v765
      %v767 = vpop.f32.mrb[0].mxu0
      %v768 = vpop.f32.mrb[0].mxu0
      %v769 = vadd.f32 0.0, %v768
      %v770 = vpop.f32.mrb[0].mxu0
      %771 = vmatprep.mubr.bf16.mxu0 0
      %772 = vmatmul.mubr.bf16.gmra.mrb[0].mxu0 %v514
      %v773 = vpop.f32.mrb[0].mxu0
      %v774 = vadd.f32 0.0, %v773
      %v775 = vpop.f32.mrb[0].mxu0
      %v776 = vpop.f32.mrb[0].mxu0
      %v777 = vadd.f32 0.0, %v776
      %v778 = vpop.f32.mrb[0].mxu0
      %779 = vmatprep.mubr.bf16.mxu0 0
      %780 = vmatmul.mubr.bf16.gmra.mrb[0].mxu0 %v517
      %v781 = vpop.f32.mrb[0].mxu0
      %v782 = vadd.f32 0.0, %v781
      %v783 = vpop.f32.mrb[0].mxu0
      %v784 = vpop.f32.mrb[0].mxu0
      %v785 = vadd.f32 0.0, %v784
      %v786 = vpop.f32.mrb[0].mxu0
      %787 = vmatprep.mubr.bf16.mxu0 0
      %788 = vmatmul.mubr.bf16.gmra.mrb[0].mxu0 %v520
      %v789 = vpop.f32.mrb[0].mxu0
      %v790 = vadd.f32 0.0, %v789
      %v791 = vpop.f32.mrb[0].mxu0
      %v792 = vpop.f32.mrb[0].mxu0
      %v793 = vadd.f32 0.0, %v792
      %v794 = vpop.f32.mrb[0].mxu0
      %795 = vmatprep.mubr.bf16.mxu0 0
      %796 = vmatmul.mubr.bf16.gmra.mrb[0].mxu0 %v523
      %v797 = vpop.f32.mrb[0].mxu0
      %v798 = vadd.f32 0.0, %v797
      %v799 = vpop.f32.mrb[0].mxu0
      %v800 = vpop.f32.mrb[0].mxu0
      %v801 = vadd.f32 0.0, %v800
      %v802 = vpop.f32.mrb[0].mxu0
      %803 = vmatprep.mubr.bf16.mxu0 0
      %804 = vmatmul.mubr.bf16.gmra.mrb[0].mxu0 %v526
      %v805 = vpop.f32.mrb[0].mxu0
      %v806 = vadd.f32 0.0, %v805
      %v807 = vpop.f32.mrb[0].mxu0
      %v808 = vpop.f32.mrb[0].mxu0
      %v809 = vadd.f32 0.0, %v808
      %v810 = vpop.f32.mrb[0].mxu0
      %811 = vmatprep.mubr.bf16.mxu0 0
      %812 = vmatmul.mubr.bf16.gmra.mrb[0].mxu0 %v529
      %v813 = vpop.f32.mrb[0].mxu0
      %v814 = vadd.f32 0.0, %v813
      %v815 = vpop.f32.mrb[0].mxu0
      %v816 = vpop.f32.mrb[0].mxu0
      %v817 = vadd.f32 0.0, %v816
      %v818 = vpop.f32.mrb[0].mxu0
      %819 = vdwg.mxu0
      %v820 = vld [vmem:[%s2] sm:$0x1]
      %v822 = vlaneseq
      %v823 = vshrl.u32 %v822, 7
      %v824 = vsub.s32 0, %v823
      %v825 = vrot.slane %v820, %v824
      %v827 = vmul.f32 %v566, %v825
      %v828 = vmul.f32 %v569, %v825
      %v829 = vmul.f32 %v574, %v825
      %v830 = vmul.f32 %v577, %v825
      %v831 = vmul.f32 %v582, %v825
      %v832 = vmul.f32 %v585, %v825
      %v833 = vmul.f32 %v590, %v825
      %v834 = vmul.f32 %v593, %v825
      %v835 = vmul.f32 %v598, %v825
      %v836 = vmul.f32 %v601, %v825
      %v837 = vmul.f32 %v606, %v825
      %v838 = vmul.f32 %v609, %v825
      %v839 = vmul.f32 %v614, %v825
      %v840 = vmul.f32 %v617, %v825
      %v841 = vmul.f32 %v622, %v825
      %v842 = vmul.f32 %v625, %v825
      %v843 = vmul.f32 %v630, %v825
      %v844 = vmul.f32 %v633, %v825
      %v845 = vmul.f32 %v638, %v825
      %v846 = vmul.f32 %v641, %v825
      %v847 = vmul.f32 %v646, %v825
      %v848 = vmul.f32 %v649, %v825
      %v849 = vmul.f32 %v654, %v825
      %v850 = vmul.f32 %v657, %v825
      %v851 = vmul.f32 %v662, %v825
      %v852 = vmul.f32 %v665, %v825
      %v853 = vmul.f32 %v670, %v825
      %v854 = vmul.f32 %v673, %v825
      %v855 = vmul.f32 %v678, %v825
      %v856 = vmul.f32 %v681, %v825
      %v857 = vmul.f32 %v686, %v825
      %v858 = vmul.f32 %v689, %v825
      %v859 = vmul.f32 %v694, %v825
      %v860 = vmul.f32 %v697, %v825
      %v861 = vmul.f32 %v702, %v825
      %v862 = vmul.f32 %v705, %v825
      %v863 = vmul.f32 %v710, %v825
      %v864 = vmul.f32 %v713, %v825
      %v865 = vmul.f32 %v718, %v825
      %v866 = vmul.f32 %v721, %v825
      %v867 = vmul.f32 %v726, %v825
      %v868 = vmul.f32 %v729, %v825
      %v869 = vmul.f32 %v734, %v825
      %v870 = vmul.f32 %v737, %v825
      %v871 = vmul.f32 %v742, %v825
      %v872 = vmul.f32 %v745, %v825
      %v873 = vmul.f32 %v750, %v825
      %v874 = vmul.f32 %v753, %v825
      %v875 = vmul.f32 %v758, %v825
      %v876 = vmul.f32 %v761, %v825
      %v877 = vmul.f32 %v766, %v825
      %v878 = vmul.f32 %v769, %v825
      %v879 = vmul.f32 %v774, %v825
      %v880 = vmul.f32 %v777, %v825
      %v881 = vmul.f32 %v782, %v825
      %v882 = vmul.f32 %v785, %v825
      %v883 = vmul.f32 %v790, %v825
      %v884 = vmul.f32 %v793, %v825
      %v885 = vmul.f32 %v798, %v825
      %v886 = vmul.f32 %v801, %v825
      %v887 = vmul.f32 %v806, %v825
      %v888 = vmul.f32 %v809, %v825
      %v889 = vmul.f32 %v814, %v825
      %v890 = vmul.f32 %v817, %v825
      %v891 = vld [vmem:[%s3] sm:$0x1]
      %v893 = vlaneseq
      %v894 = vshrl.u32 %v893, 7
      %v895 = vsub.s32 0, %v894
      %v896 = vrot.slane %v891, %v895
      %v898 = vadd.f32 %v827, %v896
      %v899 = vadd.f32 %v828, %v896
      %v900 = vadd.f32 %v829, %v896
      %v901 = vadd.f32 %v830, %v896
      %v902 = vadd.f32 %v831, %v896
      %v903 = vadd.f32 %v832, %v896
      %v904 = vadd.f32 %v833, %v896
      %v905 = vadd.f32 %v834, %v896
      %v906 = vadd.f32 %v835, %v896
      %v907 = vadd.f32 %v836, %v896
      %v908 = vadd.f32 %v837, %v896
      %v909 = vadd.f32 %v838, %v896
      %v910 = vadd.f32 %v839, %v896
      %v911 = vadd.f32 %v840, %v896
      %v912 = vadd.f32 %v841, %v896
      %v913 = vadd.f32 %v842, %v896
      %v914 = vadd.f32 %v843, %v896
      %v915 = vadd.f32 %v844, %v896
      %v916 = vadd.f32 %v845, %v896
      %v917 = vadd.f32 %v846, %v896
      %v918 = vadd.f32 %v847, %v896
      %v919 = vadd.f32 %v848, %v896
      %v920 = vadd.f32 %v849, %v896
      %v921 = vadd.f32 %v850, %v896
      %v922 = vadd.f32 %v851, %v896
      %v923 = vadd.f32 %v852, %v896
      %v924 = vadd.f32 %v853, %v896
      %v925 = vadd.f32 %v854, %v896
      %v926 = vadd.f32 %v855, %v896
      %v927 = vadd.f32 %v856, %v896
      %v928 = vadd.f32 %v857, %v896
      %v929 = vadd.f32 %v858, %v896
      %v930 = vadd.f32 %v859, %v896
      %v931 = vadd.f32 %v860, %v896
      %v932 = vadd.f32 %v861, %v896
      %v933 = vadd.f32 %v862, %v896
      %v934 = vadd.f32 %v863, %v896
      %v935 = vadd.f32 %v864, %v896
      %v936 = vadd.f32 %v865, %v896
      %v937 = vadd.f32 %v866, %v896
      %v938 = vadd.f32 %v867, %v896
      %v939 = vadd.f32 %v868, %v896
      %v940 = vadd.f32 %v869, %v896
      %v941 = vadd.f32 %v870, %v896
      %v942 = vadd.f32 %v871, %v896
      %v943 = vadd.f32 %v872, %v896
      %v944 = vadd.f32 %v873, %v896
      %v945 = vadd.f32 %v874, %v896
      %v946 = vadd.f32 %v875, %v896
      %v947 = vadd.f32 %v876, %v896
      %v948 = vadd.f32 %v877, %v896
      %v949 = vadd.f32 %v878, %v896
      %v950 = vadd.f32 %v879, %v896
      %v951 = vadd.f32 %v880, %v896
      %v952 = vadd.f32 %v881, %v896
      %v953 = vadd.f32 %v882, %v896
      %v954 = vadd.f32 %v883, %v896
      %v955 = vadd.f32 %v884, %v896
      %v956 = vadd.f32 %v885, %v896
      %v957 = vadd.f32 %v886, %v896
      %v958 = vadd.f32 %v887, %v896
      %v959 = vadd.f32 %v888, %v896
      %v960 = vadd.f32 %v889, %v896
      %v961 = vadd.f32 %v890, %v896
      %v962 = vmax.f32 %v898, 0.0
      %v963 = vmax.f32 %v899, 0.0
      %v964 = vmax.f32 %v900, 0.0
      %v965 = vmax.f32 %v901, 0.0
      %v966 = vmax.f32 %v902, 0.0
      %v967 = vmax.f32 %v903, 0.0
      %v968 = vmax.f32 %v904, 0.0
      %v969 = vmax.f32 %v905, 0.0
      %v970 = vmax.f32 %v906, 0.0
      %v971 = vmax.f32 %v907, 0.0
      %v972 = vmax.f32 %v908, 0.0
      %v973 = vmax.f32 %v909, 0.0
      %v974 = vmax.f32 %v910, 0.0
      %v975 = vmax.f32 %v911, 0.0
      %v976 = vmax.f32 %v912, 0.0
      %v977 = vmax.f32 %v913, 0.0
      %v978 = vmax.f32 %v914, 0.0
      %v979 = vmax.f32 %v915, 0.0
      %v980 = vmax.f32 %v916, 0.0
      %v981 = vmax.f32 %v917, 0.0
      %v982 = vmax.f32 %v918, 0.0
      %v983 = vmax.f32 %v919, 0.0
      %v984 = vmax.f32 %v920, 0.0
      %v985 = vmax.f32 %v921, 0.0
      %v986 = vmax.f32 %v922, 0.0
      %v987 = vmax.f32 %v923, 0.0
      %v988 = vmax.f32 %v924, 0.0
      %v989 = vmax.f32 %v925, 0.0
      %v990 = vmax.f32 %v926, 0.0
      %v991 = vmax.f32 %v927, 0.0
      %v992 = vmax.f32 %v928, 0.0
      %v993 = vmax.f32 %v929, 0.0
      %v994 = vmax.f32 %v930, 0.0
      %v995 = vmax.f32 %v931, 0.0
      %v996 = vmax.f32 %v932, 0.0
      %v997 = vmax.f32 %v933, 0.0
      %v998 = vmax.f32 %v934, 0.0
      %v999 = vmax.f32 %v935, 0.0
      %v1000 = vmax.f32 %v936, 0.0
      %v1001 = vmax.f32 %v937, 0.0
      %v1002 = vmax.f32 %v938, 0.0
      %v1003 = vmax.f32 %v939, 0.0
      %v1004 = vmax.f32 %v940, 0.0
      %v1005 = vmax.f32 %v941, 0.0
      %v1006 = vmax.f32 %v942, 0.0
      %v1007 = vmax.f32 %v943, 0.0
      %v1008 = vmax.f32 %v944, 0.0
      %v1009 = vmax.f32 %v945, 0.0
      %v1010 = vmax.f32 %v946, 0.0
      %v1011 = vmax.f32 %v947, 0.0
      %v1012 = vmax.f32 %v948, 0.0
      %v1013 = vmax.f32 %v949, 0.0
      %v1014 = vmax.f32 %v950, 0.0
      %v1015 = vmax.f32 %v951, 0.0
      %v1016 = vmax.f32 %v952, 0.0
      %v1017 = vmax.f32 %v953, 0.0
      %v1018 = vmax.f32 %v954, 0.0
      %v1019 = vmax.f32 %v955, 0.0
      %v1020 = vmax.f32 %v956, 0.0
      %v1021 = vmax.f32 %v957, 0.0
      %v1022 = vmax.f32 %v958, 0.0
      %v1023 = vmax.f32 %v959, 0.0
      %v1024 = vmax.f32 %v960, 0.0
      %v1025 = vmax.f32 %v961, 0.0
      %v1026 = vpack.c.bf16 %v963, %v962
      %v1027 = vpack.c.bf16 %v965, %v964
      %v1028 = vpack.c.bf16 %v967, %v966
      %v1029 = vpack.c.bf16 %v969, %v968
      %v1030 = vpack.c.bf16 %v971, %v970
      %v1031 = vpack.c.bf16 %v973, %v972
      %v1032 = vpack.c.bf16 %v975, %v974
      %v1033 = vpack.c.bf16 %v977, %v976
      %v1034 = vpack.c.bf16 %v979, %v978
      %v1035 = vpack.c.bf16 %v981, %v980
      %v1036 = vpack.c.bf16 %v983, %v982
      %v1037 = vpack.c.bf16 %v985, %v984
      %v1038 = vpack.c.bf16 %v987, %v986
      %v1039 = vpack.c.bf16 %v989, %v988
      %v1040 = vpack.c.bf16 %v991, %v990
      %v1041 = vpack.c.bf16 %v993, %v992
      %v1042 = vpack.c.bf16 %v995, %v994
      %v1043 = vpack.c.bf16 %v997, %v996
      %v1044 = vpack.c.bf16 %v999, %v998
      %v1045 = vpack.c.bf16 %v1001, %v1000
      %v1046 = vpack.c.bf16 %v1003, %v1002
      %v1047 = vpack.c.bf16 %v1005, %v1004
      %v1048 = vpack.c.bf16 %v1007, %v1006
      %v1049 = vpack.c.bf16 %v1009, %v1008
      %v1050 = vpack.c.bf16 %v1011, %v1010
      %v1051 = vpack.c.bf16 %v1013, %v1012
      %v1052 = vpack.c.bf16 %v1015, %v1014
      %v1053 = vpack.c.bf16 %v1017, %v1016
      %v1054 = vpack.c.bf16 %v1019, %v1018
      %v1055 = vpack.c.bf16 %v1021, %v1020
      %v1056 = vpack.c.bf16 %v1023, %v1022
      %v1057 = vpack.c.bf16 %v1025, %v1024
      %v1090 = vunpack.c.l.b16 %v1026
      %v1091 = vunpack.c.h.b16 %v1026
      %v1092 = vunpack.c.l.b16 %v1027
      %v1093 = vunpack.c.h.b16 %v1027
      %v1094 = vunpack.c.l.b16 %v1028
      %v1095 = vunpack.c.h.b16 %v1028
      %v1096 = vunpack.c.l.b16 %v1029
      %v1097 = vunpack.c.h.b16 %v1029
      %v1098 = vunpack.c.l.b16 %v1030
      %v1099 = vunpack.c.h.b16 %v1030
      %v1100 = vunpack.c.l.b16 %v1031
      %v1101 = vunpack.c.h.b16 %v1031
      %v1102 = vunpack.c.l.b16 %v1032
      %v1103 = vunpack.c.h.b16 %v1032
      %v1104 = vunpack.c.l.b16 %v1033
      %v1105 = vunpack.c.h.b16 %v1033
      %v1106 = vunpack.c.l.b16 %v1034
      %v1107 = vunpack.c.h.b16 %v1034
      %v1108 = vunpack.c.l.b16 %v1035
      %v1109 = vunpack.c.h.b16 %v1035
      %v1110 = vunpack.c.l.b16 %v1036
      %v1111 = vunpack.c.h.b16 %v1036
      %v1112 = vunpack.c.l.b16 %v1037
      %v1113 = vunpack.c.h.b16 %v1037
      %v1114 = vunpack.c.l.b16 %v1038
      %v1115 = vunpack.c.h.b16 %v1038
      %v1116 = vunpack.c.l.b16 %v1039
      %v1117 = vunpack.c.h.b16 %v1039
      %v1118 = vunpack.c.l.b16 %v1040
      %v1119 = vunpack.c.h.b16 %v1040
      %v1120 = vunpack.c.l.b16 %v1041
      %v1121 = vunpack.c.h.b16 %v1041
      %v1122 = vunpack.c.l.b16 %v1042
      %v1123 = vunpack.c.h.b16 %v1042
      %v1124 = vunpack.c.l.b16 %v1043
      %v1125 = vunpack.c.h.b16 %v1043
      %v1126 = vunpack.c.l.b16 %v1044
      %v1127 = vunpack.c.h.b16 %v1044
      %v1128 = vunpack.c.l.b16 %v1045
      %v1129 = vunpack.c.h.b16 %v1045
      %v1130 = vunpack.c.l.b16 %v1046
      %v1131 = vunpack.c.h.b16 %v1046
      %v1132 = vunpack.c.l.b16 %v1047
      %v1133 = vunpack.c.h.b16 %v1047
      %v1134 = vunpack.c.l.b16 %v1048
      %v1135 = vunpack.c.h.b16 %v1048
      %v1136 = vunpack.c.l.b16 %v1049
      %v1137 = vunpack.c.h.b16 %v1049
      %v1138 = vunpack.c.l.b16 %v1050
      %v1139 = vunpack.c.h.b16 %v1050
      %v1140 = vunpack.c.l.b16 %v1051
      %v1141 = vunpack.c.h.b16 %v1051
      %v1142 = vunpack.c.l.b16 %v1052
      %v1143 = vunpack.c.h.b16 %v1052
      %v1144 = vunpack.c.l.b16 %v1053
      %v1145 = vunpack.c.h.b16 %v1053
      %v1146 = vunpack.c.l.b16 %v1054
      %v1147 = vunpack.c.h.b16 %v1054
      %v1148 = vunpack.c.l.b16 %v1055
      %v1149 = vunpack.c.h.b16 %v1055
      %v1150 = vunpack.c.l.b16 %v1056
      %v1151 = vunpack.c.h.b16 %v1056
      %v1152 = vunpack.c.l.b16 %v1057
      %v1153 = vunpack.c.h.b16 %v1057
      %v1154 = vpack.c.b16 %v1090, %v1090
      %v1155 = vpack.c.b16 %v1091, %v1091
      %v1156 = vpack.c.b16 %v1092, %v1092
      %v1157 = vpack.c.b16 %v1093, %v1093
      %v1158 = vpack.c.b16 %v1094, %v1094
      %v1159 = vpack.c.b16 %v1095, %v1095
      %v1160 = vpack.c.b16 %v1096, %v1096
      %v1161 = vpack.c.b16 %v1097, %v1097
      %v1162 = vpack.c.b16 %v1098, %v1098
      %v1163 = vpack.c.b16 %v1099, %v1099
      %v1164 = vpack.c.b16 %v1100, %v1100
      %v1165 = vpack.c.b16 %v1101, %v1101
      %v1166 = vpack.c.b16 %v1102, %v1102
      %v1167 = vpack.c.b16 %v1103, %v1103
      %v1168 = vpack.c.b16 %v1104, %v1104
      %v1169 = vpack.c.b16 %v1105, %v1105
      %v1170 = vpack.c.b16 %v1106, %v1106
      %v1171 = vpack.c.b16 %v1107, %v1107
      %v1172 = vpack.c.b16 %v1108, %v1108
      %v1173 = vpack.c.b16 %v1109, %v1109
      %v1174 = vpack.c.b16 %v1110, %v1110
      %v1175 = vpack.c.b16 %v1111, %v1111
      %v1176 = vpack.c.b16 %v1112, %v1112
      %v1177 = vpack.c.b16 %v1113, %v1113
      %v1178 = vpack.c.b16 %v1114, %v1114
      %v1179 = vpack.c.b16 %v1115, %v1115
      %v1180 = vpack.c.b16 %v1116, %v1116
      %v1181 = vpack.c.b16 %v1117, %v1117
      %v1182 = vpack.c.b16 %v1118, %v1118
      %v1183 = vpack.c.b16 %v1119, %v1119
      %v1184 = vpack.c.b16 %v1120, %v1120
      %v1185 = vpack.c.b16 %v1121, %v1121
      %v1186 = vpack.c.b16 %v1122, %v1122
      %v1187 = vpack.c.b16 %v1123, %v1123
      %v1188 = vpack.c.b16 %v1124, %v1124
      %v1189 = vpack.c.b16 %v1125, %v1125
      %v1190 = vpack.c.b16 %v1126, %v1126
      %v1191 = vpack.c.b16 %v1127, %v1127
      %v1192 = vpack.c.b16 %v1128, %v1128
      %v1193 = vpack.c.b16 %v1129, %v1129
      %v1194 = vpack.c.b16 %v1130, %v1130
      %v1195 = vpack.c.b16 %v1131, %v1131
      %v1196 = vpack.c.b16 %v1132, %v1132
      %v1197 = vpack.c.b16 %v1133, %v1133
      %v1198 = vpack.c.b16 %v1134, %v1134
      %v1199 = vpack.c.b16 %v1135, %v1135
      %v1200 = vpack.c.b16 %v1136, %v1136
      %v1201 = vpack.c.b16 %v1137, %v1137
      %v1202 = vpack.c.b16 %v1138, %v1138
      %v1203 = vpack.c.b16 %v1139, %v1139
      %v1204 = vpack.c.b16 %v1140, %v1140
      %v1205 = vpack.c.b16 %v1141, %v1141
      %v1206 = vpack.c.b16 %v1142, %v1142
      %v1207 = vpack.c.b16 %v1143, %v1143
      %v1208 = vpack.c.b16 %v1144, %v1144
      %v1209 = vpack.c.b16 %v1145, %v1145
      %v1210 = vpack.c.b16 %v1146, %v1146
      %v1211 = vpack.c.b16 %v1147, %v1147
      %v1212 = vpack.c.b16 %v1148, %v1148
      %v1213 = vpack.c.b16 %v1149, %v1149
      %v1214 = vpack.c.b16 %v1150, %v1150
      %v1215 = vpack.c.b16 %v1151, %v1151
      %v1216 = vpack.c.b16 %v1152, %v1152
      %v1217 = vpack.c.b16 %v1153, %v1153
      %vm1282 = vcmask 257024
      %1283 = vst.msk [vmem:[%s199] sm:$0xf] %vm1282, %v1154
      %1284 = vst.msk [vmem:[%s199 + $0x4] sm:$0xf] %vm1282, %v1155
      %1285 = vst.msk [vmem:[%s199 + $0x8] sm:$0xf] %vm1282, %v1156
      %1286 = vst.msk [vmem:[%s199 + $0xc] sm:$0xf] %vm1282, %v1157
      %1287 = vst.msk [vmem:[%s199 + $0x10] sm:$0xf] %vm1282, %v1158
      %1288 = vst.msk [vmem:[%s199 + $0x14] sm:$0xf] %vm1282, %v1159
      %1289 = vst.msk [vmem:[%s199 + $0x18] sm:$0xf] %vm1282, %v1160
      %1290 = vst.msk [vmem:[%s199 + $0x1c] sm:$0xf] %vm1282, %v1161
      %1291 = vst.msk [vmem:[%s199 + $0x20] sm:$0xf] %vm1282, %v1162
      %1292 = vst.msk [vmem:[%s199 + $0x24] sm:$0xf] %vm1282, %v1163
      %1293 = vst.msk [vmem:[%s199 + $0x28] sm:$0xf] %vm1282, %v1164
      %1294 = vst.msk [vmem:[%s199 + $0x2c] sm:$0xf] %vm1282, %v1165
      %1295 = vst.msk [vmem:[%s199 + $0x30] sm:$0xf] %vm1282, %v1166
      %1296 = vst.msk [vmem:[%s199 + $0x34] sm:$0xf] %vm1282, %v1167
      %1297 = vst.msk [vmem:[%s199 + $0x38] sm:$0xf] %vm1282, %v1168
      %1298 = vst.msk [vmem:[%s199 + $0x3c] sm:$0xf] %vm1282, %v1169
      %1299 = vst.msk [vmem:[%s199 + $0x40] sm:$0xf] %vm1282, %v1170
      %1300 = vst.msk [vmem:[%s199 + $0x44] sm:$0xf] %vm1282, %v1171
      %1301 = vst.msk [vmem:[%s199 + $0x48] sm:$0xf] %vm1282, %v1172
      %1302 = vst.msk [vmem:[%s199 + $0x4c] sm:$0xf] %vm1282, %v1173
      %1303 = vst.msk [vmem:[%s199 + $0x50] sm:$0xf] %vm1282, %v1174
      %1304 = vst.msk [vmem:[%s199 + $0x54] sm:$0xf] %vm1282, %v1175
      %1305 = vst.msk [vmem:[%s199 + $0x58] sm:$0xf] %vm1282, %v1176
      %1306 = vst.msk [vmem:[%s199 + $0x5c] sm:$0xf] %vm1282, %v1177
      %1307 = vst.msk [vmem:[%s199 + $0x60] sm:$0xf] %vm1282, %v1178
      %1308 = vst.msk [vmem:[%s199 + $0x64] sm:$0xf] %vm1282, %v1179
      %1309 = vst.msk [vmem:[%s199 + $0x68] sm:$0xf] %vm1282, %v1180
      %1310 = vst.msk [vmem:[%s199 + $0x6c] sm:$0xf] %vm1282, %v1181
      %1311 = vst.msk [vmem:[%s199 + $0x70] sm:$0xf] %vm1282, %v1182
      %1312 = vst.msk [vmem:[%s199 + $0x74] sm:$0xf] %vm1282, %v1183
      %1313 = vst.msk [vmem:[%s199 + $0x78] sm:$0xf] %vm1282, %v1184
      %1314 = vst.msk [vmem:[%s199 + $0x7c] sm:$0xf] %vm1282, %v1185
      %1315 = vst.msk [vmem:[%s199 + $0x80] sm:$0xf] %vm1282, %v1186
      %1316 = vst.msk [vmem:[%s199 + $0x84] sm:$0xf] %vm1282, %v1187
      %1317 = vst.msk [vmem:[%s199 + $0x88] sm:$0xf] %vm1282, %v1188
      %1318 = vst.msk [vmem:[%s199 + $0x8c] sm:$0xf] %vm1282, %v1189
      %1319 = vst.msk [vmem:[%s199 + $0x90] sm:$0xf] %vm1282, %v1190
      %1320 = vst.msk [vmem:[%s199 + $0x94] sm:$0xf] %vm1282, %v1191
      %1321 = vst.msk [vmem:[%s199 + $0x98] sm:$0xf] %vm1282, %v1192
      %1322 = vst.msk [vmem:[%s199 + $0x9c] sm:$0xf] %vm1282, %v1193
      %1323 = vst.msk [vmem:[%s199 + $0xa0] sm:$0xf] %vm1282, %v1194
      %1324 = vst.msk [vmem:[%s199 + $0xa4] sm:$0xf] %vm1282, %v1195
      %1325 = vst.msk [vmem:[%s199 + $0xa8] sm:$0xf] %vm1282, %v1196
      %1326 = vst.msk [vmem:[%s199 + $0xac] sm:$0xf] %vm1282, %v1197
      %1327 = vst.msk [vmem:[%s199 + $0xb0] sm:$0xf] %vm1282, %v1198
      %1328 = vst.msk [vmem:[%s199 + $0xb4] sm:$0xf] %vm1282, %v1199
      %1329 = vst.msk [vmem:[%s199 + $0xb8] sm:$0xf] %vm1282, %v1200
      %1330 = vst.msk [vmem:[%s199 + $0xbc] sm:$0xf] %vm1282, %v1201
      %1331 = vst.msk [vmem:[%s199 + $0xc0] sm:$0xf] %vm1282, %v1202
      %1332 = vst.msk [vmem:[%s199 + $0xc4] sm:$0xf] %vm1282, %v1203
      %1333 = vst.msk [vmem:[%s199 + $0xc8] sm:$0xf] %vm1282, %v1204
      %1334 = vst.msk [vmem:[%s199 + $0xcc] sm:$0xf] %vm1282, %v1205
      %1335 = vst.msk [vmem:[%s199 + $0xd0] sm:$0xf] %vm1282, %v1206
      %1336 = vst.msk [vmem:[%s199 + $0xd4] sm:$0xf] %vm1282, %v1207
      %1337 = vst.msk [vmem:[%s199 + $0xd8] sm:$0xf] %vm1282, %v1208
      %1338 = vst.msk [vmem:[%s199 + $0xdc] sm:$0xf] %vm1282, %v1209
      %1339 = vst.msk [vmem:[%s199 + $0xe0] sm:$0xf] %vm1282, %v1210
      %1340 = vst.msk [vmem:[%s199 + $0xe4] sm:$0xf] %vm1282, %v1211
      %1341 = vst.msk [vmem:[%s199 + $0xe8] sm:$0xf] %vm1282, %v1212
      %1342 = vst.msk [vmem:[%s199 + $0xec] sm:$0xf] %vm1282, %v1213
      %1343 = vst.msk [vmem:[%s199 + $0xf0] sm:$0xf] %vm1282, %v1214
      %1344 = vst.msk [vmem:[%s199 + $0xf4] sm:$0xf] %vm1282, %v1215
      %1345 = vst.msk [vmem:[%s199 + $0xf8] sm:$0xf] %vm1282, %v1216
      %1346 = vst.msk [vmem:[%s199 + $0xfc] sm:$0xf] %vm1282, %v1217
      %s1347 = smul.u32 64, %s15
      %p1348 = scmp.lt.s32.totalorder %s1347, 127
      %s1349 = scalar_select %p1348, %s1347, 127
      %s1350 = smul.addr %s1349, 4
      %s1351 = scalar_lea.vmem %s4, %s1350
      // Predicated region
      $region37: #{bottleneck_forward.2} parent=35 // pred_check
        %p1352 = pneg %p122
      $region38: #{bottleneck_forward.2} parent=35 // pred_check_branch
        %1354 = sbr.rel (%p1352) target = $region40
      $region39: #{bottleneck_forward.2} parent=35 // pred_region
        %s1355 = smul.u32 64, %s15
      $region40: #{bottleneck_forward.2} parent=35 // pred_fallthru
        _
    $region36: #{bottleneck_forward.2} parent=5 // pred_fallthru
      _
    %p1356 = scmp.le.s32.totalorder 2, %s10
    // Predicated region
    $region41: #{bottleneck_forward.2} parent=5 // pred_check
      %p1357 = pneg %p1356
    $region42: #{bottleneck_forward.2} parent=5 // pred_check_branch
      %1359 = sbr.rel (%p1357) target = $region44
    $region43: #{bottleneck_forward.2} parent=5 // pred_region
      %s1360 = ssub.s32 %s10, 2
      // Predicated region
      $region45: #{bottleneck_forward.2} parent=43 // pred_check
        %p1361 = pneg %p128
      $region46: #{bottleneck_forward.2} parent=43 // pred_check_branch
        %1363 = sbr.rel (%p1361) target = $region48
      $region47: #{bottleneck_forward.2} parent=43 // pred_region
        %s1364 = smul.u32 64, %s16
        %p1365 = scmp.lt.s32.totalorder %s1364, 127
        %s1366 = scalar_select %p1365, %s1364, 127
        %s1367 = smul.addr %s1366, 4
        %s1368 = scalar_lea.vmem %s4, %s1367
      $region48: #{bottleneck_forward.2} parent=43 // pred_fallthru
        _
    $region44: #{bottleneck_forward.2} parent=5 // pred_fallthru
      _
  $region6: #{bottleneck_forward.2} parent=0 // loop_footer
    %s14 = sadd.s32 1, %s10
  $region7: #{bottleneck_forward.2} parent=0 // loop_footer_branch
    %9 = sbr.rel target = $region3
  $region8: #{bottleneck_forward.2} parent=0 // loop_exit
    _

// kernel: bottleneck_forward.3
$region0: #{bottleneck_forward.3}
  #allocation0 [shape = 'u32[]', space=smem, size = 0x4, offset = 0x4, fixed_abs, tag = 'smem constant byte address 0x4 - core index']
  #allocation1 [shape = 'u32[144,128]{1,0:T(1,128)}', space=vmem, size = 0x12000, scoped, tag = 'internal scratch']
  %s0 = inlined_call_operand.vmem [shape: bf16[2,10,10,10,32], index: 0, kind: input, shape index: {}, may-alias: {0,1,2}]
  %s1 = inlined_call_operand.vmem [shape: bf16[2,10,10,10,32], index: 1, kind: input, shape index: {}, may-alias: {0,1,2}]
  %s2 = inlined_call_operand.vmem [shape: bf16[2,10,10,10,32], index: 2, kind: input, shape index: {}, may-alias: {0,1,2}]
  %s3 = inlined_call_operand.vmem [shape: bf16[2,8,8,8,16], index: 3, kind: input, shape index: {}]
  %s4 = inlined_call_operand.vmem [shape: bf16[1,864,32], index: 4, kind: input, shape index: {}]
  %s5 = inlined_call_operand.vmem [shape: bf16[32,24], index: 5, kind: input, shape index: {}]
  %s6 = inlined_call_operand.vmem [shape: bf16[16,24], index: 6, kind: input, shape index: {}]
  %s7 = inlined_call_operand.vmem [shape: f32[1,32], index: 7, kind: input, shape index: {}]
  %s8 = inlined_call_operand.vmem [shape: f32[1,32], index: 8, kind: input, shape index: {}]
  %s9 = inlined_call_operand.vmem [shape: f32[1,24], index: 9, kind: input, shape index: {}]
  %s10 = inlined_call_operand.vmem [shape: f32[1,24], index: 10, kind: input, shape index: {}]
  %s11 = inlined_call_operand.vmem [shape: f32[1,24], index: 11, kind: input, shape index: {}]
  %s12 = inlined_call_operand.vmem [shape: f32[1,24], index: 12, kind: input, shape index: {}]
  %s13 = inlined_call_operand.hbm [shape: bf16[2,8,8,8,32], index: 13, kind: output, shape index: {}]
  %s14 = sld [smem:[#allocation0]]
  $region85: #{bottleneck_forward.3} parent=0
    _
  %s16 = ssub.s32 1, %s14
  %s17 = scalar_select 0, %s16, %s14
  $region1: #{bottleneck_forward.3} parent=0
    #allocation2 [shape = 'u8[32768]{0}', space=vmem, size = 0x8000, scoped, tag = 'output window, operand 0']
    #allocation3 [shape = 's32[2]{0}', space=sflag, size = 0x8, scoped, tag = 'scoped memory for bottleneck_forward.3']
    %18 = vsyncpa [#allocation3], 0
    %s19 = scalar_lea.sflag [#allocation3], 1
    %20 = vsyncpa %s19, 0
    loop: start=0, step=1, limit=18
    $region2: #{bottleneck_forward.3} parent=1 // loop_pre_header
      _
    $region3: #{bottleneck_forward.3} parent=1 // loop_header
      %s22 = sphi 0, %s26
      %p23 = scmp.ge.s32.totalorder %s22, 18
      %s29 = sphi 0, %s41
      %s30 = sphi 0, %s37
      %s31 = sphi 0, %s29
      %s32 = sphi 0, %s30
      %s33 = sphi 0, %s31
      %s34 = sphi 0, %s32
      %s46 = sphi 0, %s48
      %s49 = sphi 0, %s46
      %s50 = sphi 0, %s49
      %s66 = sphi 0, %s50
      %s76 = sphi 0, %s78
      %s79 = sphi 0, %s76
      %s80 = sphi 0, %s79
      %s96 = sphi 0, %s80
      %s106 = sphi 0, %s108
      %s109 = sphi 0, %s106
      %s110 = sphi 0, %s109
      %s126 = sphi 0, %s110
      %s134 = sphi 0, %s136
      %s137 = sphi 0, %s134
      %s138 = sphi 0, %s137
      %s154 = sphi 0, %s138
      %s158 = sphi 0, %s158
      %s160 = sphi 0, %s158
      %s161 = sphi 0, %s160
      %s175 = sphi 0, %s161
      %s179 = sphi 0, %s179
      %s181 = sphi 0, %s179
      %s182 = sphi 0, %s181
      %s196 = sphi 0, %s182
      %s200 = sphi 0, %s200
      %s202 = sphi 0, %s200
      %s203 = sphi 0, %s202
      %s217 = sphi 0, %s203
      %s221 = sphi 0, %s221
      %s223 = sphi 0, %s221
      %s224 = sphi 0, %s223
      %s238 = sphi 0, %s224
      %s242 = sphi 0, %s242
      %s244 = sphi 0, %s242
      %s245 = sphi 0, %s244
      %s259 = sphi 0, %s245
      %s263 = sphi 0, %s263
      %s265 = sphi 0, %s263
      %s266 = sphi 0, %s265
      %s280 = sphi 0, %s266
      %s284 = sphi 0, %s284
      %s286 = sphi 0, %s284
      %s287 = sphi 0, %s286
      %s301 = sphi 0, %s287
      %s305 = sphi 0, %s305
      %s307 = sphi 0, %s305
      %s308 = sphi 0, %s307
      %s322 = sphi 0, %s308
      %s326 = sphi 0, %s326
      %s328 = sphi 0, %s326
      %s329 = sphi 0, %s328
      %s343 = sphi 0, %s329
      %s351 = sphi 0, %s353
      %s354 = sphi 0, %s351
      %s355 = sphi 0, %s354
      %s371 = sphi 0, %s355
    $region4: #{bottleneck_forward.3} parent=1 // loop_header_branch
      %25 = sbr.rel (%p23) target = $region8
    $region5: #{bottleneck_forward.3} parent=1 // loop_body
      %s27 = ssub.s32 %s22, 1
      %s28 = ssub.s32 %s22, 2
      %s35 = sadd.s32 1, %s30
      %p36 = scmp.ge.s32.totalorder %s35, 8
      %s37 = scalar_select %p36, 0, %s35
      %s38 = sadd.s32 1, %s29
      %s39 = scalar_select %p36, %s38, %s29
      %p40 = scmp.ge.s32.totalorder %s39, 2
      %s41 = scalar_select %p40, 0, %s39
      %s42 = ssub.s32 %s29, %s41
      %s43 = ssub.s32 %s30, %s37
      %s44 = sor.u32 %s42, %s43
      %p45 = scmp.eq.s32.totalorder %s44, 0
      %s47 = sadd.s32 %s46, 1
      %s48 = scalar_select %p45, %s46, %s47
      %p51 = pneg %p45
      %p52 = scmp.eq.s32.totalorder %s22, 15
      %p53 = por %p51, %p52
      %p54 = scmp.ne.s32.totalorder %s46, %s49
      %p55 = scmp.eq.s32.totalorder %s22, 0
      %p56 = por %p54, %p55
      %p57 = scmp.ne.s32.totalorder %s46, %s49
      %p58 = scmp.eq.s32.totalorder %s27, 15
      %p59 = por %p57, %p58
      %p60 = scmp.ne.s32.totalorder %s49, %s50
      %p61 = scmp.eq.s32.totalorder %s27, 0
      %p62 = por %p60, %p61
      %p63 = scmp.ne.s32.totalorder %s49, %s50
      %p64 = scmp.eq.s32.totalorder %s28, 15
      %p65 = por %p63, %p64
      %p67 = scmp.ne.s32.totalorder %s50, %s66
      %p68 = scmp.eq.s32.totalorder %s28, 0
      %p69 = por %p67, %p68
      %s70 = sadd.s32 %s30, 1
      %s71 = sadd.s32 %s37, 1
      %s72 = ssub.s32 %s29, %s41
      %s73 = ssub.s32 %s70, %s71
      %s74 = sor.u32 %s72, %s73
      %p75 = scmp.eq.s32.totalorder %s74, 0
      %s77 = sadd.s32 %s76, 1
      %s78 = scalar_select %p75, %s76, %s77
      %p81 = pneg %p75
      %p82 = scmp.eq.s32.totalorder %s22, 15
      %p83 = por %p81, %p82
      %p84 = scmp.ne.s32.totalorder %s76, %s79
      %p85 = scmp.eq.s32.totalorder %s22, 0
      %p86 = por %p84, %p85
      %p87 = scmp.ne.s32.totalorder %s76, %s79
      %p88 = scmp.eq.s32.totalorder %s27, 15
      %p89 = por %p87, %p88
      %p90 = scmp.ne.s32.totalorder %s79, %s80
      %p91 = scmp.eq.s32.totalorder %s27, 0
      %p92 = por %p90, %p91
      %p93 = scmp.ne.s32.totalorder %s79, %s80
      %p94 = scmp.eq.s32.totalorder %s28, 15
      %p95 = por %p93, %p94
      %p97 = scmp.ne.s32.totalorder %s80, %s96
      %p98 = scmp.eq.s32.totalorder %s28, 0
      %p99 = por %p97, %p98
      %s100 = sadd.s32 %s30, 2
      %s101 = sadd.s32 %s37, 2
      %s102 = ssub.s32 %s29, %s41
      %s103 = ssub.s32 %s100, %s101
      %s104 = sor.u32 %s102, %s103
      %p105 = scmp.eq.s32.totalorder %s104, 0
      %s107 = sadd.s32 %s106, 1
      %s108 = scalar_select %p105, %s106, %s107
      %p111 = pneg %p105
      %p112 = scmp.eq.s32.totalorder %s22, 15
      %p113 = por %p111, %p112
      %p114 = scmp.ne.s32.totalorder %s106, %s109
      %p115 = scmp.eq.s32.totalorder %s22, 0
      %p116 = por %p114, %p115
      %p117 = scmp.ne.s32.totalorder %s106, %s109
      %p118 = scmp.eq.s32.totalorder %s27, 15
      %p119 = por %p117, %p118
      %p120 = scmp.ne.s32.totalorder %s109, %s110
      %p121 = scmp.eq.s32.totalorder %s27, 0
      %p122 = por %p120, %p121
      %p123 = scmp.ne.s32.totalorder %s109, %s110
      %p124 = scmp.eq.s32.totalorder %s28, 15
      %p125 = por %p123, %p124
      %p127 = scmp.ne.s32.totalorder %s110, %s126
      %p128 = scmp.eq.s32.totalorder %s28, 0
      %p129 = por %p127, %p128
      %s130 = ssub.s32 %s29, %s41
      %s131 = ssub.s32 %s30, %s37
      %s132 = sor.u32 %s130, %s131
      %p133 = scmp.eq.s32.totalorder %s132, 0
      %s135 = sadd.s32 %s134, 1
      %s136 = scalar_select %p133, %s134, %s135
      %p139 = pneg %p133
      %p140 = scmp.eq.s32.totalorder %s22, 15
      %p141 = por %p139, %p140
      %p142 = scmp.ne.s32.totalorder %s134, %s137
      %p143 = scmp.eq.s32.totalorder %s22, 0
      %p144 = por %p142, %p143
      %p145 = scmp.ne.s32.totalorder %s134, %s137
      %p146 = scmp.eq.s32.totalorder %s27, 15
      %p147 = por %p145, %p146
      %p148 = scmp.ne.s32.totalorder %s137, %s138
      %p149 = scmp.eq.s32.totalorder %s27, 0
      %p150 = por %p148, %p149
      %p151 = scmp.ne.s32.totalorder %s137, %s138
      %p152 = scmp.eq.s32.totalorder %s28, 15
      %p153 = por %p151, %p152
      %p155 = scmp.ne.s32.totalorder %s138, %s154
      %p156 = scmp.eq.s32.totalorder %s28, 0
      %p157 = por %p155, %p156
      %s159 = sadd.s32 %s158, 1
      %p162 = scmp.eq.s32.totalorder %s22, 15
      %p163 = scmp.ne.s32.totalorder %s158, %s160
      %p164 = scmp.eq.s32.totalorder %s22, 0
      %p165 = por %p163, %p164
      %p166 = scmp.ne.s32.totalorder %s158, %s160
      %p167 = scmp.eq.s32.totalorder %s27, 15
      %p168 = por %p166, %p167
      %p169 = scmp.ne.s32.totalorder %s160, %s161
      %p170 = scmp.eq.s32.totalorder %s27, 0
      %p171 = por %p169, %p170
      %p172 = scmp.ne.s32.totalorder %s160, %s161
      %p173 = scmp.eq.s32.totalorder %s28, 15
      %p174 = por %p172, %p173
      %p176 = scmp.ne.s32.totalorder %s161, %s175
      %p177 = scmp.eq.s32.totalorder %s28, 0
      %p178 = por %p176, %p177
      %s180 = sadd.s32 %s179, 1
      %p183 = scmp.eq.s32.totalorder %s22, 15
      %p184 = scmp.ne.s32.totalorder %s179, %s181
      %p185 = scmp.eq.s32.totalorder %s22, 0
      %p186 = por %p184, %p185
      %p187 = scmp.ne.s32.totalorder %s179, %s181
      %p188 = scmp.eq.s32.totalorder %s27, 15
      %p189 = por %p187, %p188
      %p190 = scmp.ne.s32.totalorder %s181, %s182
      %p191 = scmp.eq.s32.totalorder %s27, 0
      %p192 = por %p190, %p191
      %p193 = scmp.ne.s32.totalorder %s181, %s182
      %p194 = scmp.eq.s32.totalorder %s28, 15
      %p195 = por %p193, %p194
      %p197 = scmp.ne.s32.totalorder %s182, %s196
      %p198 = scmp.eq.s32.totalorder %s28, 0
      %p199 = por %p197, %p198
      %s201 = sadd.s32 %s200, 1
      %p204 = scmp.eq.s32.totalorder %s22, 15
      %p205 = scmp.ne.s32.totalorder %s200, %s202
      %p206 = scmp.eq.s32.totalorder %s22, 0
      %p207 = por %p205, %p206
      %p208 = scmp.ne.s32.totalorder %s200, %s202
      %p209 = scmp.eq.s32.totalorder %s27, 15
      %p210 = por %p208, %p209
      %p211 = scmp.ne.s32.totalorder %s202, %s203
      %p212 = scmp.eq.s32.totalorder %s27, 0
      %p213 = por %p211, %p212
      %p214 = scmp.ne.s32.totalorder %s202, %s203
      %p215 = scmp.eq.s32.totalorder %s28, 15
      %p216 = por %p214, %p215
      %p218 = scmp.ne.s32.totalorder %s203, %s217
      %p219 = scmp.eq.s32.totalorder %s28, 0
      %p220 = por %p218, %p219
      %s222 = sadd.s32 %s221, 1
      %p225 = scmp.eq.s32.totalorder %s22, 15
      %p226 = scmp.ne.s32.totalorder %s221, %s223
      %p227 = scmp.eq.s32.totalorder %s22, 0
      %p228 = por %p226, %p227
      %p229 = scmp.ne.s32.totalorder %s221, %s223
      %p230 = scmp.eq.s32.totalorder %s27, 15
      %p231 = por %p229, %p230
      %p232 = scmp.ne.s32.totalorder %s223, %s224
      %p233 = scmp.eq.s32.totalorder %s27, 0
      %p234 = por %p232, %p233
      %p235 = scmp.ne.s32.totalorder %s223, %s224
      %p236 = scmp.eq.s32.totalorder %s28, 15
      %p237 = por %p235, %p236
      %p239 = scmp.ne.s32.totalorder %s224, %s238
      %p240 = scmp.eq.s32.totalorder %s28, 0
      %p241 = por %p239, %p240
      %s243 = sadd.s32 %s242, 1
      %p246 = scmp.eq.s32.totalorder %s22, 15
      %p247 = scmp.ne.s32.totalorder %s242, %s244
      %p248 = scmp.eq.s32.totalorder %s22, 0
      %p249 = por %p247, %p248
      %p250 = scmp.ne.s32.totalorder %s242, %s244
      %p251 = scmp.eq.s32.totalorder %s27, 15
      %p252 = por %p250, %p251
      %p253 = scmp.ne.s32.totalorder %s244, %s245
      %p254 = scmp.eq.s32.totalorder %s27, 0
      %p255 = por %p253, %p254
      %p256 = scmp.ne.s32.totalorder %s244, %s245
      %p257 = scmp.eq.s32.totalorder %s28, 15
      %p258 = por %p256, %p257
      %p260 = scmp.ne.s32.totalorder %s245, %s259
      %p261 = scmp.eq.s32.totalorder %s28, 0
      %p262 = por %p260, %p261
      %s264 = sadd.s32 %s263, 1
      %p267 = scmp.eq.s32.totalorder %s22, 15
      %p268 = scmp.ne.s32.totalorder %s263, %s265
      %p269 = scmp.eq.s32.totalorder %s22, 0
      %p270 = por %p268, %p269
      %p271 = scmp.ne.s32.totalorder %s263, %s265
      %p272 = scmp.eq.s32.totalorder %s27, 15
      %p273 = por %p271, %p272
      %p274 = scmp.ne.s32.totalorder %s265, %s266
      %p275 = scmp.eq.s32.totalorder %s27, 0
      %p276 = por %p274, %p275
      %p277 = scmp.ne.s32.totalorder %s265, %s266
      %p278 = scmp.eq.s32.totalorder %s28, 15
      %p279 = por %p277, %p278
      %p281 = scmp.ne.s32.totalorder %s266, %s280
      %p282 = scmp.eq.s32.totalorder %s28, 0
      %p283 = por %p281, %p282
      %s285 = sadd.s32 %s284, 1
      %p288 = scmp.eq.s32.totalorder %s22, 15
      %p289 = scmp.ne.s32.totalorder %s284, %s286
      %p290 = scmp.eq.s32.totalorder %s22, 0
      %p291 = por %p289, %p290
      %p292 = scmp.ne.s32.totalorder %s284, %s286
      %p293 = scmp.eq.s32.totalorder %s27, 15
      %p294 = por %p292, %p293
      %p295 = scmp.ne.s32.totalorder %s286, %s287
      %p296 = scmp.eq.s32.totalorder %s27, 0
      %p297 = por %p295, %p296
      %p298 = scmp.ne.s32.totalorder %s286, %s287
      %p299 = scmp.eq.s32.totalorder %s28, 15
      %p300 = por %p298, %p299
      %p302 = scmp.ne.s32.totalorder %s287, %s301
      %p303 = scmp.eq.s32.totalorder %s28, 0
      %p304 = por %p302, %p303
      %s306 = sadd.s32 %s305, 1
      %p309 = scmp.eq.s32.totalorder %s22, 15
      %p310 = scmp.ne.s32.totalorder %s305, %s307
      %p311 = scmp.eq.s32.totalorder %s22, 0
      %p312 = por %p310, %p311
      %p313 = scmp.ne.s32.totalorder %s305, %s307
      %p314 = scmp.eq.s32.totalorder %s27, 15
      %p315 = por %p313, %p314
      %p316 = scmp.ne.s32.totalorder %s307, %s308
      %p317 = scmp.eq.s32.totalorder %s27, 0
      %p318 = por %p316, %p317
      %p319 = scmp.ne.s32.totalorder %s307, %s308
      %p320 = scmp.eq.s32.totalorder %s28, 15
      %p321 = por %p319, %p320
      %p323 = scmp.ne.s32.totalorder %s308, %s322
      %p324 = scmp.eq.s32.totalorder %s28, 0
      %p325 = por %p323, %p324
      %s327 = sadd.s32 %s326, 1
      %p330 = scmp.eq.s32.totalorder %s22, 15
      %p331 = scmp.ne.s32.totalorder %s326, %s328
      %p332 = scmp.eq.s32.totalorder %s22, 0
      %p333 = por %p331, %p332
      %p334 = scmp.ne.s32.totalorder %s326, %s328
      %p335 = scmp.eq.s32.totalorder %s27, 15
      %p336 = por %p334, %p335
      %p337 = scmp.ne.s32.totalorder %s328, %s329
      %p338 = scmp.eq.s32.totalorder %s27, 0
      %p339 = por %p337, %p338
      %p340 = scmp.ne.s32.totalorder %s328, %s329
      %p341 = scmp.eq.s32.totalorder %s28, 15
      %p342 = por %p340, %p341
      %p344 = scmp.ne.s32.totalorder %s329, %s343
      %p345 = scmp.eq.s32.totalorder %s28, 0
      %p346 = por %p344, %p345
      %s347 = ssub.s32 %s29, %s41
      %s348 = ssub.s32 %s30, %s37
      %s349 = sor.u32 %s347, %s348
      %p350 = scmp.eq.s32.totalorder %s349, 0
      %s352 = sadd.s32 %s351, 1
      %s353 = scalar_select %p350, %s351, %s352
      %p356 = pneg %p350
      %p357 = scmp.eq.s32.totalorder %s22, 15
      %p358 = por %p356, %p357
      %p359 = scmp.ne.s32.totalorder %s351, %s354
      %p360 = scmp.eq.s32.totalorder %s22, 0
      %p361 = por %p359, %p360
      %p362 = scmp.ne.s32.totalorder %s351, %s354
      %p363 = scmp.eq.s32.totalorder %s27, 15
      %p364 = por %p362, %p363
      %p365 = scmp.ne.s32.totalorder %s354, %s355
      %p366 = scmp.eq.s32.totalorder %s27, 0
      %p367 = por %p365, %p366
      %p368 = scmp.ne.s32.totalorder %s354, %s355
      %p369 = scmp.eq.s32.totalorder %s28, 15
      %p370 = por %p368, %p369
      %p372 = scmp.ne.s32.totalorder %s355, %s371
      %p373 = scmp.eq.s32.totalorder %s28, 0
      %p374 = por %p372, %p373
      %p375 = scmp.le.s32.totalorder 1, %s22
      %p376 = scmp.lt.s32.totalorder %s22, 17
      %p377 = pnand %p375, %p376
      %p378 = pneg %p377
      // Predicated region
      $region9: #{bottleneck_forward.3} parent=5 // pred_check
        _
      $region10: #{bottleneck_forward.3} parent=5 // pred_check_branch
        %380 = sbr.rel (%p377) target = $region12
      $region11: #{bottleneck_forward.3} parent=5 // pred_region
        %s381 = ssub.s32 %s22, 1
        // Predicated region
        $region13: #{bottleneck_forward.3} parent=11 // pred_check
          %p382 = pneg %p171
        $region14: #{bottleneck_forward.3} parent=11 // pred_check_branch
          %384 = sbr.rel (%p382) target = $region16
        $region15: #{bottleneck_forward.3} parent=11 // pred_region
          _
        $region16: #{bottleneck_forward.3} parent=11 // pred_fallthru
          _
        // Predicated region
        $region17: #{bottleneck_forward.3} parent=11 // pred_check
          %p385 = pneg %p192
        $region18: #{bottleneck_forward.3} parent=11 // pred_check_branch
          %387 = sbr.rel (%p385) target = $region20
        $region19: #{bottleneck_forward.3} parent=11 // pred_region
          _
        $region20: #{bottleneck_forward.3} parent=11 // pred_fallthru
          _
        // Predicated region
        $region21: #{bottleneck_forward.3} parent=11 // pred_check
          %p388 = pneg %p213
        $region22: #{bottleneck_forward.3} parent=11 // pred_check_branch
          %390 = sbr.rel (%p388) target = $region24
        $region23: #{bottleneck_forward.3} parent=11 // pred_region
          _
        $region24: #{bottleneck_forward.3} parent=11 // pred_fallthru
          _
        // Predicated region
        $region25: #{bottleneck_forward.3} parent=11 // pred_check
          %p391 = pneg %p234
        $region26: #{bottleneck_forward.3} parent=11 // pred_check_branch
          %393 = sbr.rel (%p391) target = $region28
        $region27: #{bottleneck_forward.3} parent=11 // pred_region
          _
        $region28: #{bottleneck_forward.3} parent=11 // pred_fallthru
          _
        // Predicated region
        $region29: #{bottleneck_forward.3} parent=11 // pred_check
          %p394 = pneg %p255
        $region30: #{bottleneck_forward.3} parent=11 // pred_check_branch
          %396 = sbr.rel (%p394) target = $region32
        $region31: #{bottleneck_forward.3} parent=11 // pred_region
          _
        $region32: #{bottleneck_forward.3} parent=11 // pred_fallthru
          _
        // Predicated region
        $region33: #{bottleneck_forward.3} parent=11 // pred_check
          %p397 = pneg %p276
        $region34: #{bottleneck_forward.3} parent=11 // pred_check_branch
          %399 = sbr.rel (%p397) target = $region36
        $region35: #{bottleneck_forward.3} parent=11 // pred_region
          _
        $region36: #{bottleneck_forward.3} parent=11 // pred_fallthru
          _
        // Predicated region
        $region37: #{bottleneck_forward.3} parent=11 // pred_check
          %p400 = pneg %p297
        $region38: #{bottleneck_forward.3} parent=11 // pred_check_branch
          %402 = sbr.rel (%p400) target = $region40
        $region39: #{bottleneck_forward.3} parent=11 // pred_region
          _
        $region40: #{bottleneck_forward.3} parent=11 // pred_fallthru
          _
        // Predicated region
        $region41: #{bottleneck_forward.3} parent=11 // pred_check
          %p403 = pneg %p318
        $region42: #{bottleneck_forward.3} parent=11 // pred_check_branch
          %405 = sbr.rel (%p403) target = $region44
        $region43: #{bottleneck_forward.3} parent=11 // pred_region
          _
        $region44: #{bottleneck_forward.3} parent=11 // pred_fallthru
          _
        // Predicated region
        $region45: #{bottleneck_forward.3} parent=11 // pred_check
          %p406 = pneg %p339
        $region46: #{bottleneck_forward.3} parent=11 // pred_check_branch
          %408 = sbr.rel (%p406) target = $region48
        $region47: #{bottleneck_forward.3} parent=11 // pred_region
          _
        $region48: #{bottleneck_forward.3} parent=11 // pred_fallthru
          _
      $region12: #{bottleneck_forward.3} parent=5 // pred_fallthru
        _
      %p409 = scmp.lt.s32.totalorder %s22, 16
      // Predicated region
      $region49: #{bottleneck_forward.3} parent=5 // pred_check
        %p410 = pneg %p409
      $region50: #{bottleneck_forward.3} parent=5 // pred_check_branch
        %412 = sbr.rel (%p410) target = $region52
      $region51: #{bottleneck_forward.3} parent=5 // pred_region
        // Predicated region
        $region53: #{bottleneck_forward.3} parent=51 // pred_check
          %p413 = pneg %p56
        $region54: #{bottleneck_forward.3} parent=51 // pred_check_branch
          %415 = sbr.rel (%p413) target = $region56
        $region55: #{bottleneck_forward.3} parent=51 // pred_region
          %p416 = scmp.lt.s32.totalorder %s29, 1
          %s417 = scalar_select %p416, %s29, 1
          %p418 = scmp.lt.s32.totalorder %s30, 9
          %s419 = scalar_select %p418, %s30, 9
          %s420 = smul.addr %s419, 20
          %s421 = smul.addr %s417, 200
          %s422 = sadd.s32 %s420, %s421
          %s423 = smul.addr %s422, 4
          %s424 = scalar_lea.vmem %s0, %s423
        $region56: #{bottleneck_forward.3} parent=51 // pred_fallthru
          _
        // Predicated region
        $region57: #{bottleneck_forward.3} parent=51 // pred_check
          %p425 = pneg %p86
        $region58: #{bottleneck_forward.3} parent=51 // pred_check_branch
          %427 = sbr.rel (%p425) target = $region60
        $region59: #{bottleneck_forward.3} parent=51 // pred_region
          %s428 = sadd.s32 %s30, 1
          %p429 = scmp.lt.s32.totalorder %s29, 1
          %s430 = scalar_select %p429, %s29, 1
          %p431 = scmp.lt.s32.totalorder %s428, 9
          %s432 = scalar_select %p431, %s428, 9
          %s433 = smul.addr %s432, 20
          %s434 = smul.addr %s430, 200
          %s435 = sadd.s32 %s433, %s434
          %s436 = smul.addr %s435, 4
          %s437 = scalar_lea.vmem %s1, %s436
          %s438 = sadd.s32 %s30, 1
        $region60: #{bottleneck_forward.3} parent=51 // pred_fallthru
          _
        // Predicated region
        $region61: #{bottleneck_forward.3} parent=51 // pred_check
          %p439 = pneg %p116
        $region62: #{bottleneck_forward.3} parent=51 // pred_check_branch
          %441 = sbr.rel (%p439) target = $region64
        $region63: #{bottleneck_forward.3} parent=51 // pred_region
          %s442 = sadd.s32 %s30, 2
          %p443 = scmp.lt.s32.totalorder %s29, 1
          %s444 = scalar_select %p443, %s29, 1
          %p445 = scmp.lt.s32.totalorder %s442, 9
          %s446 = scalar_select %p445, %s442, 9
          %s447 = smul.addr %s446, 20
          %s448 = smul.addr %s444, 200
          %s449 = sadd.s32 %s447, %s448
          %s450 = smul.addr %s449, 4
          %s451 = scalar_lea.vmem %s2, %s450
          %s452 = sadd.s32 %s30, 2
        $region64: #{bottleneck_forward.3} parent=51 // pred_fallthru
          _
        // Predicated region
        $region65: #{bottleneck_forward.3} parent=51 // pred_check
          %p453 = pneg %p144
        $region66: #{bottleneck_forward.3} parent=51 // pred_check_branch
          %455 = sbr.rel (%p453) target = $region68
        $region67: #{bottleneck_forward.3} parent=51 // pred_region
          %p456 = scmp.lt.s32.totalorder %s29, 1
          %s457 = scalar_select %p456, %s29, 1
          %p458 = scmp.lt.s32.totalorder %s30, 7
          %s459 = scalar_select %p458, %s30, 7
          %s460 = smul.addr %s459, 8
          %s461 = smul.addr %s457, 64
          %s462 = sadd.s32 %s460, %s461
          %s463 = smul.addr %s462, 4
          %s464 = scalar_lea.vmem %s3, %s463
        $region68: #{bottleneck_forward.3} parent=51 // pred_fallthru
          _
      $region52: #{bottleneck_forward.3} parent=5 // pred_fallthru
        _
      %p465 = scmp.le.s32.totalorder 1, %s22
      %p466 = scmp.lt.s32.totalorder %s22, 17
      %p467 = pnand %p465, %p466
      %p468 = pneg %p467
      // Predicated region
      $region69: #{bottleneck_forward.3} parent=5 // pred_check
        _
      $region70: #{bottleneck_forward.3} parent=5 // pred_check_branch
        %470 = sbr.rel (%p467) target = $region72
      $region71: #{bottleneck_forward.3} parent=5 // pred_region
        %s471 = ssub.s32 %s22, 1
        %p472 = scmp.lt.s32.totalorder %s31, 1
        %s473 = scalar_select %p472, %s31, 1
        %p474 = scmp.lt.s32.totalorder %s32, 9
        %s475 = scalar_select %p474, %s32, 9
        %s476 = smul.addr %s475, 20
        %s477 = smul.addr %s473, 200
        %s478 = sadd.s32 %s476, %s477
        %s479 = smul.addr %s478, 4
        %s480 = scalar_lea.vmem %s0, %s479
        %p481 = pneg %p62
        %p482 = pneg %p59
        %s483 = sadd.s32 %s32, 1
        %p484 = scmp.lt.s32.totalorder %s31, 1
        %s485 = scalar_select %p484, %s31, 1
        %p486 = scmp.lt.s32.totalorder %s483, 9
        %s487 = scalar_select %p486, %s483, 9
        %s488 = smul.addr %s487, 20
        %s489 = smul.addr %s485, 200
        %s490 = sadd.s32 %s488, %s489
        %s491 = smul.addr %s490, 4
        %s492 = scalar_lea.vmem %s1, %s491
        %p493 = pneg %p92
        %p494 = pneg %p89
        %s495 = sadd.s32 %s32, 2
        %p496 = scmp.lt.s32.totalorder %s31, 1
        %s497 = scalar_select %p496, %s31, 1
        %p498 = scmp.lt.s32.totalorder %s495, 9
        %s499 = scalar_select %p498, %s495, 9
        %s500 = smul.addr %s499, 20
        %s501 = smul.addr %s497, 200
        %s502 = sadd.s32 %s500, %s501
        %s503 = smul.addr %s502, 4
        %s504 = scalar_lea.vmem %s2, %s503
        %p505 = pneg %p122
        %p506 = pneg %p119
        %p507 = scmp.lt.s32.totalorder %s31, 1
        %s508 = scalar_select %p507, %s31, 1
        %p509 = scmp.lt.s32.totalorder %s32, 7
        %s510 = scalar_select %p509, %s32, 7
        %s511 = smul.addr %s510, 8
        %s512 = smul.addr %s508, 64
        %s513 = sadd.s32 %s511, %s512
        %s514 = smul.addr %s513, 4
        %s515 = scalar_lea.vmem %s3, %s514
        %p516 = pneg %p150
        %p517 = pneg %p147
        %p518 = pneg %p171
        %p519 = pneg %p168
        %p520 = pneg %p192
        %p521 = pneg %p189
        %p522 = pneg %p213
        %p523 = pneg %p210
        %p524 = pneg %p234
        %p525 = pneg %p231
        %p526 = pneg %p255
        %p527 = pneg %p252
        %p528 = pneg %p276
        %p529 = pneg %p273
        %p530 = pneg %p297
        %p531 = pneg %p294
        %p532 = pneg %p318
        %p533 = pneg %p315
        %p534 = pneg %p339
        %p535 = pneg %p336
        %p536 = pneg %p367
        %p537 = pneg %p364
        %s538 = sand.u32 %s354, 1
        %s539 = scalar_lea.sflag [#allocation3], %s538
        %s540 = sand.u32 %s354, 1
        %s541 = smul.addr %s540, 32
        %s542 = scalar_lea.vmem [#allocation2], %s541
        %p543 = scmp.lt.s32.totalorder %s31, 1
        %s544 = scalar_select %p543, %s31, 1
        %p545 = scmp.lt.s32.totalorder %s32, 9
        %s546 = scalar_select %p545, %s32, 9
        %s547 = smul.addr %s546, 20
        %s548 = smul.addr %s544, 200
        %s549 = sadd.s32 %s547, %s548
        %s550 = smul.addr %s549, 4
        %s551 = scalar_lea.vmem %s0, %s550
        %s552 = sadd.s32 %s32, 1
        %p553 = scmp.lt.s32.totalorder %s31, 1
        %s554 = scalar_select %p553, %s31, 1
        %p555 = scmp.lt.s32.totalorder %s552, 9
        %s556 = scalar_select %p555, %s552, 9
        %s557 = smul.addr %s556, 20
        %s558 = smul.addr %s554, 200
        %s559 = sadd.s32 %s557, %s558
        %s560 = smul.addr %s559, 4
        %s561 = scalar_lea.vmem %s1, %s560
        %s562 = sadd.s32 %s32, 1
        %s563 = sadd.s32 %s32, 2
        %p564 = scmp.lt.s32.totalorder %s31, 1
        %s565 = scalar_select %p564, %s31, 1
        %p566 = scmp.lt.s32.totalorder %s563, 9
        %s567 = scalar_select %p566, %s563, 9
        %s568 = smul.addr %s567, 20
        %s569 = smul.addr %s565, 200
        %s570 = sadd.s32 %s568, %s569
        %s571 = smul.addr %s570, 4
        %s572 = scalar_lea.vmem %s2, %s571
        %s573 = sadd.s32 %s32, 2
        %p574 = scmp.lt.s32.totalorder %s31, 1
        %s575 = scalar_select %p574, %s31, 1
        %p576 = scmp.lt.s32.totalorder %s32, 7
        %s577 = scalar_select %p576, %s32, 7
        %s578 = smul.addr %s577, 8
        %s579 = smul.addr %s575, 64
        %s580 = sadd.s32 %s578, %s579
        %s581 = smul.addr %s580, 4
        %s582 = scalar_lea.vmem %s3, %s581
        %v584 = vld [vmem:[%s551] sm:$0xf]
        %v585 = vld [vmem:[%s551 + $0x8] sm:$0xf]
        %v586 = vld [vmem:[%s551 + $0x10] sm:$0xf]
        %v587 = vld [vmem:[%s551 + $0x18] sm:$0xf]
        %v588 = vld [vmem:[%s551 + $0x20] sm:$0xf]
        %v589 = vld [vmem:[%s551 + $0x28] sm:$0xf]
        %v590 = vld [vmem:[%s551 + $0x30] sm:$0xf]
        %v591 = vld [vmem:[%s551 + $0x38] sm:$0xf]
        %v592 = vld [vmem:[%s551 + $0x4] sm:$0x1]
        %v593 = vld [vmem:[%s551 + $0xc] sm:$0x1]
        %v594 = vld [vmem:[%s551 + $0x14] sm:$0x1]
        %v595 = vld [vmem:[%s551 + $0x1c] sm:$0x1]
        %v596 = vld [vmem:[%s551 + $0x24] sm:$0x1]
        %v597 = vld [vmem:[%s551 + $0x2c] sm:$0x1]
        %v598 = vld [vmem:[%s551 + $0x34] sm:$0x1]
        %v599 = vld [vmem:[%s551 + $0x3c] sm:$0x1]
        %v600 = vld [vmem:[%s551] sm:$0xe]
        %v601 = vld [vmem:[%s551 + $0x8] sm:$0xe]
        %v602 = vld [vmem:[%s551 + $0x10] sm:$0xe]
        %v603 = vld [vmem:[%s551 + $0x18] sm:$0xe]
        %v604 = vld [vmem:[%s551 + $0x20] sm:$0xe]
        %v605 = vld [vmem:[%s551 + $0x28] sm:$0xe]
        %v606 = vld [vmem:[%s551 + $0x30] sm:$0xe]
        %v607 = vld [vmem:[%s551 + $0x38] sm:$0xe]
        %s608 = scalar_lea.vmem %s551, 8
        %v609 = vld [vmem:[%s608] sm:$0xf]
        %v610 = vld [vmem:[%s608 + $0x8] sm:$0xf]
        %v611 = vld [vmem:[%s608 + $0x10] sm:$0xf]
        %v612 = vld [vmem:[%s608 + $0x18] sm:$0xf]
        %v613 = vld [vmem:[%s608 + $0x20] sm:$0xf]
        %v614 = vld [vmem:[%s608 + $0x28] sm:$0xf]
        %v615 = vld [vmem:[%s608 + $0x30] sm:$0xf]
        %v616 = vld [vmem:[%s608 + $0x38] sm:$0xf]
        %v617 = vld [vmem:[%s608 + $0x4] sm:$0x1]
        %v618 = vld [vmem:[%s608 + $0xc] sm:$0x1]
        %v619 = vld [vmem:[%s608 + $0x14] sm:$0x1]
        %v620 = vld [vmem:[%s608 + $0x1c] sm:$0x1]
        %v621 = vld [vmem:[%s608 + $0x24] sm:$0x1]
        %v622 = vld [vmem:[%s608 + $0x2c] sm:$0x1]
        %v623 = vld [vmem:[%s608 + $0x34] sm:$0x1]
        %v624 = vld [vmem:[%s608 + $0x3c] sm:$0x1]
        %v625 = vld [vmem:[%s608] sm:$0xe]
        %v626 = vld [vmem:[%s608 + $0x8] sm:$0xe]
        %v627 = vld [vmem:[%s608 + $0x10] sm:$0xe]
        %v628 = vld [vmem:[%s608 + $0x18] sm:$0xe]
        %v629 = vld [vmem:[%s608 + $0x20] sm:$0xe]
        %v630 = vld [vmem:[%s608 + $0x28] sm:$0xe]
        %v631 = vld [vmem:[%s608 + $0x30] sm:$0xe]
        %v632 = vld [vmem:[%s608 + $0x38] sm:$0xe]
        %s633 = scalar_lea.vmem %s551, 16
        %v634 = vld [vmem:[%s633] sm:$0xf]
        %v635 = vld [vmem:[%s633 + $0x8] sm:$0xf]
        %v636 = vld [vmem:[%s633 + $0x10] sm:$0xf]
        %v637 = vld [vmem:[%s633 + $0x18] sm:$0xf]
        %v638 = vld [vmem:[%s633 + $0x20] sm:$0xf]
        %v639 = vld [vmem:[%s633 + $0x28] sm:$0xf]
        %v640 = vld [vmem:[%s633 + $0x30] sm:$0xf]
        %v641 = vld [vmem:[%s633 + $0x38] sm:$0xf]
        %v642 = vld [vmem:[%s633 + $0x4] sm:$0x1]
        %v643 = vld [vmem:[%s633 + $0xc] sm:$0x1]
        %v644 = vld [vmem:[%s633 + $0x14] sm:$0x1]
        %v645 = vld [vmem:[%s633 + $0x1c] sm:$0x1]
        %v646 = vld [vmem:[%s633 + $0x24] sm:$0x1]
        %v647 = vld [vmem:[%s633 + $0x2c] sm:$0x1]
        %v648 = vld [vmem:[%s633 + $0x34] sm:$0x1]
        %v649 = vld [vmem:[%s633 + $0x3c] sm:$0x1]
        %v650 = vld [vmem:[%s633] sm:$0xe]
        %v651 = vld [vmem:[%s633 + $0x8] sm:$0xe]
        %v652 = vld [vmem:[%s633 + $0x10] sm:$0xe]
        %v653 = vld [vmem:[%s633 + $0x18] sm:$0xe]
        %v654 = vld [vmem:[%s633 + $0x20] sm:$0xe]
        %v655 = vld [vmem:[%s633 + $0x28] sm:$0xe]
        %v656 = vld [vmem:[%s633 + $0x30] sm:$0xe]
        %v657 = vld [vmem:[%s633 + $0x38] sm:$0xe]
        %v658 = vld [vmem:[%s561] sm:$0xf]
        %v659 = vld [vmem:[%s561 + $0x8] sm:$0xf]
        %v660 = vld [vmem:[%s561 + $0x10] sm:$0xf]
        %v661 = vld [vmem:[%s561 + $0x18] sm:$0xf]
        %v662 = vld [vmem:[%s561 + $0x20] sm:$0xf]
        %v663 = vld [vmem:[%s561 + $0x28] sm:$0xf]
        %v664 = vld [vmem:[%s561 + $0x30] sm:$0xf]
        %v665 = vld [vmem:[%s561 + $0x38] sm:$0xf]
        %v666 = vld [vmem:[%s561 + $0x4] sm:$0x1]
        %v667 = vld [vmem:[%s561 + $0xc] sm:$0x1]
        %v668 = vld [vmem:[%s561 + $0x14] sm:$0x1]
        %v669 = vld [vmem:[%s561 + $0x1c] sm:$0x1]
        %v670 = vld [vmem:[%s561 + $0x24] sm:$0x1]
        %v671 = vld [vmem:[%s561 + $0x2c] sm:$0x1]
        %v672 = vld [vmem:[%s561 + $0x34] sm:$0x1]
        %v673 = vld [vmem:[%s561 + $0x3c] sm:$0x1]
        %v674 = vld [vmem:[%s561] sm:$0xe]
        %v675 = vld [vmem:[%s561 + $0x8] sm:$0xe]
        %v676 = vld [vmem:[%s561 + $0x10] sm:$0xe]
        %v677 = vld [vmem:[%s561 + $0x18] sm:$0xe]
        %v678 = vld [vmem:[%s561 + $0x20] sm:$0xe]
        %v679 = vld [vmem:[%s561 + $0x28] sm:$0xe]
        %v680 = vld [vmem:[%s561 + $0x30] sm:$0xe]
        %v681 = vld [vmem:[%s561 + $0x38] sm:$0xe]
        %s682 = scalar_lea.vmem %s561, 8
        %v683 = vld [vmem:[%s682] sm:$0xf]
        %v684 = vld [vmem:[%s682 + $0x8] sm:$0xf]
        %v685 = vld [vmem:[%s682 + $0x10] sm:$0xf]
        %v686 = vld [vmem:[%s682 + $0x18] sm:$0xf]
        %v687 = vld [vmem:[%s682 + $0x20] sm:$0xf]
        %v688 = vld [vmem:[%s682 + $0x28] sm:$0xf]
        %v689 = vld [vmem:[%s682 + $0x30] sm:$0xf]
        %v690 = vld [vmem:[%s682 + $0x38] sm:$0xf]
        %v691 = vld [vmem:[%s682 + $0x4] sm:$0x1]
        %v692 = vld [vmem:[%s682 + $0xc] sm:$0x1]
        %v693 = vld [vmem:[%s682 + $0x14] sm:$0x1]
        %v694 = vld [vmem:[%s682 + $0x1c] sm:$0x1]
        %v695 = vld [vmem:[%s682 + $0x24] sm:$0x1]
        %v696 = vld [vmem:[%s682 + $0x2c] sm:$0x1]
        %v697 = vld [vmem:[%s682 + $0x34] sm:$0x1]
        %v698 = vld [vmem:[%s682 + $0x3c] sm:$0x1]
        %v699 = vld [vmem:[%s682] sm:$0xe]
        %v700 = vld [vmem:[%s682 + $0x8] sm:$0xe]
        %v701 = vld [vmem:[%s682 + $0x10] sm:$0xe]
        %v702 = vld [vmem:[%s682 + $0x18] sm:$0xe]
        %v703 = vld [vmem:[%s682 + $0x20] sm:$0xe]
        %v704 = vld [vmem:[%s682 + $0x28] sm:$0xe]
        %v705 = vld [vmem:[%s682 + $0x30] sm:$0xe]
        %v706 = vld [vmem:[%s682 + $0x38] sm:$0xe]
        %s707 = scalar_lea.vmem %s561, 16
        %v708 = vld [vmem:[%s707] sm:$0xf]
        %v709 = vld [vmem:[%s707 + $0x8] sm:$0xf]
        %v710 = vld [vmem:[%s707 + $0x10] sm:$0xf]
        %v711 = vld [vmem:[%s707 + $0x18] sm:$0xf]
        %v712 = vld [vmem:[%s707 + $0x20] sm:$0xf]
        %v713 = vld [vmem:[%s707 + $0x28] sm:$0xf]
        %v714 = vld [vmem:[%s707 + $0x30] sm:$0xf]
        %v715 = vld [vmem:[%s707 + $0x38] sm:$0xf]
        %v716 = vld [vmem:[%s707 + $0x4] sm:$0x1]
        %v717 = vld [vmem:[%s707 + $0xc] sm:$0x1]
        %v718 = vld [vmem:[%s707 + $0x14] sm:$0x1]
        %v719 = vld [vmem:[%s707 + $0x1c] sm:$0x1]
        %v720 = vld [vmem:[%s707 + $0x24] sm:$0x1]
        %v721 = vld [vmem:[%s707 + $0x2c] sm:$0x1]
        %v722 = vld [vmem:[%s707 + $0x34] sm:$0x1]
        %v723 = vld [vmem:[%s707 + $0x3c] sm:$0x1]
        %v724 = vld [vmem:[%s707] sm:$0xe]
        %v725 = vld [vmem:[%s707 + $0x8] sm:$0xe]
        %v726 = vld [vmem:[%s707 + $0x10] sm:$0xe]
        %v727 = vld [vmem:[%s707 + $0x18] sm:$0xe]
        %v728 = vld [vmem:[%s707 + $0x20] sm:$0xe]
        %v729 = vld [vmem:[%s707 + $0x28] sm:$0xe]
        %v730 = vld [vmem:[%s707 + $0x30] sm:$0xe]
        %v731 = vld [vmem:[%s707 + $0x38] sm:$0xe]
        %v732 = vld [vmem:[%s572] sm:$0xf]
        %v733 = vld [vmem:[%s572 + $0x8] sm:$0xf]
        %v734 = vld [vmem:[%s572 + $0x10] sm:$0xf]
        %v735 = vld [vmem:[%s572 + $0x18] sm:$0xf]
        %v736 = vld [vmem:[%s572 + $0x20] sm:$0xf]
        %v737 = vld [vmem:[%s572 + $0x28] sm:$0xf]
        %v738 = vld [vmem:[%s572 + $0x30] sm:$0xf]
        %v739 = vld [vmem:[%s572 + $0x38] sm:$0xf]
        %v740 = vld [vmem:[%s572 + $0x4] sm:$0x1]
        %v741 = vld [vmem:[%s572 + $0xc] sm:$0x1]
        %v742 = vld [vmem:[%s572 + $0x14] sm:$0x1]
        %v743 = vld [vmem:[%s572 + $0x1c] sm:$0x1]
        %v744 = vld [vmem:[%s572 + $0x24] sm:$0x1]
        %v745 = vld [vmem:[%s572 + $0x2c] sm:$0x1]
        %v746 = vld [vmem:[%s572 + $0x34] sm:$0x1]
        %v747 = vld [vmem:[%s572 + $0x3c] sm:$0x1]
        %v748 = vld [vmem:[%s572] sm:$0xe]
        %v749 = vld [vmem:[%s572 + $0x8] sm:$0xe]
        %v750 = vld [vmem:[%s572 + $0x10] sm:$0xe]
        %v751 = vld [vmem:[%s572 + $0x18] sm:$0xe]
        %v752 = vld [vmem:[%s572 + $0x20] sm:$0xe]
        %v753 = vld [vmem:[%s572 + $0x28] sm:$0xe]
        %v754 = vld [vmem:[%s572 + $0x30] sm:$0xe]
        %v755 = vld [vmem:[%s572 + $0x38] sm:$0xe]
        %s756 = scalar_lea.vmem %s572, 8
        %v757 = vld [vmem:[%s756] sm:$0xf]
        %v758 = vld [vmem:[%s756 + $0x8] sm:$0xf]
        %v759 = vld [vmem:[%s756 + $0x10] sm:$0xf]
        %v760 = vld [vmem:[%s756 + $0x18] sm:$0xf]
        %v761 = vld [vmem:[%s756 + $0x20] sm:$0xf]
        %v762 = vld [vmem:[%s756 + $0x28] sm:$0xf]
        %v763 = vld [vmem:[%s756 + $0x30] sm:$0xf]
        %v764 = vld [vmem:[%s756 + $0x38] sm:$0xf]
        %v765 = vld [vmem:[%s756 + $0x4] sm:$0x1]
        %v766 = vld [vmem:[%s756 + $0xc] sm:$0x1]
        %v767 = vld [vmem:[%s756 + $0x14] sm:$0x1]
        %v768 = vld [vmem:[%s756 + $0x1c] sm:$0x1]
        %v769 = vld [vmem:[%s756 + $0x24] sm:$0x1]
        %v770 = vld [vmem:[%s756 + $0x2c] sm:$0x1]
        %v771 = vld [vmem:[%s756 + $0x34] sm:$0x1]
        %v772 = vld [vmem:[%s756 + $0x3c] sm:$0x1]
        %v773 = vld [vmem:[%s756] sm:$0xe]
        %v774 = vld [vmem:[%s756 + $0x8] sm:$0xe]
        %v775 = vld [vmem:[%s756 + $0x10] sm:$0xe]
        %v776 = vld [vmem:[%s756 + $0x18] sm:$0xe]
        %v777 = vld [vmem:[%s756 + $0x20] sm:$0xe]
        %v778 = vld [vmem:[%s756 + $0x28] sm:$0xe]
        %v779 = vld [vmem:[%s756 + $0x30] sm:$0xe]
        %v780 = vld [vmem:[%s756 + $0x38] sm:$0xe]
        %s781 = scalar_lea.vmem %s572, 16
        %v782 = vld [vmem:[%s781] sm:$0xf]
        %v783 = vld [vmem:[%s781 + $0x8] sm:$0xf]
        %v784 = vld [vmem:[%s781 + $0x10] sm:$0xf]
        %v785 = vld [vmem:[%s781 + $0x18] sm:$0xf]
        %v786 = vld [vmem:[%s781 + $0x20] sm:$0xf]
        %v787 = vld [vmem:[%s781 + $0x28] sm:$0xf]
        %v788 = vld [vmem:[%s781 + $0x30] sm:$0xf]
        %v789 = vld [vmem:[%s781 + $0x38] sm:$0xf]
        %v790 = vld [vmem:[%s781 + $0x4] sm:$0x1]
        %v791 = vld [vmem:[%s781 + $0xc] sm:$0x1]
        %v792 = vld [vmem:[%s781 + $0x14] sm:$0x1]
        %v793 = vld [vmem:[%s781 + $0x1c] sm:$0x1]
        %v794 = vld [vmem:[%s781 + $0x24] sm:$0x1]
        %v795 = vld [vmem:[%s781 + $0x2c] sm:$0x1]
        %v796 = vld [vmem:[%s781 + $0x34] sm:$0x1]
        %v797 = vld [vmem:[%s781 + $0x3c] sm:$0x1]
        %v798 = vld [vmem:[%s781] sm:$0xe]
        %v799 = vld [vmem:[%s781 + $0x8] sm:$0xe]
        %v800 = vld [vmem:[%s781 + $0x10] sm:$0xe]
        %v801 = vld [vmem:[%s781 + $0x18] sm:$0xe]
        %v802 = vld [vmem:[%s781 + $0x20] sm:$0xe]
        %v803 = vld [vmem:[%s781 + $0x28] sm:$0xe]
        %v804 = vld [vmem:[%s781 + $0x30] sm:$0xe]
        %v805 = vld [vmem:[%s781 + $0x38] sm:$0xe]
        %v822 = vunpack.c.l.b16 %v584
        %v823 = vunpack.c.l.b16 %v592
        %v824 = vunpack.c.l.b16 %v585
        %v825 = vunpack.c.l.b16 %v593
        %v826 = vunpack.c.l.b16 %v586
        %v827 = vunpack.c.l.b16 %v594
        %v828 = vunpack.c.l.b16 %v587
        %v829 = vunpack.c.l.b16 %v595
        %v830 = vunpack.c.l.b16 %v588
        %v831 = vunpack.c.l.b16 %v596
        %v832 = vunpack.c.l.b16 %v589
        %v833 = vunpack.c.l.b16 %v597
        %v834 = vunpack.c.l.b16 %v590
        %v835 = vunpack.c.l.b16 %v598
        %v836 = vunpack.c.l.b16 %v591
        %v837 = vunpack.c.l.b16 %v599
        %v838 = vpack.c.b16 %v823, %v822
        %v839 = vpack.c.b16 %v825, %v824
        %v840 = vpack.c.b16 %v827, %v826
        %v841 = vpack.c.b16 %v829, %v828
        %v842 = vpack.c.b16 %v831, %v830
        %v843 = vpack.c.b16 %v833, %v832
        %v844 = vpack.c.b16 %v835, %v834
        %v845 = vpack.c.b16 %v837, %v836
        %v847 = vshrl.u32 %v838, 16
        %v849 = vshll.u32 %v838, 16
        %v851 = vrot.slane %v849, 1
        %v852 = vor.u32 %v847, %v851
        %v854 = vshrl.u32 %v839, 16
        %v856 = vshll.u32 %v839, 16
        %v858 = vrot.slane %v856, 1
        %v859 = vor.u32 %v854, %v858
        %v861 = vshrl.u32 %v840, 16
        %v863 = vshll.u32 %v840, 16
        %v865 = vrot.slane %v863, 1
        %v866 = vor.u32 %v861, %v865
        %v868 = vshrl.u32 %v841, 16
        %v870 = vshll.u32 %v841, 16
        %v872 = vrot.slane %v870, 1
        %v873 = vor.u32 %v868, %v872
        %v875 = vshrl.u32 %v842, 16
        %v877 = vshll.u32 %v842, 16
        %v879 = vrot.slane %v877, 1
        %v880 = vor.u32 %v875, %v879
        %v882 = vshrl.u32 %v843, 16
        %v884 = vshll.u32 %v843, 16
        %v886 = vrot.slane %v884, 1
        %v887 = vor.u32 %v882, %v886
        %v889 = vshrl.u32 %v844, 16
        %v891 = vshll.u32 %v844, 16
        %v893 = vrot.slane %v891, 1
        %v894 = vor.u32 %v889, %v893
        %v896 = vshrl.u32 %v845, 16
        %v898 = vshll.u32 %v845, 16
        %v900 = vrot.slane %v898, 1
        %v901 = vor.u32 %v896, %v900
        %902 = vrot.lane.b32.xlu0 %v852, 32
        %v903 = vpop.permute.xlu0 %902
        %904 = vrot.lane.b32.xlu0 %v859, 32
        %v905 = vpop.permute.xlu0 %904
        %906 = vrot.lane.b32.xlu0 %v866, 32
        %v907 = vpop.permute.xlu0 %906
        %908 = vrot.lane.b32.xlu0 %v873, 32
        %v909 = vpop.permute.xlu0 %908
        %910 = vrot.lane.b32.xlu0 %v880, 32
        %v911 = vpop.permute.xlu0 %910
        %912 = vrot.lane.b32.xlu0 %v887, 32
        %v913 = vpop.permute.xlu0 %912
        %914 = vrot.lane.b32.xlu0 %v894, 32
        %v915 = vpop.permute.xlu0 %914
        %916 = vrot.lane.b32.xlu0 %v901, 32
        %v917 = vpop.permute.xlu0 %916
        %v926 = vunpack.c.l.b16 %v600
        %v927 = vunpack.c.l.b16 %v601
        %v928 = vunpack.c.l.b16 %v602
        %v929 = vunpack.c.l.b16 %v603
        %v930 = vunpack.c.l.b16 %v604
        %v931 = vunpack.c.l.b16 %v605
        %v932 = vunpack.c.l.b16 %v606
        %v933 = vunpack.c.l.b16 %v607
        %v934 = vpack.c.b16 %v823, %v926
        %v935 = vpack.c.b16 %v825, %v927
        %v936 = vpack.c.b16 %v827, %v928
        %v937 = vpack.c.b16 %v829, %v929
        %v938 = vpack.c.b16 %v831, %v930
        %v939 = vpack.c.b16 %v833, %v931
        %v940 = vpack.c.b16 %v835, %v932
        %v941 = vpack.c.b16 %v837, %v933
        %v942 = vrot.slane %v934, 1
        %v943 = vrot.slane %v935, 1
        %v944 = vrot.slane %v936, 1
        %v945 = vrot.slane %v937, 1
        %v946 = vrot.slane %v938, 1
        %v947 = vrot.slane %v939, 1
        %v948 = vrot.slane %v940, 1
        %v949 = vrot.slane %v941, 1
        %950 = vrot.lane.b32.xlu0 %v942, 64
        %v951 = vpop.permute.xlu0 %950
        %952 = vrot.lane.b32.xlu0 %v943, 64
        %v953 = vpop.permute.xlu0 %952
        %954 = vrot.lane.b32.xlu0 %v944, 64
        %v955 = vpop.permute.xlu0 %954
        %956 = vrot.lane.b32.xlu0 %v945, 64
        %v957 = vpop.permute.xlu0 %956
        %958 = vrot.lane.b32.xlu0 %v946, 64
        %v959 = vpop.permute.xlu0 %958
        %960 = vrot.lane.b32.xlu0 %v947, 64
        %v961 = vpop.permute.xlu0 %960
        %962 = vrot.lane.b32.xlu0 %v948, 64
        %v963 = vpop.permute.xlu0 %962
        %964 = vrot.lane.b32.xlu0 %v949, 64
        %v965 = vpop.permute.xlu0 %964
        %v974 = vunpack.c.l.b16 %v609
        %v975 = vunpack.c.l.b16 %v610
        %v976 = vunpack.c.l.b16 %v611
        %v977 = vunpack.c.l.b16 %v612
        %v978 = vunpack.c.l.b16 %v613
        %v979 = vunpack.c.l.b16 %v614
        %v980 = vunpack.c.l.b16 %v615
        %v981 = vunpack.c.l.b16 %v616
        %v982 = vpack.c.b16 %v974, %v974
        %v983 = vpack.c.b16 %v975, %v975
        %v984 = vpack.c.b16 %v976, %v976
        %v985 = vpack.c.b16 %v977, %v977
        %v986 = vpack.c.b16 %v978, %v978
        %v987 = vpack.c.b16 %v979, %v979
        %v988 = vpack.c.b16 %v980, %v980
        %v989 = vpack.c.b16 %v981, %v981
        %990 = vrot.lane.b32.xlu0 %v982, 96
        %v991 = vpop.permute.xlu0 %990
        %992 = vrot.lane.b32.xlu0 %v983, 96
        %v993 = vpop.permute.xlu0 %992
        %994 = vrot.lane.b32.xlu0 %v984, 96
        %v995 = vpop.permute.xlu0 %994
        %996 = vrot.lane.b32.xlu0 %v985, 96
        %v997 = vpop.permute.xlu0 %996
        %998 = vrot.lane.b32.xlu0 %v986, 96
        %v999 = vpop.permute.xlu0 %998
        %1000 = vrot.lane.b32.xlu0 %v987, 96
        %v1001 = vpop.permute.xlu0 %1000
        %1002 = vrot.lane.b32.xlu0 %v988, 96
        %v1003 = vpop.permute.xlu0 %1002
        %1004 = vrot.lane.b32.xlu0 %v989, 96
        %v1005 = vpop.permute.xlu0 %1004
        %v1014 = vunpack.c.l.b16 %v617
        %v1015 = vunpack.c.l.b16 %v618
        %v1016 = vunpack.c.l.b16 %v619
        %v1017 = vunpack.c.l.b16 %v620
        %v1018 = vunpack.c.l.b16 %v621
        %v1019 = vunpack.c.l.b16 %v622
        %v1020 = vunpack.c.l.b16 %v623
        %v1021 = vunpack.c.l.b16 %v624
        %v1022 = vpack.c.b16 %v1014, %v974
        %v1023 = vpack.c.b16 %v1015, %v975
        %v1024 = vpack.c.b16 %v1016, %v976
        %v1025 = vpack.c.b16 %v1017, %v977
        %v1026 = vpack.c.b16 %v1018, %v978
        %v1027 = vpack.c.b16 %v1019, %v979
        %v1028 = vpack.c.b16 %v1020, %v980
        %v1029 = vpack.c.b16 %v1021, %v981
        %v1031 = vshrl.u32 %v1022, 16
        %v1033 = vshll.u32 %v1022, 16
        %v1035 = vrot.slane %v1033, 1
        %v1036 = vor.u32 %v1031, %v1035
        %v1038 = vshrl.u32 %v1023, 16
        %v1040 = vshll.u32 %v1023, 16
        %v1042 = vrot.slane %v1040, 1
        %v1043 = vor.u32 %v1038, %v1042
        %v1045 = vshrl.u32 %v1024, 16
        %v1047 = vshll.u32 %v1024, 16
        %v1049 = vrot.slane %v1047, 1
        %v1050 = vor.u32 %v1045, %v1049
        %v1052 = vshrl.u32 %v1025, 16
        %v1054 = vshll.u32 %v1025, 16
        %v1056 = vrot.slane %v1054, 1
        %v1057 = vor.u32 %v1052, %v1056
        %v1059 = vshrl.u32 %v1026, 16
        %v1061 = vshll.u32 %v1026, 16
        %v1063 = vrot.slane %v1061, 1
        %v1064 = vor.u32 %v1059, %v1063
        %v1066 = vshrl.u32 %v1027, 16
        %v1068 = vshll.u32 %v1027, 16
        %v1070 = vrot.slane %v1068, 1
        %v1071 = vor.u32 %v1066, %v1070
        %v1073 = vshrl.u32 %v1028, 16
        %v1075 = vshll.u32 %v1028, 16
        %v1077 = vrot.slane %v1075, 1
        %v1078 = vor.u32 %v1073, %v1077
        %v1080 = vshrl.u32 %v1029, 16
        %v1082 = vshll.u32 %v1029, 16
        %v1084 = vrot.slane %v1082, 1
        %v1085 = vor.u32 %v1080, %v1084
        %v1094 = vunpack.c.l.b16 %v625
        %v1095 = vunpack.c.l.b16 %v626
        %v1096 = vunpack.c.l.b16 %v627
        %v1097 = vunpack.c.l.b16 %v628
        %v1098 = vunpack.c.l.b16 %v629
        %v1099 = vunpack.c.l.b16 %v630
        %v1100 = vunpack.c.l.b16 %v631
        %v1101 = vunpack.c.l.b16 %v632
        %v1102 = vpack.c.b16 %v1014, %v1094
        %v1103 = vpack.c.b16 %v1015, %v1095
        %v1104 = vpack.c.b16 %v1016, %v1096
        %v1105 = vpack.c.b16 %v1017, %v1097
        %v1106 = vpack.c.b16 %v1018, %v1098
        %v1107 = vpack.c.b16 %v1019, %v1099
        %v1108 = vpack.c.b16 %v1020, %v1100
        %v1109 = vpack.c.b16 %v1021, %v1101
        %v1110 = vrot.slane %v1102, 1
        %v1111 = vrot.slane %v1103, 1
        %v1112 = vrot.slane %v1104, 1
        %v1113 = vrot.slane %v1105, 1
        %v1114 = vrot.slane %v1106, 1
        %v1115 = vrot.slane %v1107, 1
        %v1116 = vrot.slane %v1108, 1
        %v1117 = vrot.slane %v1109, 1
        %1118 = vrot.lane.b32.xlu0 %v1110, 32
        %v1119 = vpop.permute.xlu0 %1118
        %1120 = vrot.lane.b32.xlu0 %v1111, 32
        %v1121 = vpop.permute.xlu0 %1120
        %1122 = vrot.lane.b32.xlu0 %v1112, 32
        %v1123 = vpop.permute.xlu0 %1122
        %1124 = vrot.lane.b32.xlu0 %v1113, 32
        %v1125 = vpop.permute.xlu0 %1124
        %1126 = vrot.lane.b32.xlu0 %v1114, 32
        %v1127 = vpop.permute.xlu0 %1126
        %1128 = vrot.lane.b32.xlu0 %v1115, 32
        %v1129 = vpop.permute.xlu0 %1128
        %1130 = vrot.lane.b32.xlu0 %v1116, 32
        %v1131 = vpop.permute.xlu0 %1130
        %1132 = vrot.lane.b32.xlu0 %v1117, 32
        %v1133 = vpop.permute.xlu0 %1132
        %v1142 = vunpack.c.l.b16 %v634
        %v1143 = vunpack.c.l.b16 %v635
        %v1144 = vunpack.c.l.b16 %v636
        %v1145 = vunpack.c.l.b16 %v637
        %v1146 = vunpack.c.l.b16 %v638
        %v1147 = vunpack.c.l.b16 %v639
        %v1148 = vunpack.c.l.b16 %v640
        %v1149 = vunpack.c.l.b16 %v641
        %v1150 = vpack.c.b16 %v1142, %v1142
        %v1151 = vpack.c.b16 %v1143, %v1143
        %v1152 = vpack.c.b16 %v1144, %v1144
        %v1153 = vpack.c.b16 %v1145, %v1145
        %v1154 = vpack.c.b16 %v1146, %v1146
        %v1155 = vpack.c.b16 %v1147, %v1147
        %v1156 = vpack.c.b16 %v1148, %v1148
        %v1157 = vpack.c.b16 %v1149, %v1149
        %1158 = vrot.lane.b32.xlu0 %v1150, 64
        %v1159 = vpop.permute.xlu0 %1158
        %1160 = vrot.lane.b32.xlu0 %v1151, 64
        %v1161 = vpop.permute.xlu0 %1160
        %1162 = vrot.lane.b32.xlu0 %v1152, 64
        %v1163 = vpop.permute.xlu0 %1162
        %1164 = vrot.lane.b32.xlu0 %v1153, 64
        %v1165 = vpop.permute.xlu0 %1164
        %1166 = vrot.lane.b32.xlu0 %v1154, 64
        %v1167 = vpop.permute.xlu0 %1166
        %1168 = vrot.lane.b32.xlu0 %v1155, 64
        %v1169 = vpop.permute.xlu0 %1168
        %1170 = vrot.lane.b32.xlu0 %v1156, 64
        %v1171 = vpop.permute.xlu0 %1170
        %1172 = vrot.lane.b32.xlu0 %v1157, 64
        %v1173 = vpop.permute.xlu0 %1172
        %v1182 = vunpack.c.l.b16 %v642
        %v1183 = vunpack.c.l.b16 %v643
        %v1184 = vunpack.c.l.b16 %v644
        %v1185 = vunpack.c.l.b16 %v645
        %v1186 = vunpack.c.l.b16 %v646
        %v1187 = vunpack.c.l.b16 %v647
        %v1188 = vunpack.c.l.b16 %v648
        %v1189 = vunpack.c.l.b16 %v649
        %v1190 = vpack.c.b16 %v1182, %v1142
        %v1191 = vpack.c.b16 %v1183, %v1143
        %v1192 = vpack.c.b16 %v1184, %v1144
        %v1193 = vpack.c.b16 %v1185, %v1145
        %v1194 = vpack.c.b16 %v1186, %v1146
        %v1195 = vpack.c.b16 %v1187, %v1147
        %v1196 = vpack.c.b16 %v1188, %v1148
        %v1197 = vpack.c.b16 %v1189, %v1149
        %v1199 = vshrl.u32 %v1190, 16
        %v1201 = vshll.u32 %v1190, 16
        %v1203 = vrot.slane %v1201, 1
        %v1204 = vor.u32 %v1199, %v1203
        %v1206 = vshrl.u32 %v1191, 16
        %v1208 = vshll.u32 %v1191, 16
        %v1210 = vrot.slane %v1208, 1
        %v1211 = vor.u32 %v1206, %v1210
        %v1213 = vshrl.u32 %v1192, 16
        %v1215 = vshll.u32 %v1192, 16
        %v1217 = vrot.slane %v1215, 1
        %v1218 = vor.u32 %v1213, %v1217
        %v1220 = vshrl.u32 %v1193, 16
        %v1222 = vshll.u32 %v1193, 16
        %v1224 = vrot.slane %v1222, 1
        %v1225 = vor.u32 %v1220, %v1224
        %v1227 = vshrl.u32 %v1194, 16
        %v1229 = vshll.u32 %v1194, 16
        %v1231 = vrot.slane %v1229, 1
        %v1232 = vor.u32 %v1227, %v1231
        %v1234 = vshrl.u32 %v1195, 16
        %v1236 = vshll.u32 %v1195, 16
        %v1238 = vrot.slane %v1236, 1
        %v1239 = vor.u32 %v1234, %v1238
        %v1241 = vshrl.u32 %v1196, 16
        %v1243 = vshll.u32 %v1196, 16
        %v1245 = vrot.slane %v1243, 1
        %v1246 = vor.u32 %v1241, %v1245
        %v1248 = vshrl.u32 %v1197, 16
        %v1250 = vshll.u32 %v1197, 16
        %v1252 = vrot.slane %v1250, 1
        %v1253 = vor.u32 %v1248, %v1252
        %1254 = vrot.lane.b32.xlu0 %v1204, 96
        %v1255 = vpop.permute.xlu0 %1254
        %1256 = vrot.lane.b32.xlu0 %v1211, 96
        %v1257 = vpop.permute.xlu0 %1256
        %1258 = vrot.lane.b32.xlu0 %v1218, 96
        %v1259 = vpop.permute.xlu0 %1258
        %1260 = vrot.lane.b32.xlu0 %v1225, 96
        %v1261 = vpop.permute.xlu0 %1260
        %1262 = vrot.lane.b32.xlu0 %v1232, 96
        %v1263 = vpop.permute.xlu0 %1262
        %1264 = vrot.lane.b32.xlu0 %v1239, 96
        %v1265 = vpop.permute.xlu0 %1264
        %1266 = vrot.lane.b32.xlu0 %v1246, 96
        %v1267 = vpop.permute.xlu0 %1266
        %1268 = vrot.lane.b32.xlu0 %v1253, 96
        %v1269 = vpop.permute.xlu0 %1268
        %v1278 = vunpack.c.l.b16 %v650
        %v1279 = vunpack.c.l.b16 %v651
        %v1280 = vunpack.c.l.b16 %v652
        %v1281 = vunpack.c.l.b16 %v653
        %v1282 = vunpack.c.l.b16 %v654
        %v1283 = vunpack.c.l.b16 %v655
        %v1284 = vunpack.c.l.b16 %v656
        %v1285 = vunpack.c.l.b16 %v657
        %v1286 = vpack.c.b16 %v1182, %v1278
        %v1287 = vpack.c.b16 %v1183, %v1279
        %v1288 = vpack.c.b16 %v1184, %v1280
        %v1289 = vpack.c.b16 %v1185, %v1281
        %v1290 = vpack.c.b16 %v1186, %v1282
        %v1291 = vpack.c.b16 %v1187, %v1283
        %v1292 = vpack.c.b16 %v1188, %v1284
        %v1293 = vpack.c.b16 %v1189, %v1285
        %v1294 = vrot.slane %v1286, 1
        %v1295 = vrot.slane %v1287, 1
        %v1296 = vrot.slane %v1288, 1
        %v1297 = vrot.slane %v1289, 1
        %v1298 = vrot.slane %v1290, 1
        %v1299 = vrot.slane %v1291, 1
        %v1300 = vrot.slane %v1292, 1
        %v1301 = vrot.slane %v1293, 1
        %v1310 = vunpack.c.l.b16 %v658
        %v1311 = vunpack.c.l.b16 %v659
        %v1312 = vunpack.c.l.b16 %v660
        %v1313 = vunpack.c.l.b16 %v661
        %v1314 = vunpack.c.l.b16 %v662
        %v1315 = vunpack.c.l.b16 %v663
        %v1316 = vunpack.c.l.b16 %v664
        %v1317 = vunpack.c.l.b16 %v665
        %v1318 = vpack.c.b16 %v1310, %v1310
        %v1319 = vpack.c.b16 %v1311, %v1311
        %v1320 = vpack.c.b16 %v1312, %v1312
        %v1321 = vpack.c.b16 %v1313, %v1313
        %v1322 = vpack.c.b16 %v1314, %v1314
        %v1323 = vpack.c.b16 %v1315, %v1315
        %v1324 = vpack.c.b16 %v1316, %v1316
        %v1325 = vpack.c.b16 %v1317, %v1317
        %1326 = vrot.lane.b32.xlu0 %v1318, 32
        %v1327 = vpop.permute.xlu0 %1326
        %1328 = vrot.lane.b32.xlu0 %v1319, 32
        %v1329 = vpop.permute.xlu0 %1328
        %1330 = vrot.lane.b32.xlu0 %v1320, 32
        %v1331 = vpop.permute.xlu0 %1330
        %1332 = vrot.lane.b32.xlu0 %v1321, 32
        %v1333 = vpop.permute.xlu0 %1332
        %1334 = vrot.lane.b32.xlu0 %v1322, 32
        %v1335 = vpop.permute.xlu0 %1334
        %1336 = vrot.lane.b32.xlu0 %v1323, 32
        %v1337 = vpop.permute.xlu0 %1336
        %1338 = vrot.lane.b32.xlu0 %v1324, 32
        %v1339 = vpop.permute.xlu0 %1338
        %1340 = vrot.lane.b32.xlu0 %v1325, 32
        %v1341 = vpop.permute.xlu0 %1340
        %v1350 = vunpack.c.l.b16 %v666
        %v1351 = vunpack.c.l.b16 %v667
        %v1352 = vunpack.c.l.b16 %v668
        %v1353 = vunpack.c.l.b16 %v669
        %v1354 = vunpack.c.l.b16 %v670
        %v1355 = vunpack.c.l.b16 %v671
        %v1356 = vunpack.c.l.b16 %v672
        %v1357 = vunpack.c.l.b16 %v673
        %v1358 = vpack.c.b16 %v1350, %v1310
        %v1359 = vpack.c.b16 %v1351, %v1311
        %v1360 = vpack.c.b16 %v1352, %v1312
        %v1361 = vpack.c.b16 %v1353, %v1313
        %v1362 = vpack.c.b16 %v1354, %v1314
        %v1363 = vpack.c.b16 %v1355, %v1315
        %v1364 = vpack.c.b16 %v1356, %v1316
        %v1365 = vpack.c.b16 %v1357, %v1317
        %v1367 = vshrl.u32 %v1358, 16
        %v1369 = vshll.u32 %v1358, 16
        %v1371 = vrot.slane %v1369, 1
        %v1372 = vor.u32 %v1367, %v1371
        %v1374 = vshrl.u32 %v1359, 16
        %v1376 = vshll.u32 %v1359, 16
        %v1378 = vrot.slane %v1376, 1
        %v1379 = vor.u32 %v1374, %v1378
        %v1381 = vshrl.u32 %v1360, 16
        %v1383 = vshll.u32 %v1360, 16
        %v1385 = vrot.slane %v1383, 1
        %v1386 = vor.u32 %v1381, %v1385
        %v1388 = vshrl.u32 %v1361, 16
        %v1390 = vshll.u32 %v1361, 16
        %v1392 = vrot.slane %v1390, 1
        %v1393 = vor.u32 %v1388, %v1392
        %v1395 = vshrl.u32 %v1362, 16
        %v1397 = vshll.u32 %v1362, 16
        %v1399 = vrot.slane %v1397, 1
        %v1400 = vor.u32 %v1395, %v1399
        %v1402 = vshrl.u32 %v1363, 16
        %v1404 = vshll.u32 %v1363, 16
        %v1406 = vrot.slane %v1404, 1
        %v1407 = vor.u32 %v1402, %v1406
        %v1409 = vshrl.u32 %v1364, 16
        %v1411 = vshll.u32 %v1364, 16
        %v1413 = vrot.slane %v1411, 1
        %v1414 = vor.u32 %v1409, %v1413
        %v1416 = vshrl.u32 %v1365, 16
        %v1418 = vshll.u32 %v1365, 16
        %v1420 = vrot.slane %v1418, 1
        %v1421 = vor.u32 %v1416, %v1420
        %1422 = vrot.lane.b32.xlu0 %v1372, 64
        %v1423 = vpop.permute.xlu0 %1422
        %1424 = vrot.lane.b32.xlu0 %v1379, 64
        %v1425 = vpop.permute.xlu0 %1424
        %1426 = vrot.lane.b32.xlu0 %v1386, 64
        %v1427 = vpop.permute.xlu0 %1426
        %1428 = vrot.lane.b32.xlu0 %v1393, 64
        %v1429 = vpop.permute.xlu0 %1428
        %1430 = vrot.lane.b32.xlu0 %v1400, 64
        %v1431 = vpop.permute.xlu0 %1430
        %1432 = vrot.lane.b32.xlu0 %v1407, 64
        %v1433 = vpop.permute.xlu0 %1432
        %1434 = vrot.lane.b32.xlu0 %v1414, 64
        %v1435 = vpop.permute.xlu0 %1434
        %1436 = vrot.lane.b32.xlu0 %v1421, 64
        %v1437 = vpop.permute.xlu0 %1436
        %v1446 = vunpack.c.l.b16 %v674
        %v1447 = vunpack.c.l.b16 %v675
        %v1448 = vunpack.c.l.b16 %v676
        %v1449 = vunpack.c.l.b16 %v677
        %v1450 = vunpack.c.l.b16 %v678
        %v1451 = vunpack.c.l.b16 %v679
        %v1452 = vunpack.c.l.b16 %v680
        %v1453 = vunpack.c.l.b16 %v681
        %v1454 = vpack.c.b16 %v1350, %v1446
        %v1455 = vpack.c.b16 %v1351, %v1447
        %v1456 = vpack.c.b16 %v1352, %v1448
        %v1457 = vpack.c.b16 %v1353, %v1449
        %v1458 = vpack.c.b16 %v1354, %v1450
        %v1459 = vpack.c.b16 %v1355, %v1451
        %v1460 = vpack.c.b16 %v1356, %v1452
        %v1461 = vpack.c.b16 %v1357, %v1453
        %v1462 = vrot.slane %v1454, 1
        %v1463 = vrot.slane %v1455, 1
        %v1464 = vrot.slane %v1456, 1
        %v1465 = vrot.slane %v1457, 1
        %v1466 = vrot.slane %v1458, 1
        %v1467 = vrot.slane %v1459, 1
        %v1468 = vrot.slane %v1460, 1
        %v1469 = vrot.slane %v1461, 1
        %1470 = vrot.lane.b32.xlu0 %v1462, 96
        %v1471 = vpop.permute.xlu0 %1470
        %1472 = vrot.lane.b32.xlu0 %v1463, 96
        %v1473 = vpop.permute.xlu0 %1472
        %1474 = vrot.lane.b32.xlu0 %v1464, 96
        %v1475 = vpop.permute.xlu0 %1474
        %1476 = vrot.lane.b32.xlu0 %v1465, 96
        %v1477 = vpop.permute.xlu0 %1476
        %1478 = vrot.lane.b32.xlu0 %v1466, 96
        %v1479 = vpop.permute.xlu0 %1478
        %1480 = vrot.lane.b32.xlu0 %v1467, 96
        %v1481 = vpop.permute.xlu0 %1480
        %1482 = vrot.lane.b32.xlu0 %v1468, 96
        %v1483 = vpop.permute.xlu0 %1482
        %1484 = vrot.lane.b32.xlu0 %v1469, 96
        %v1485 = vpop.permute.xlu0 %1484
        %v1502 = vunpack.c.l.b16 %v683
        %v1503 = vunpack.c.l.b16 %v691
        %v1504 = vunpack.c.l.b16 %v684
        %v1505 = vunpack.c.l.b16 %v692
        %v1506 = vunpack.c.l.b16 %v685
        %v1507 = vunpack.c.l.b16 %v693
        %v1508 = vunpack.c.l.b16 %v686
        %v1509 = vunpack.c.l.b16 %v694
        %v1510 = vunpack.c.l.b16 %v687
        %v1511 = vunpack.c.l.b16 %v695
        %v1512 = vunpack.c.l.b16 %v688
        %v1513 = vunpack.c.l.b16 %v696
        %v1514 = vunpack.c.l.b16 %v689
        %v1515 = vunpack.c.l.b16 %v697
        %v1516 = vunpack.c.l.b16 %v690
        %v1517 = vunpack.c.l.b16 %v698
        %v1518 = vpack.c.b16 %v1503, %v1502
        %v1519 = vpack.c.b16 %v1505, %v1504
        %v1520 = vpack.c.b16 %v1507, %v1506
        %v1521 = vpack.c.b16 %v1509, %v1508
        %v1522 = vpack.c.b16 %v1511, %v1510
        %v1523 = vpack.c.b16 %v1513, %v1512
        %v1524 = vpack.c.b16 %v1515, %v1514
        %v1525 = vpack.c.b16 %v1517, %v1516
        %v1527 = vshrl.u32 %v1518, 16
        %v1529 = vshll.u32 %v1518, 16
        %v1531 = vrot.slane %v1529, 1
        %v1532 = vor.u32 %v1527, %v1531
        %v1534 = vshrl.u32 %v1519, 16
        %v1536 = vshll.u32 %v1519, 16
        %v1538 = vrot.slane %v1536, 1
        %v1539 = vor.u32 %v1534, %v1538
        %v1541 = vshrl.u32 %v1520, 16
        %v1543 = vshll.u32 %v1520, 16
        %v1545 = vrot.slane %v1543, 1
        %v1546 = vor.u32 %v1541, %v1545
        %v1548 = vshrl.u32 %v1521, 16
        %v1550 = vshll.u32 %v1521, 16
        %v1552 = vrot.slane %v1550, 1
        %v1553 = vor.u32 %v1548, %v1552
        %v1555 = vshrl.u32 %v1522, 16
        %v1557 = vshll.u32 %v1522, 16
        %v1559 = vrot.slane %v1557, 1
        %v1560 = vor.u32 %v1555, %v1559
        %v1562 = vshrl.u32 %v1523, 16
        %v1564 = vshll.u32 %v1523, 16
        %v1566 = vrot.slane %v1564, 1
        %v1567 = vor.u32 %v1562, %v1566
        %v1569 = vshrl.u32 %v1524, 16
        %v1571 = vshll.u32 %v1524, 16
        %v1573 = vrot.slane %v1571, 1
        %v1574 = vor.u32 %v1569, %v1573
        %v1576 = vshrl.u32 %v1525, 16
        %v1578 = vshll.u32 %v1525, 16
        %v1580 = vrot.slane %v1578, 1
        %v1581 = vor.u32 %v1576, %v1580
        %1582 = vrot.lane.b32.xlu0 %v1532, 32
        %v1583 = vpop.permute.xlu0 %1582
        %1584 = vrot.lane.b32.xlu0 %v1539, 32
        %v1585 = vpop.permute.xlu0 %1584
        %1586 = vrot.lane.b32.xlu0 %v1546, 32
        %v1587 = vpop.permute.xlu0 %1586
        %1588 = vrot.lane.b32.xlu0 %v1553, 32
        %v1589 = vpop.permute.xlu0 %1588
        %1590 = vrot.lane.b32.xlu0 %v1560, 32
        %v1591 = vpop.permute.xlu0 %1590
        %1592 = vrot.lane.b32.xlu0 %v1567, 32
        %v1593 = vpop.permute.xlu0 %1592
        %1594 = vrot.lane.b32.xlu0 %v1574, 32
        %v1595 = vpop.permute.xlu0 %1594
        %1596 = vrot.lane.b32.xlu0 %v1581, 32
        %v1597 = vpop.permute.xlu0 %1596
        %v1606 = vunpack.c.l.b16 %v699
        %v1607 = vunpack.c.l.b16 %v700
        %v1608 = vunpack.c.l.b16 %v701
        %v1609 = vunpack.c.l.b16 %v702
        %v1610 = vunpack.c.l.b16 %v703
        %v1611 = vunpack.c.l.b16 %v704
        %v1612 = vunpack.c.l.b16 %v705
        %v1613 = vunpack.c.l.b16 %v706
        %v1614 = vpack.c.b16 %v1503, %v1606
        %v1615 = vpack.c.b16 %v1505, %v1607
        %v1616 = vpack.c.b16 %v1507, %v1608
        %v1617 = vpack.c.b16 %v1509, %v1609
        %v1618 = vpack.c.b16 %v1511, %v1610
        %v1619 = vpack.c.b16 %v1513, %v1611
        %v1620 = vpack.c.b16 %v1515, %v1612
        %v1621 = vpack.c.b16 %v1517, %v1613
        %v1622 = vrot.slane %v1614, 1
        %v1623 = vrot.slane %v1615, 1
        %v1624 = vrot.slane %v1616, 1
        %v1625 = vrot.slane %v1617, 1
        %v1626 = vrot.slane %v1618, 1
        %v1627 = vrot.slane %v1619, 1
        %v1628 = vrot.slane %v1620, 1
        %v1629 = vrot.slane %v1621, 1
        %1630 = vrot.lane.b32.xlu0 %v1622, 64
        %v1631 = vpop.permute.xlu0 %1630
        %1632 = vrot.lane.b32.xlu0 %v1623, 64
        %v1633 = vpop.permute.xlu0 %1632
        %1634 = vrot.lane.b32.xlu0 %v1624, 64
        %v1635 = vpop.permute.xlu0 %1634
        %1636 = vrot.lane.b32.xlu0 %v1625, 64
        %v1637 = vpop.permute.xlu0 %1636
        %1638 = vrot.lane.b32.xlu0 %v1626, 64
        %v1639 = vpop.permute.xlu0 %1638
        %1640 = vrot.lane.b32.xlu0 %v1627, 64
        %v1641 = vpop.permute.xlu0 %1640
        %1642 = vrot.lane.b32.xlu0 %v1628, 64
        %v1643 = vpop.permute.xlu0 %1642
        %1644 = vrot.lane.b32.xlu0 %v1629, 64
        %v1645 = vpop.permute.xlu0 %1644
        %v1654 = vunpack.c.l.b16 %v708
        %v1655 = vunpack.c.l.b16 %v709
        %v1656 = vunpack.c.l.b16 %v710
        %v1657 = vunpack.c.l.b16 %v711
        %v1658 = vunpack.c.l.b16 %v712
        %v1659 = vunpack.c.l.b16 %v713
        %v1660 = vunpack.c.l.b16 %v714
        %v1661 = vunpack.c.l.b16 %v715
        %v1662 = vpack.c.b16 %v1654, %v1654
        %v1663 = vpack.c.b16 %v1655, %v1655
        %v1664 = vpack.c.b16 %v1656, %v1656
        %v1665 = vpack.c.b16 %v1657, %v1657
        %v1666 = vpack.c.b16 %v1658, %v1658
        %v1667 = vpack.c.b16 %v1659, %v1659
        %v1668 = vpack.c.b16 %v1660, %v1660
        %v1669 = vpack.c.b16 %v1661, %v1661
        %1670 = vrot.lane.b32.xlu0 %v1662, 96
        %v1671 = vpop.permute.xlu0 %1670
        %1672 = vrot.lane.b32.xlu0 %v1663, 96
        %v1673 = vpop.permute.xlu0 %1672
        %1674 = vrot.lane.b32.xlu0 %v1664, 96
        %v1675 = vpop.permute.xlu0 %1674
        %1676 = vrot.lane.b32.xlu0 %v1665, 96
        %v1677 = vpop.permute.xlu0 %1676
        %1678 = vrot.lane.b32.xlu0 %v1666, 96
        %v1679 = vpop.permute.xlu0 %1678
        %1680 = vrot.lane.b32.xlu0 %v1667, 96
        %v1681 = vpop.permute.xlu0 %1680
        %1682 = vrot.lane.b32.xlu0 %v1668, 96
        %v1683 = vpop.permute.xlu0 %1682
        %1684 = vrot.lane.b32.xlu0 %v1669, 96
        %v1685 = vpop.permute.xlu0 %1684
        %vm1686 = vcmask 261120
        %v1689 = vsel %vm1686, %v584, %v903
        %v1692 = vsel %vm1686, %v585, %v905
        %v1695 = vsel %vm1686, %v586, %v907
        %v1698 = vsel %vm1686, %v587, %v909
        %v1701 = vsel %vm1686, %v588, %v911
        %v1704 = vsel %vm1686, %v589, %v913
        %v1707 = vsel %vm1686, %v590, %v915
        %v1710 = vsel %vm1686, %v591, %v917
        %vm1711 = vcmask 523264
        %v1713 = vsel %vm1711, %v1689, %v951
        %v1715 = vsel %vm1711, %v1692, %v953
        %v1717 = vsel %vm1711, %v1695, %v955
        %v1719 = vsel %vm1711, %v1698, %v957
        %v1721 = vsel %vm1711, %v1701, %v959
        %v1723 = vsel %vm1711, %v1704, %v961
        %v1725 = vsel %vm1711, %v1707, %v963
        %v1727 = vsel %vm1711, %v1710, %v965
        %vm1728 = vcmask 785408
        %v1730 = vsel %vm1728, %v1713, %v991
        %v1732 = vsel %vm1728, %v1715, %v993
        %v1734 = vsel %vm1728, %v1717, %v995
        %v1736 = vsel %vm1728, %v1719, %v997
        %v1738 = vsel %vm1728, %v1721, %v999
        %v1740 = vsel %vm1728, %v1723, %v1001
        %v1742 = vsel %vm1728, %v1725, %v1003
        %v1744 = vsel %vm1728, %v1727, %v1005
        %v1747 = vsel %vm1686, %v1036, %v1119
        %v1750 = vsel %vm1686, %v1043, %v1121
        %v1753 = vsel %vm1686, %v1050, %v1123
        %v1756 = vsel %vm1686, %v1057, %v1125
        %v1759 = vsel %vm1686, %v1064, %v1127
        %v1762 = vsel %vm1686, %v1071, %v1129
        %v1765 = vsel %vm1686, %v1078, %v1131
        %v1768 = vsel %vm1686, %v1085, %v1133
        %v1770 = vsel %vm1711, %v1747, %v1159
        %v1772 = vsel %vm1711, %v1750, %v1161
        %v1774 = vsel %vm1711, %v1753, %v1163
        %v1776 = vsel %vm1711, %v1756, %v1165
        %v1778 = vsel %vm1711, %v1759, %v1167
        %v1780 = vsel %vm1711, %v1762, %v1169
        %v1782 = vsel %vm1711, %v1765, %v1171
        %v1784 = vsel %vm1711, %v1768, %v1173
        %v1786 = vsel %vm1728, %v1770, %v1255
        %v1788 = vsel %vm1728, %v1772, %v1257
        %v1790 = vsel %vm1728, %v1774, %v1259
        %v1792 = vsel %vm1728, %v1776, %v1261
        %v1794 = vsel %vm1728, %v1778, %v1263
        %v1796 = vsel %vm1728, %v1780, %v1265
        %v1798 = vsel %vm1728, %v1782, %v1267
        %v1800 = vsel %vm1728, %v1784, %v1269
        %v1803 = vsel %vm1686, %v1294, %v1327
        %v1806 = vsel %vm1686, %v1295, %v1329
        %v1809 = vsel %vm1686, %v1296, %v1331
        %v1812 = vsel %vm1686, %v1297, %v1333
        %v1815 = vsel %vm1686, %v1298, %v1335
        %v1818 = vsel %vm1686, %v1299, %v1337
        %v1821 = vsel %vm1686, %v1300, %v1339
        %v1824 = vsel %vm1686, %v1301, %v1341
        %v1826 = vsel %vm1711, %v1803, %v1423
        %v1828 = vsel %vm1711, %v1806, %v1425
        %v1830 = vsel %vm1711, %v1809, %v1427
        %v1832 = vsel %vm1711, %v1812, %v1429
        %v1834 = vsel %vm1711, %v1815, %v1431
        %v1836 = vsel %vm1711, %v1818, %v1433
        %v1838 = vsel %vm1711, %v1821, %v1435
        %v1840 = vsel %vm1711, %v1824, %v1437
        %v1842 = vsel %vm1728, %v1826, %v1471
        %v1844 = vsel %vm1728, %v1828, %v1473
        %v1846 = vsel %vm1728, %v1830, %v1475
        %v1848 = vsel %vm1728, %v1832, %v1477
        %v1850 = vsel %vm1728, %v1834, %v1479
        %v1852 = vsel %vm1728, %v1836, %v1481
        %v1854 = vsel %vm1728, %v1838, %v1483
        %v1856 = vsel %vm1728, %v1840, %v1485
        %v1859 = vsel %vm1686, %v683, %v1583
        %v1862 = vsel %vm1686, %v684, %v1585
        %v1865 = vsel %vm1686, %v685, %v1587
        %v1868 = vsel %vm1686, %v686, %v1589
        %v1871 = vsel %vm1686, %v687, %v1591
        %v1874 = vsel %vm1686, %v688, %v1593
        %v1877 = vsel %vm1686, %v689, %v1595
        %v1880 = vsel %vm1686, %v690, %v1597
        %v1882 = vsel %vm1711, %v1859, %v1631
        %v1884 = vsel %vm1711, %v1862, %v1633
        %v1886 = vsel %vm1711, %v1865, %v1635
        %v1888 = vsel %vm1711, %v1868, %v1637
        %v1890 = vsel %vm1711, %v1871, %v1639
        %v1892 = vsel %vm1711, %v1874, %v1641
        %v1894 = vsel %vm1711, %v1877, %v1643
        %v1896 = vsel %vm1711, %v1880, %v1645
        %v1898 = vsel %vm1728, %v1882, %v1671
        %v1900 = vsel %vm1728, %v1884, %v1673
        %v1902 = vsel %vm1728, %v1886, %v1675
        %v1904 = vsel %vm1728, %v1888, %v1677
        %v1906 = vsel %vm1728, %v1890, %v1679
        %v1908 = vsel %vm1728, %v1892, %v1681
        %v1910 = vsel %vm1728, %v1894, %v1683
        %v1912 = vsel %vm1728, %v1896, %v1685
        %v1921 = vunpack.c.l.b16 %v716
        %v1922 = vunpack.c.l.b16 %v717
        %v1923 = vunpack.c.l.b16 %v718
        %v1924 = vunpack.c.l.b16 %v719
        %v1925 = vunpack.c.l.b16 %v720
        %v1926 = vunpack.c.l.b16 %v721
        %v1927 = vunpack.c.l.b16 %v722
        %v1928 = vunpack.c.l.b16 %v723
        %v1929 = vpack.c.b16 %v1921, %v1654
        %v1930 = vpack.c.b16 %v1922, %v1655
        %v1931 = vpack.c.b16 %v1923, %v1656
        %v1932 = vpack.c.b16 %v1924, %v1657
        %v1933 = vpack.c.b16 %v1925, %v1658
        %v1934 = vpack.c.b16 %v1926, %v1659
        %v1935 = vpack.c.b16 %v1927, %v1660
        %v1936 = vpack.c.b16 %v1928, %v1661
        %v1945 = vunpack.c.l.b16 %v724
        %v1946 = vunpack.c.l.b16 %v725
        %v1947 = vunpack.c.l.b16 %v726
        %v1948 = vunpack.c.l.b16 %v727
        %v1949 = vunpack.c.l.b16 %v728
        %v1950 = vunpack.c.l.b16 %v729
        %v1951 = vunpack.c.l.b16 %v730
        %v1952 = vunpack.c.l.b16 %v731
        %v1953 = vpack.c.b16 %v1921, %v1945
        %v1954 = vpack.c.b16 %v1922, %v1946
        %v1955 = vpack.c.b16 %v1923, %v1947
        %v1956 = vpack.c.b16 %v1924, %v1948
        %v1957 = vpack.c.b16 %v1925, %v1949
        %v1958 = vpack.c.b16 %v1926, %v1950
        %v1959 = vpack.c.b16 %v1927, %v1951
        %v1960 = vpack.c.b16 %v1928, %v1952
        %v1962 = vshrl.u32 %v1953, 16
        %v1964 = vshll.u32 %v1953, 16
        %v1966 = vrot.slane %v1964, 1
        %v1967 = vor.u32 %v1962, %v1966
        %v1969 = vshrl.u32 %v1954, 16
        %v1971 = vshll.u32 %v1954, 16
        %v1973 = vrot.slane %v1971, 1
        %v1974 = vor.u32 %v1969, %v1973
        %v1976 = vshrl.u32 %v1955, 16
        %v1978 = vshll.u32 %v1955, 16
        %v1980 = vrot.slane %v1978, 1
        %v1981 = vor.u32 %v1976, %v1980
        %v1983 = vshrl.u32 %v1956, 16
        %v1985 = vshll.u32 %v1956, 16
        %v1987 = vrot.slane %v1985, 1
        %v1988 = vor.u32 %v1983, %v1987
        %v1990 = vshrl.u32 %v1957, 16
        %v1992 = vshll.u32 %v1957, 16
        %v1994 = vrot.slane %v1992, 1
        %v1995 = vor.u32 %v1990, %v1994
        %v1997 = vshrl.u32 %v1958, 16
        %v1999 = vshll.u32 %v1958, 16
        %v2001 = vrot.slane %v1999, 1
        %v2002 = vor.u32 %v1997, %v2001
        %v2004 = vshrl.u32 %v1959, 16
        %v2006 = vshll.u32 %v1959, 16
        %v2008 = vrot.slane %v2006, 1
        %v2009 = vor.u32 %v2004, %v2008
        %v2011 = vshrl.u32 %v1960, 16
        %v2013 = vshll.u32 %v1960, 16
        %v2015 = vrot.slane %v2013, 1
        %v2016 = vor.u32 %v2011, %v2015
        %2017 = vrot.lane.b32.xlu0 %v1967, 32
        %v2018 = vpop.permute.xlu0 %2017
        %2019 = vrot.lane.b32.xlu0 %v1974, 32
        %v2020 = vpop.permute.xlu0 %2019
        %2021 = vrot.lane.b32.xlu0 %v1981, 32
        %v2022 = vpop.permute.xlu0 %2021
        %2023 = vrot.lane.b32.xlu0 %v1988, 32
        %v2024 = vpop.permute.xlu0 %2023
        %2025 = vrot.lane.b32.xlu0 %v1995, 32
        %v2026 = vpop.permute.xlu0 %2025
        %2027 = vrot.lane.b32.xlu0 %v2002, 32
        %v2028 = vpop.permute.xlu0 %2027
        %2029 = vrot.lane.b32.xlu0 %v2009, 32
        %v2030 = vpop.permute.xlu0 %2029
        %2031 = vrot.lane.b32.xlu0 %v2016, 32
        %v2032 = vpop.permute.xlu0 %2031
        %v2041 = vunpack.c.l.b16 %v732
        %v2042 = vunpack.c.l.b16 %v733
        %v2043 = vunpack.c.l.b16 %v734
        %v2044 = vunpack.c.l.b16 %v735
        %v2045 = vunpack.c.l.b16 %v736
        %v2046 = vunpack.c.l.b16 %v737
        %v2047 = vunpack.c.l.b16 %v738
        %v2048 = vunpack.c.l.b16 %v739
        %v2049 = vpack.c.b16 %v2041, %v2041
        %v2050 = vpack.c.b16 %v2042, %v2042
        %v2051 = vpack.c.b16 %v2043, %v2043
        %v2052 = vpack.c.b16 %v2044, %v2044
        %v2053 = vpack.c.b16 %v2045, %v2045
        %v2054 = vpack.c.b16 %v2046, %v2046
        %v2055 = vpack.c.b16 %v2047, %v2047
        %v2056 = vpack.c.b16 %v2048, %v2048
        %v2058 = vshrl.u32 %v2049, 16
        %v2060 = vrot.slane %v2058, 7
        %v2061 = vshll.u32 %v2049, 16
        %v2063 = vor.u32 %v2060, %v2061
        %v2065 = vshrl.u32 %v2050, 16
        %v2067 = vrot.slane %v2065, 7
        %v2068 = vshll.u32 %v2050, 16
        %v2070 = vor.u32 %v2067, %v2068
        %v2072 = vshrl.u32 %v2051, 16
        %v2074 = vrot.slane %v2072, 7
        %v2075 = vshll.u32 %v2051, 16
        %v2077 = vor.u32 %v2074, %v2075
        %v2079 = vshrl.u32 %v2052, 16
        %v2081 = vrot.slane %v2079, 7
        %v2082 = vshll.u32 %v2052, 16
        %v2084 = vor.u32 %v2081, %v2082
        %v2086 = vshrl.u32 %v2053, 16
        %v2088 = vrot.slane %v2086, 7
        %v2089 = vshll.u32 %v2053, 16
        %v2091 = vor.u32 %v2088, %v2089
        %v2093 = vshrl.u32 %v2054, 16
        %v2095 = vrot.slane %v2093, 7
        %v2096 = vshll.u32 %v2054, 16
        %v2098 = vor.u32 %v2095, %v2096
        %v2100 = vshrl.u32 %v2055, 16
        %v2102 = vrot.slane %v2100, 7
        %v2103 = vshll.u32 %v2055, 16
        %v2105 = vor.u32 %v2102, %v2103
        %v2107 = vshrl.u32 %v2056, 16
        %v2109 = vrot.slane %v2107, 7
        %v2110 = vshll.u32 %v2056, 16
        %v2112 = vor.u32 %v2109, %v2110
        %2113 = vrot.lane.b32.xlu0 %v2063, 64
        %v2114 = vpop.permute.xlu0 %2113
        %2115 = vrot.lane.b32.xlu0 %v2070, 64
        %v2116 = vpop.permute.xlu0 %2115
        %2117 = vrot.lane.b32.xlu0 %v2077, 64
        %v2118 = vpop.permute.xlu0 %2117
        %2119 = vrot.lane.b32.xlu0 %v2084, 64
        %v2120 = vpop.permute.xlu0 %2119
        %2121 = vrot.lane.b32.xlu0 %v2091, 64
        %v2122 = vpop.permute.xlu0 %2121
        %2123 = vrot.lane.b32.xlu0 %v2098, 64
        %v2124 = vpop.permute.xlu0 %2123
        %2125 = vrot.lane.b32.xlu0 %v2105, 64
        %v2126 = vpop.permute.xlu0 %2125
        %2127 = vrot.lane.b32.xlu0 %v2112, 64
        %v2128 = vpop.permute.xlu0 %2127
        %v2137 = vunpack.c.l.b16 %v740
        %v2138 = vunpack.c.l.b16 %v741
        %v2139 = vunpack.c.l.b16 %v742
        %v2140 = vunpack.c.l.b16 %v743
        %v2141 = vunpack.c.l.b16 %v744
        %v2142 = vunpack.c.l.b16 %v745
        %v2143 = vunpack.c.l.b16 %v746
        %v2144 = vunpack.c.l.b16 %v747
        %v2145 = vpack.c.b16 %v2137, %v2041
        %v2146 = vpack.c.b16 %v2138, %v2042
        %v2147 = vpack.c.b16 %v2139, %v2043
        %v2148 = vpack.c.b16 %v2140, %v2044
        %v2149 = vpack.c.b16 %v2141, %v2045
        %v2150 = vpack.c.b16 %v2142, %v2046
        %v2151 = vpack.c.b16 %v2143, %v2047
        %v2152 = vpack.c.b16 %v2144, %v2048
        %2153 = vrot.lane.b32.xlu0 %v2145, 96
        %v2154 = vpop.permute.xlu0 %2153
        %2155 = vrot.lane.b32.xlu0 %v2146, 96
        %v2156 = vpop.permute.xlu0 %2155
        %2157 = vrot.lane.b32.xlu0 %v2147, 96
        %v2158 = vpop.permute.xlu0 %2157
        %2159 = vrot.lane.b32.xlu0 %v2148, 96
        %v2160 = vpop.permute.xlu0 %2159
        %2161 = vrot.lane.b32.xlu0 %v2149, 96
        %v2162 = vpop.permute.xlu0 %2161
        %2163 = vrot.lane.b32.xlu0 %v2150, 96
        %v2164 = vpop.permute.xlu0 %2163
        %2165 = vrot.lane.b32.xlu0 %v2151, 96
        %v2166 = vpop.permute.xlu0 %2165
        %2167 = vrot.lane.b32.xlu0 %v2152, 96
        %v2168 = vpop.permute.xlu0 %2167
        %v2177 = vunpack.c.l.b16 %v748
        %v2178 = vunpack.c.l.b16 %v749
        %v2179 = vunpack.c.l.b16 %v750
        %v2180 = vunpack.c.l.b16 %v751
        %v2181 = vunpack.c.l.b16 %v752
        %v2182 = vunpack.c.l.b16 %v753
        %v2183 = vunpack.c.l.b16 %v754
        %v2184 = vunpack.c.l.b16 %v755
        %v2185 = vpack.c.b16 %v2137, %v2177
        %v2186 = vpack.c.b16 %v2138, %v2178
        %v2187 = vpack.c.b16 %v2139, %v2179
        %v2188 = vpack.c.b16 %v2140, %v2180
        %v2189 = vpack.c.b16 %v2141, %v2181
        %v2190 = vpack.c.b16 %v2142, %v2182
        %v2191 = vpack.c.b16 %v2143, %v2183
        %v2192 = vpack.c.b16 %v2144, %v2184
        %v2194 = vshrl.u32 %v2185, 16
        %v2196 = vshll.u32 %v2185, 16
        %v2198 = vrot.slane %v2196, 1
        %v2199 = vor.u32 %v2194, %v2198
        %v2201 = vshrl.u32 %v2186, 16
        %v2203 = vshll.u32 %v2186, 16
        %v2205 = vrot.slane %v2203, 1
        %v2206 = vor.u32 %v2201, %v2205
        %v2208 = vshrl.u32 %v2187, 16
        %v2210 = vshll.u32 %v2187, 16
        %v2212 = vrot.slane %v2210, 1
        %v2213 = vor.u32 %v2208, %v2212
        %v2215 = vshrl.u32 %v2188, 16
        %v2217 = vshll.u32 %v2188, 16
        %v2219 = vrot.slane %v2217, 1
        %v2220 = vor.u32 %v2215, %v2219
        %v2222 = vshrl.u32 %v2189, 16
        %v2224 = vshll.u32 %v2189, 16
        %v2226 = vrot.slane %v2224, 1
        %v2227 = vor.u32 %v2222, %v2226
        %v2229 = vshrl.u32 %v2190, 16
        %v2231 = vshll.u32 %v2190, 16
        %v2233 = vrot.slane %v2231, 1
        %v2234 = vor.u32 %v2229, %v2233
        %v2236 = vshrl.u32 %v2191, 16
        %v2238 = vshll.u32 %v2191, 16
        %v2240 = vrot.slane %v2238, 1
        %v2241 = vor.u32 %v2236, %v2240
        %v2243 = vshrl.u32 %v2192, 16
        %v2245 = vshll.u32 %v2192, 16
        %v2247 = vrot.slane %v2245, 1
        %v2248 = vor.u32 %v2243, %v2247
        %v2257 = vunpack.c.l.b16 %v757
        %v2258 = vunpack.c.l.b16 %v758
        %v2259 = vunpack.c.l.b16 %v759
        %v2260 = vunpack.c.l.b16 %v760
        %v2261 = vunpack.c.l.b16 %v761
        %v2262 = vunpack.c.l.b16 %v762
        %v2263 = vunpack.c.l.b16 %v763
        %v2264 = vunpack.c.l.b16 %v764
        %v2265 = vpack.c.b16 %v2257, %v2257
        %v2266 = vpack.c.b16 %v2258, %v2258
        %v2267 = vpack.c.b16 %v2259, %v2259
        %v2268 = vpack.c.b16 %v2260, %v2260
        %v2269 = vpack.c.b16 %v2261, %v2261
        %v2270 = vpack.c.b16 %v2262, %v2262
        %v2271 = vpack.c.b16 %v2263, %v2263
        %v2272 = vpack.c.b16 %v2264, %v2264
        %v2274 = vshrl.u32 %v2265, 16
        %v2276 = vrot.slane %v2274, 7
        %v2277 = vshll.u32 %v2265, 16
        %v2279 = vor.u32 %v2276, %v2277
        %v2281 = vshrl.u32 %v2266, 16
        %v2283 = vrot.slane %v2281, 7
        %v2284 = vshll.u32 %v2266, 16
        %v2286 = vor.u32 %v2283, %v2284
        %v2288 = vshrl.u32 %v2267, 16
        %v2290 = vrot.slane %v2288, 7
        %v2291 = vshll.u32 %v2267, 16
        %v2293 = vor.u32 %v2290, %v2291
        %v2295 = vshrl.u32 %v2268, 16
        %v2297 = vrot.slane %v2295, 7
        %v2298 = vshll.u32 %v2268, 16
        %v2300 = vor.u32 %v2297, %v2298
        %v2302 = vshrl.u32 %v2269, 16
        %v2304 = vrot.slane %v2302, 7
        %v2305 = vshll.u32 %v2269, 16
        %v2307 = vor.u32 %v2304, %v2305
        %v2309 = vshrl.u32 %v2270, 16
        %v2311 = vrot.slane %v2309, 7
        %v2312 = vshll.u32 %v2270, 16
        %v2314 = vor.u32 %v2311, %v2312
        %v2316 = vshrl.u32 %v2271, 16
        %v2318 = vrot.slane %v2316, 7
        %v2319 = vshll.u32 %v2271, 16
        %v2321 = vor.u32 %v2318, %v2319
        %v2323 = vshrl.u32 %v2272, 16
        %v2325 = vrot.slane %v2323, 7
        %v2326 = vshll.u32 %v2272, 16
        %v2328 = vor.u32 %v2325, %v2326
        %2329 = vrot.lane.b32.xlu0 %v2279, 32
        %v2330 = vpop.permute.xlu0 %2329
        %2331 = vrot.lane.b32.xlu0 %v2286, 32
        %v2332 = vpop.permute.xlu0 %2331
        %2333 = vrot.lane.b32.xlu0 %v2293, 32
        %v2334 = vpop.permute.xlu0 %2333
        %2335 = vrot.lane.b32.xlu0 %v2300, 32
        %v2336 = vpop.permute.xlu0 %2335
        %2337 = vrot.lane.b32.xlu0 %v2307, 32
        %v2338 = vpop.permute.xlu0 %2337
        %2339 = vrot.lane.b32.xlu0 %v2314, 32
        %v2340 = vpop.permute.xlu0 %2339
        %2341 = vrot.lane.b32.xlu0 %v2321, 32
        %v2342 = vpop.permute.xlu0 %2341
        %2343 = vrot.lane.b32.xlu0 %v2328, 32
        %v2344 = vpop.permute.xlu0 %2343
        %v2353 = vunpack.c.l.b16 %v765
        %v2354 = vunpack.c.l.b16 %v766
        %v2355 = vunpack.c.l.b16 %v767
        %v2356 = vunpack.c.l.b16 %v768
        %v2357 = vunpack.c.l.b16 %v769
        %v2358 = vunpack.c.l.b16 %v770
        %v2359 = vunpack.c.l.b16 %v771
        %v2360 = vunpack.c.l.b16 %v772
        %v2361 = vpack.c.b16 %v2353, %v2257
        %v2362 = vpack.c.b16 %v2354, %v2258
        %v2363 = vpack.c.b16 %v2355, %v2259
        %v2364 = vpack.c.b16 %v2356, %v2260
        %v2365 = vpack.c.b16 %v2357, %v2261
        %v2366 = vpack.c.b16 %v2358, %v2262
        %v2367 = vpack.c.b16 %v2359, %v2263
        %v2368 = vpack.c.b16 %v2360, %v2264
        %2369 = vrot.lane.b32.xlu0 %v2361, 64
        %v2370 = vpop.permute.xlu0 %2369
        %2371 = vrot.lane.b32.xlu0 %v2362, 64
        %v2372 = vpop.permute.xlu0 %2371
        %2373 = vrot.lane.b32.xlu0 %v2363, 64
        %v2374 = vpop.permute.xlu0 %2373
        %2375 = vrot.lane.b32.xlu0 %v2364, 64
        %v2376 = vpop.permute.xlu0 %2375
        %2377 = vrot.lane.b32.xlu0 %v2365, 64
        %v2378 = vpop.permute.xlu0 %2377
        %2379 = vrot.lane.b32.xlu0 %v2366, 64
        %v2380 = vpop.permute.xlu0 %2379
        %2381 = vrot.lane.b32.xlu0 %v2367, 64
        %v2382 = vpop.permute.xlu0 %2381
        %2383 = vrot.lane.b32.xlu0 %v2368, 64
        %v2384 = vpop.permute.xlu0 %2383
        %v2393 = vunpack.c.l.b16 %v773
        %v2394 = vunpack.c.l.b16 %v774
        %v2395 = vunpack.c.l.b16 %v775
        %v2396 = vunpack.c.l.b16 %v776
        %v2397 = vunpack.c.l.b16 %v777
        %v2398 = vunpack.c.l.b16 %v778
        %v2399 = vunpack.c.l.b16 %v779
        %v2400 = vunpack.c.l.b16 %v780
        %v2401 = vpack.c.b16 %v2353, %v2393
        %v2402 = vpack.c.b16 %v2354, %v2394
        %v2403 = vpack.c.b16 %v2355, %v2395
        %v2404 = vpack.c.b16 %v2356, %v2396
        %v2405 = vpack.c.b16 %v2357, %v2397
        %v2406 = vpack.c.b16 %v2358, %v2398
        %v2407 = vpack.c.b16 %v2359, %v2399
        %v2408 = vpack.c.b16 %v2360, %v2400
        %v2410 = vshrl.u32 %v2401, 16
        %v2412 = vshll.u32 %v2401, 16
        %v2414 = vrot.slane %v2412, 1
        %v2415 = vor.u32 %v2410, %v2414
        %v2417 = vshrl.u32 %v2402, 16
        %v2419 = vshll.u32 %v2402, 16
        %v2421 = vrot.slane %v2419, 1
        %v2422 = vor.u32 %v2417, %v2421
        %v2424 = vshrl.u32 %v2403, 16
        %v2426 = vshll.u32 %v2403, 16
        %v2428 = vrot.slane %v2426, 1
        %v2429 = vor.u32 %v2424, %v2428
        %v2431 = vshrl.u32 %v2404, 16
        %v2433 = vshll.u32 %v2404, 16
        %v2435 = vrot.slane %v2433, 1
        %v2436 = vor.u32 %v2431, %v2435
        %v2438 = vshrl.u32 %v2405, 16
        %v2440 = vshll.u32 %v2405, 16
        %v2442 = vrot.slane %v2440, 1
        %v2443 = vor.u32 %v2438, %v2442
        %v2445 = vshrl.u32 %v2406, 16
        %v2447 = vshll.u32 %v2406, 16
        %v2449 = vrot.slane %v2447, 1
        %v2450 = vor.u32 %v2445, %v2449
        %v2452 = vshrl.u32 %v2407, 16
        %v2454 = vshll.u32 %v2407, 16
        %v2456 = vrot.slane %v2454, 1
        %v2457 = vor.u32 %v2452, %v2456
        %v2459 = vshrl.u32 %v2408, 16
        %v2461 = vshll.u32 %v2408, 16
        %v2463 = vrot.slane %v2461, 1
        %v2464 = vor.u32 %v2459, %v2463
        %2465 = vrot.lane.b32.xlu0 %v2415, 96
        %v2466 = vpop.permute.xlu0 %2465
        %2467 = vrot.lane.b32.xlu0 %v2422, 96
        %v2468 = vpop.permute.xlu0 %2467
        %2469 = vrot.lane.b32.xlu0 %v2429, 96
        %v2470 = vpop.permute.xlu0 %2469
        %2471 = vrot.lane.b32.xlu0 %v2436, 96
        %v2472 = vpop.permute.xlu0 %2471
        %2473 = vrot.lane.b32.xlu0 %v2443, 96
        %v2474 = vpop.permute.xlu0 %2473
        %2475 = vrot.lane.b32.xlu0 %v2450, 96
        %v2476 = vpop.permute.xlu0 %2475
        %2477 = vrot.lane.b32.xlu0 %v2457, 96
        %v2478 = vpop.permute.xlu0 %2477
        %2479 = vrot.lane.b32.xlu0 %v2464, 96
        %v2480 = vpop.permute.xlu0 %2479
        %v2489 = vunpack.c.l.b16 %v782
        %v2490 = vunpack.c.l.b16 %v783
        %v2491 = vunpack.c.l.b16 %v784
        %v2492 = vunpack.c.l.b16 %v785
        %v2493 = vunpack.c.l.b16 %v786
        %v2494 = vunpack.c.l.b16 %v787
        %v2495 = vunpack.c.l.b16 %v788
        %v2496 = vunpack.c.l.b16 %v789
        %v2497 = vpack.c.b16 %v2489, %v2489
        %v2498 = vpack.c.b16 %v2490, %v2490
        %v2499 = vpack.c.b16 %v2491, %v2491
        %v2500 = vpack.c.b16 %v2492, %v2492
        %v2501 = vpack.c.b16 %v2493, %v2493
        %v2502 = vpack.c.b16 %v2494, %v2494
        %v2503 = vpack.c.b16 %v2495, %v2495
        %v2504 = vpack.c.b16 %v2496, %v2496
        %v2506 = vshrl.u32 %v2497, 16
        %v2508 = vrot.slane %v2506, 7
        %v2509 = vshll.u32 %v2497, 16
        %v2511 = vor.u32 %v2508, %v2509
        %v2513 = vshrl.u32 %v2498, 16
        %v2515 = vrot.slane %v2513, 7
        %v2516 = vshll.u32 %v2498, 16
        %v2518 = vor.u32 %v2515, %v2516
        %v2520 = vshrl.u32 %v2499, 16
        %v2522 = vrot.slane %v2520, 7
        %v2523 = vshll.u32 %v2499, 16
        %v2525 = vor.u32 %v2522, %v2523
        %v2527 = vshrl.u32 %v2500, 16
        %v2529 = vrot.slane %v2527, 7
        %v2530 = vshll.u32 %v2500, 16
        %v2532 = vor.u32 %v2529, %v2530
        %v2534 = vshrl.u32 %v2501, 16
        %v2536 = vrot.slane %v2534, 7
        %v2537 = vshll.u32 %v2501, 16
        %v2539 = vor.u32 %v2536, %v2537
        %v2541 = vshrl.u32 %v2502, 16
        %v2543 = vrot.slane %v2541, 7
        %v2544 = vshll.u32 %v2502, 16
        %v2546 = vor.u32 %v2543, %v2544
        %v2548 = vshrl.u32 %v2503, 16
        %v2550 = vrot.slane %v2548, 7
        %v2551 = vshll.u32 %v2503, 16
        %v2553 = vor.u32 %v2550, %v2551
        %v2555 = vshrl.u32 %v2504, 16
        %v2557 = vrot.slane %v2555, 7
        %v2558 = vshll.u32 %v2504, 16
        %v2560 = vor.u32 %v2557, %v2558
        %v2569 = vunpack.c.l.b16 %v790
        %v2570 = vunpack.c.l.b16 %v791
        %v2571 = vunpack.c.l.b16 %v792
        %v2572 = vunpack.c.l.b16 %v793
        %v2573 = vunpack.c.l.b16 %v794
        %v2574 = vunpack.c.l.b16 %v795
        %v2575 = vunpack.c.l.b16 %v796
        %v2576 = vunpack.c.l.b16 %v797
        %v2577 = vpack.c.b16 %v2569, %v2489
        %v2578 = vpack.c.b16 %v2570, %v2490
        %v2579 = vpack.c.b16 %v2571, %v2491
        %v2580 = vpack.c.b16 %v2572, %v2492
        %v2581 = vpack.c.b16 %v2573, %v2493
        %v2582 = vpack.c.b16 %v2574, %v2494
        %v2583 = vpack.c.b16 %v2575, %v2495
        %v2584 = vpack.c.b16 %v2576, %v2496
        %2585 = vrot.lane.b32.xlu0 %v2577, 32
        %v2586 = vpop.permute.xlu0 %2585
        %2587 = vrot.lane.b32.xlu0 %v2578, 32
        %v2588 = vpop.permute.xlu0 %2587
        %2589 = vrot.lane.b32.xlu0 %v2579, 32
        %v2590 = vpop.permute.xlu0 %2589
        %2591 = vrot.lane.b32.xlu0 %v2580, 32
        %v2592 = vpop.permute.xlu0 %2591
        %2593 = vrot.lane.b32.xlu0 %v2581, 32
        %v2594 = vpop.permute.xlu0 %2593
        %2595 = vrot.lane.b32.xlu0 %v2582, 32
        %v2596 = vpop.permute.xlu0 %2595
        %2597 = vrot.lane.b32.xlu0 %v2583, 32
        %v2598 = vpop.permute.xlu0 %2597
        %2599 = vrot.lane.b32.xlu0 %v2584, 32
        %v2600 = vpop.permute.xlu0 %2599
        %v2609 = vunpack.c.l.b16 %v798
        %v2610 = vunpack.c.l.b16 %v799
        %v2611 = vunpack.c.l.b16 %v800
        %v2612 = vunpack.c.l.b16 %v801
        %v2613 = vunpack.c.l.b16 %v802
        %v2614 = vunpack.c.l.b16 %v803
        %v2615 = vunpack.c.l.b16 %v804
        %v2616 = vunpack.c.l.b16 %v805
        %v2617 = vpack.c.b16 %v2569, %v2609
        %v2618 = vpack.c.b16 %v2570, %v2610
        %v2619 = vpack.c.b16 %v2571, %v2611
        %v2620 = vpack.c.b16 %v2572, %v2612
        %v2621 = vpack.c.b16 %v2573, %v2613
        %v2622 = vpack.c.b16 %v2574, %v2614
        %v2623 = vpack.c.b16 %v2575, %v2615
        %v2624 = vpack.c.b16 %v2576, %v2616
        %v2626 = vshrl.u32 %v2617, 16
        %v2628 = vshll.u32 %v2617, 16
        %v2630 = vrot.slane %v2628, 1
        %v2631 = vor.u32 %v2626, %v2630
        %v2633 = vshrl.u32 %v2618, 16
        %v2635 = vshll.u32 %v2618, 16
        %v2637 = vrot.slane %v2635, 1
        %v2638 = vor.u32 %v2633, %v2637
        %v2640 = vshrl.u32 %v2619, 16
        %v2642 = vshll.u32 %v2619, 16
        %v2644 = vrot.slane %v2642, 1
        %v2645 = vor.u32 %v2640, %v2644
        %v2647 = vshrl.u32 %v2620, 16
        %v2649 = vshll.u32 %v2620, 16
        %v2651 = vrot.slane %v2649, 1
        %v2652 = vor.u32 %v2647, %v2651
        %v2654 = vshrl.u32 %v2621, 16
        %v2656 = vshll.u32 %v2621, 16
        %v2658 = vrot.slane %v2656, 1
        %v2659 = vor.u32 %v2654, %v2658
        %v2661 = vshrl.u32 %v2622, 16
        %v2663 = vshll.u32 %v2622, 16
        %v2665 = vrot.slane %v2663, 1
        %v2666 = vor.u32 %v2661, %v2665
        %v2668 = vshrl.u32 %v2623, 16
        %v2670 = vshll.u32 %v2623, 16
        %v2672 = vrot.slane %v2670, 1
        %v2673 = vor.u32 %v2668, %v2672
        %v2675 = vshrl.u32 %v2624, 16
        %v2677 = vshll.u32 %v2624, 16
        %v2679 = vrot.slane %v2677, 1
        %v2680 = vor.u32 %v2675, %v2679
        %2681 = vrot.lane.b32.xlu0 %v2631, 64
        %v2682 = vpop.permute.xlu0 %2681
        %2683 = vrot.lane.b32.xlu0 %v2638, 64
        %v2684 = vpop.permute.xlu0 %2683
        %2685 = vrot.lane.b32.xlu0 %v2645, 64
        %v2686 = vpop.permute.xlu0 %2685
        %2687 = vrot.lane.b32.xlu0 %v2652, 64
        %v2688 = vpop.permute.xlu0 %2687
        %2689 = vrot.lane.b32.xlu0 %v2659, 64
        %v2690 = vpop.permute.xlu0 %2689
        %2691 = vrot.lane.b32.xlu0 %v2666, 64
        %v2692 = vpop.permute.xlu0 %2691
        %2693 = vrot.lane.b32.xlu0 %v2673, 64
        %v2694 = vpop.permute.xlu0 %2693
        %2695 = vrot.lane.b32.xlu0 %v2680, 64
        %v2696 = vpop.permute.xlu0 %2695
        %v2699 = vsel %vm1686, %v1929, %v2018
        %v2702 = vsel %vm1686, %v1930, %v2020
        %v2705 = vsel %vm1686, %v1931, %v2022
        %v2708 = vsel %vm1686, %v1932, %v2024
        %v2711 = vsel %vm1686, %v1933, %v2026
        %v2714 = vsel %vm1686, %v1934, %v2028
        %v2717 = vsel %vm1686, %v1935, %v2030
        %v2720 = vsel %vm1686, %v1936, %v2032
        %v2722 = vsel %vm1711, %v2699, %v2114
        %v2724 = vsel %vm1711, %v2702, %v2116
        %v2726 = vsel %vm1711, %v2705, %v2118
        %v2728 = vsel %vm1711, %v2708, %v2120
        %v2730 = vsel %vm1711, %v2711, %v2122
        %v2732 = vsel %vm1711, %v2714, %v2124
        %v2734 = vsel %vm1711, %v2717, %v2126
        %v2736 = vsel %vm1711, %v2720, %v2128
        %v2738 = vsel %vm1728, %v2722, %v2154
        %v2740 = vsel %vm1728, %v2724, %v2156
        %v2742 = vsel %vm1728, %v2726, %v2158
        %v2744 = vsel %vm1728, %v2728, %v2160
        %v2746 = vsel %vm1728, %v2730, %v2162
        %v2748 = vsel %vm1728, %v2732, %v2164
        %v2750 = vsel %vm1728, %v2734, %v2166
        %v2752 = vsel %vm1728, %v2736, %v2168
        %v2755 = vsel %vm1686, %v2199, %v2330
        %v2758 = vsel %vm1686, %v2206, %v2332
        %v2761 = vsel %vm1686, %v2213, %v2334
        %v2764 = vsel %vm1686, %v2220, %v2336
        %v2767 = vsel %vm1686, %v2227, %v2338
        %v2770 = vsel %vm1686, %v2234, %v2340
        %v2773 = vsel %vm1686, %v2241, %v2342
        %v2776 = vsel %vm1686, %v2248, %v2344
        %v2778 = vsel %vm1711, %v2755, %v2370
        %v2780 = vsel %vm1711, %v2758, %v2372
        %v2782 = vsel %vm1711, %v2761, %v2374
        %v2784 = vsel %vm1711, %v2764, %v2376
        %v2786 = vsel %vm1711, %v2767, %v2378
        %v2788 = vsel %vm1711, %v2770, %v2380
        %v2790 = vsel %vm1711, %v2773, %v2382
        %v2792 = vsel %vm1711, %v2776, %v2384
        %v2794 = vsel %vm1728, %v2778, %v2466
        %v2796 = vsel %vm1728, %v2780, %v2468
        %v2798 = vsel %vm1728, %v2782, %v2470
        %v2800 = vsel %vm1728, %v2784, %v2472
        %v2802 = vsel %vm1728, %v2786, %v2474
        %v2804 = vsel %vm1728, %v2788, %v2476
        %v2806 = vsel %vm1728, %v2790, %v2478
        %v2808 = vsel %vm1728, %v2792, %v2480
        %v2811 = vsel %vm1686, %v2511, %v2586
        %v2814 = vsel %vm1686, %v2518, %v2588
        %v2817 = vsel %vm1686, %v2525, %v2590
        %v2820 = vsel %vm1686, %v2532, %v2592
        %v2823 = vsel %vm1686, %v2539, %v2594
        %v2826 = vsel %vm1686, %v2546, %v2596
        %v2829 = vsel %vm1686, %v2553, %v2598
        %v2832 = vsel %vm1686, %v2560, %v2600
        %v2834 = vsel %vm1711, %v2811, %v2682
        %v2836 = vsel %vm1711, %v2814, %v2684
        %v2838 = vsel %vm1711, %v2817, %v2686
        %v2840 = vsel %vm1711, %v2820, %v2688
        %v2842 = vsel %vm1711, %v2823, %v2690
        %v2844 = vsel %vm1711, %v2826, %v2692
        %v2846 = vsel %vm1711, %v2829, %v2694
        %v2848 = vsel %vm1711, %v2832, %v2696
        %v2849 = vshrl.u32 %v2738, 16
        %v2851 = vshll.u32 %v2738, 16
        %v2853 = vrot.slane %v2851, 1
        %v2854 = vor.u32 %v2849, %v2853
        %v2855 = vshrl.u32 %v2794, 16
        %v2857 = vshll.u32 %v2794, 16
        %v2859 = vrot.slane %v2857, 1
        %v2860 = vor.u32 %v2855, %v2859
        %v2861 = vshrl.u32 %v2834, 16
        %v2863 = vshll.u32 %v2834, 16
        %v2865 = vrot.slane %v2863, 1
        %v2866 = vor.u32 %v2861, %v2865
        %v2867 = vshrl.u32 %v2740, 16
        %v2869 = vshll.u32 %v2740, 16
        %v2871 = vrot.slane %v2869, 1
        %v2872 = vor.u32 %v2867, %v2871
        %v2873 = vshrl.u32 %v2796, 16
        %v2875 = vshll.u32 %v2796, 16
        %v2877 = vrot.slane %v2875, 1
        %v2878 = vor.u32 %v2873, %v2877
        %v2879 = vshrl.u32 %v2836, 16
        %v2881 = vshll.u32 %v2836, 16
        %v2883 = vrot.slane %v2881, 1
        %v2884 = vor.u32 %v2879, %v2883
        %v2885 = vshrl.u32 %v2742, 16
        %v2887 = vshll.u32 %v2742, 16
        %v2889 = vrot.slane %v2887, 1
        %v2890 = vor.u32 %v2885, %v2889
        %v2891 = vshrl.u32 %v2798, 16
        %v2893 = vshll.u32 %v2798, 16
        %v2895 = vrot.slane %v2893, 1
        %v2896 = vor.u32 %v2891, %v2895
        %v2897 = vshrl.u32 %v2838, 16
        %v2899 = vshll.u32 %v2838, 16
        %v2901 = vrot.slane %v2899, 1
        %v2902 = vor.u32 %v2897, %v2901
        %v2903 = vshrl.u32 %v2744, 16
        %v2905 = vshll.u32 %v2744, 16
        %v2907 = vrot.slane %v2905, 1
        %v2908 = vor.u32 %v2903, %v2907
        %v2909 = vshrl.u32 %v2800, 16
        %v2911 = vshll.u32 %v2800, 16
        %v2913 = vrot.slane %v2911, 1
        %v2914 = vor.u32 %v2909, %v2913
        %v2915 = vshrl.u32 %v2840, 16
        %v2917 = vshll.u32 %v2840, 16
        %v2919 = vrot.slane %v2917, 1
        %v2920 = vor.u32 %v2915, %v2919
        %v2921 = vshrl.u32 %v2746, 16
        %v2923 = vshll.u32 %v2746, 16
        %v2925 = vrot.slane %v2923, 1
        %v2926 = vor.u32 %v2921, %v2925
        %v2927 = vshrl.u32 %v2802, 16
        %v2929 = vshll.u32 %v2802, 16
        %v2931 = vrot.slane %v2929, 1
        %v2932 = vor.u32 %v2927, %v2931
        %v2933 = vshrl.u32 %v2842, 16
        %v2935 = vshll.u32 %v2842, 16
        %v2937 = vrot.slane %v2935, 1
        %v2938 = vor.u32 %v2933, %v2937
        %v2939 = vshrl.u32 %v2748, 16
        %v2941 = vshll.u32 %v2748, 16
        %v2943 = vrot.slane %v2941, 1
        %v2944 = vor.u32 %v2939, %v2943
        %v2945 = vshrl.u32 %v2804, 16
        %v2947 = vshll.u32 %v2804, 16
        %v2949 = vrot.slane %v2947, 1
        %v2950 = vor.u32 %v2945, %v2949
        %v2951 = vshrl.u32 %v2844, 16
        %v2953 = vshll.u32 %v2844, 16
        %v2955 = vrot.slane %v2953, 1
        %v2956 = vor.u32 %v2951, %v2955
        %v2957 = vshrl.u32 %v2750, 16
        %v2959 = vshll.u32 %v2750, 16
        %v2961 = vrot.slane %v2959, 1
        %v2962 = vor.u32 %v2957, %v2961
        %v2963 = vshrl.u32 %v2806, 16
        %v2965 = vshll.u32 %v2806, 16
        %v2967 = vrot.slane %v2965, 1
        %v2968 = vor.u32 %v2963, %v2967
        %v2969 = vshrl.u32 %v2846, 16
        %v2971 = vshll.u32 %v2846, 16
        %v2973 = vrot.slane %v2971, 1
        %v2974 = vor.u32 %v2969, %v2973
        %v2975 = vshrl.u32 %v2752, 16
        %v2977 = vshll.u32 %v2752, 16
        %v2979 = vrot.slane %v2977, 1
        %v2980 = vor.u32 %v2975, %v2979
        %v2981 = vshrl.u32 %v2808, 16
        %v2983 = vshll.u32 %v2808, 16
        %v2985 = vrot.slane %v2983, 1
        %v2986 = vor.u32 %v2981, %v2985
        %v2987 = vshrl.u32 %v2848, 16
        %v2989 = vshll.u32 %v2848, 16
        %v2991 = vrot.slane %v2989, 1
        %v2992 = vor.u32 %v2987, %v2991
        %v3025 = vunpack.c.l.b16 %v1730
        %v3026 = vunpack.c.l.b16 %v1786
        %v3027 = vunpack.c.l.b16 %v1842
        %v3028 = vunpack.c.l.b16 %v1898
        %v3029 = vunpack.c.l.b16 %v2854
        %v3030 = vunpack.c.l.b16 %v2860
        %v3031 = vunpack.c.l.b16 %v2866
        %v3032 = vunpack.c.l.b16 %v1732
        %v3033 = vunpack.c.l.b16 %v1788
        %v3034 = vunpack.c.l.b16 %v1844
        %v3035 = vunpack.c.l.b16 %v1900
        %v3036 = vunpack.c.l.b16 %v2872
        %v3037 = vunpack.c.l.b16 %v2878
        %v3038 = vunpack.c.l.b16 %v2884
        %v3039 = vunpack.c.l.b16 %v1734
        %v3040 = vunpack.c.l.b16 %v1790
        %v3041 = vunpack.c.l.b16 %v1846
        %v3042 = vunpack.c.l.b16 %v1902
        %v3043 = vunpack.c.l.b16 %v2890
        %v3044 = vunpack.c.l.b16 %v2896
        %v3045 = vunpack.c.l.b16 %v2902
        %v3046 = vunpack.c.l.b16 %v1736
        %v3047 = vunpack.c.l.b16 %v1792
        %v3048 = vunpack.c.l.b16 %v1848
        %v3049 = vunpack.c.l.b16 %v1904
        %v3050 = vunpack.c.l.b16 %v2908
        %v3051 = vunpack.c.l.b16 %v2914
        %v3052 = vunpack.c.l.b16 %v2920
        %v3053 = vunpack.c.l.b16 %v1738
        %v3054 = vunpack.c.l.b16 %v1794
        %v3055 = vunpack.c.l.b16 %v1850
        %v3056 = vunpack.c.l.b16 %v1906
        %v3057 = vunpack.c.l.b16 %v2926
        %v3058 = vunpack.c.l.b16 %v2932
        %v3059 = vunpack.c.l.b16 %v2938
        %v3060 = vunpack.c.l.b16 %v1740
        %v3061 = vunpack.c.l.b16 %v1796
        %v3062 = vunpack.c.l.b16 %v1852
        %v3063 = vunpack.c.l.b16 %v1908
        %v3064 = vunpack.c.l.b16 %v2944
        %v3065 = vunpack.c.l.b16 %v2950
        %v3066 = vunpack.c.l.b16 %v2956
        %v3067 = vunpack.c.l.b16 %v1742
        %v3068 = vunpack.c.l.b16 %v1798
        %v3069 = vunpack.c.l.b16 %v1854
        %v3070 = vunpack.c.l.b16 %v1910
        %v3071 = vunpack.c.l.b16 %v2962
        %v3072 = vunpack.c.l.b16 %v2968
        %v3073 = vunpack.c.l.b16 %v2974
        %v3074 = vunpack.c.l.b16 %v1744
        %v3075 = vunpack.c.l.b16 %v1800
        %v3076 = vunpack.c.l.b16 %v1856
        %v3077 = vunpack.c.l.b16 %v1912
        %v3078 = vunpack.c.l.b16 %v2980
        %v3079 = vunpack.c.l.b16 %v2986
        %v3080 = vunpack.c.l.b16 %v2992
        %v3081 = vld [vmem:[%s4] sm:$0xf]
        %v3082 = vld [vmem:[%s4 + $0x4] sm:$0xf]
        %v3083 = vld [vmem:[%s4 + $0x8] sm:$0xf]
        %v3084 = vld [vmem:[%s4 + $0xc] sm:$0xf]
        %v3085 = vld [vmem:[%s4 + $0x10] sm:$0xf]
        %v3086 = vld [vmem:[%s4 + $0x14] sm:$0xf]
        %v3087 = vld [vmem:[%s4 + $0x18] sm:$0xf]
        %v3088 = vld [vmem:[%s4 + $0x1c] sm:$0xf]
        %v3089 = vld [vmem:[%s4 + $0x20] sm:$0xf]
        %v3090 = vld [vmem:[%s4 + $0x24] sm:$0xf]
        %v3091 = vld [vmem:[%s4 + $0x28] sm:$0xf]
        %v3092 = vld [vmem:[%s4 + $0x2c] sm:$0xf]
        %v3093 = vld [vmem:[%s4 + $0x30] sm:$0xf]
        %v3094 = vld [vmem:[%s4 + $0x34] sm:$0xf]
        %v3095 = vld [vmem:[%s4 + $0x38] sm:$0xf]
        %v3096 = vld [vmem:[%s4 + $0x3c] sm:$0xf]
        %v3097 = vld [vmem:[%s4 + $0x40] sm:$0xf]
        %v3098 = vld [vmem:[%s4 + $0x44] sm:$0xf]
        %v3099 = vld [vmem:[%s4 + $0x48] sm:$0xf]
        %v3100 = vld [vmem:[%s4 + $0x4c] sm:$0xf]
        %v3101 = vld [vmem:[%s4 + $0x50] sm:$0xf]
        %v3102 = vld [vmem:[%s4 + $0x54] sm:$0xf]
        %v3103 = vld [vmem:[%s4 + $0x58] sm:$0xf]
        %v3104 = vld [vmem:[%s4 + $0x5c] sm:$0xf]
        %v3105 = vld [vmem:[%s4 + $0x60] sm:$0xf]
        %v3106 = vld [vmem:[%s4 + $0x64] sm:$0xf]
        %v3107 = vld [vmem:[%s4 + $0x68] sm:$0xf]
        %v3108 = vld [vmem:[%s4 + $0x6c] sm:$0xf]
        %v3109 = vld [vmem:[%s4 + $0x70] sm:$0xf]
        %v3110 = vld [vmem:[%s4 + $0x74] sm:$0xf]
        %v3111 = vld [vmem:[%s4 + $0x78] sm:$0xf]
        %v3112 = vld [vmem:[%s4 + $0x7c] sm:$0xf]
        %v3113 = vld [vmem:[%s4 + $0x80] sm:$0xf]
        %v3114 = vld [vmem:[%s4 + $0x84] sm:$0xf]
        %v3115 = vld [vmem:[%s4 + $0x88] sm:$0xf]
        %v3116 = vld [vmem:[%s4 + $0x8c] sm:$0xf]
        %v3117 = vld [vmem:[%s4 + $0x90] sm:$0xf]
        %v3118 = vld [vmem:[%s4 + $0x94] sm:$0xf]
        %v3119 = vld [vmem:[%s4 + $0x98] sm:$0xf]
        %v3120 = vld [vmem:[%s4 + $0x9c] sm:$0xf]
        %v3121 = vld [vmem:[%s4 + $0xa0] sm:$0xf]
        %v3122 = vld [vmem:[%s4 + $0xa4] sm:$0xf]
        %v3123 = vld [vmem:[%s4 + $0xa8] sm:$0xf]
        %v3124 = vld [vmem:[%s4 + $0xac] sm:$0xf]
        %v3125 = vld [vmem:[%s4 + $0xb0] sm:$0xf]
        %v3126 = vld [vmem:[%s4 + $0xb4] sm:$0xf]
        %v3127 = vld [vmem:[%s4 + $0xb8] sm:$0xf]
        %v3128 = vld [vmem:[%s4 + $0xbc] sm:$0xf]
        %v3129 = vld [vmem:[%s4 + $0xc0] sm:$0xf]
        %v3130 = vld [vmem:[%s4 + $0xc4] sm:$0xf]
        %v3131 = vld [vmem:[%s4 + $0xc8] sm:$0xf]
        %v3132 = vld [vmem:[%s4 + $0xcc] sm:$0xf]
        %v3133 = vld [vmem:[%s4 + $0xd0] sm:$0xf]
        %v3134 = vld [vmem:[%s4 + $0xd4] sm:$0xf]
        %v3135 = vld [vmem:[%s4 + $0xd8] sm:$0xf]
        %v3136 = vld [vmem:[%s4 + $0xdc] sm:$0xf]
        %v3137 = vld [vmem:[%s4 + $0xe0] sm:$0xf]
        %v3138 = vld [vmem:[%s4 + $0xe4] sm:$0xf]
        %v3139 = vld [vmem:[%s4 + $0xe8] sm:$0xf]
        %v3140 = vld [vmem:[%s4 + $0xec] sm:$0xf]
        %v3141 = vld [vmem:[%s4 + $0xf0] sm:$0xf]
        %v3142 = vld [vmem:[%s4 + $0xf4] sm:$0xf]
        %v3143 = vld [vmem:[%s4 + $0xf8] sm:$0xf]
        %v3144 = vld [vmem:[%s4 + $0xfc] sm:$0xf]
        %v3145 = vld [vmem:[%s4 + $0x100] sm:$0xf]
        %v3146 = vld [vmem:[%s4 + $0x104] sm:$0xf]
        %v3147 = vld [vmem:[%s4 + $0x108] sm:$0xf]
        %v3148 = vld [vmem:[%s4 + $0x10c] sm:$0xf]
        %v3149 = vld [vmem:[%s4 + $0x110] sm:$0xf]
        %v3150 = vld [vmem:[%s4 + $0x114] sm:$0xf]
        %v3151 = vld [vmem:[%s4 + $0x118] sm:$0xf]
        %v3152 = vld [vmem:[%s4 + $0x11c] sm:$0xf]
        %v3153 = vld [vmem:[%s4 + $0x120] sm:$0xf]
        %v3154 = vld [vmem:[%s4 + $0x124] sm:$0xf]
        %v3155 = vld [vmem:[%s4 + $0x128] sm:$0xf]
        %v3156 = vld [vmem:[%s4 + $0x12c] sm:$0xf]
        %v3157 = vld [vmem:[%s4 + $0x130] sm:$0xf]
        %v3158 = vld [vmem:[%s4 + $0x134] sm:$0xf]
        %v3159 = vld [vmem:[%s4 + $0x138] sm:$0xf]
        %v3160 = vld [vmem:[%s4 + $0x13c] sm:$0xf]
        %v3161 = vld [vmem:[%s4 + $0x140] sm:$0xf]
        %v3162 = vld [vmem:[%s4 + $0x144] sm:$0xf]
        %v3163 = vld [vmem:[%s4 + $0x148] sm:$0xf]
        %v3164 = vld [vmem:[%s4 + $0x14c] sm:$0xf]
        %v3165 = vld [vmem:[%s4 + $0x150] sm:$0xf]
        %v3166 = vld [vmem:[%s4 + $0x154] sm:$0xf]
        %v3167 = vld [vmem:[%s4 + $0x158] sm:$0xf]
        %v3168 = vld [vmem:[%s4 + $0x15c] sm:$0xf]
        %v3169 = vld [vmem:[%s4 + $0x160] sm:$0xf]
        %v3170 = vld [vmem:[%s4 + $0x164] sm:$0xf]
        %v3171 = vld [vmem:[%s4 + $0x168] sm:$0xf]
        %v3172 = vld [vmem:[%s4 + $0x16c] sm:$0xf]
        %v3173 = vld [vmem:[%s4 + $0x170] sm:$0xf]
        %v3174 = vld [vmem:[%s4 + $0x174] sm:$0xf]
        %v3175 = vld [vmem:[%s4 + $0x178] sm:$0xf]
        %v3176 = vld [vmem:[%s4 + $0x17c] sm:$0xf]
        %v3177 = vld [vmem:[%s4 + $0x180] sm:$0xf]
        %v3178 = vld [vmem:[%s4 + $0x184] sm:$0xf]
        %v3179 = vld [vmem:[%s4 + $0x188] sm:$0xf]
        %v3180 = vld [vmem:[%s4 + $0x18c] sm:$0xf]
        %v3181 = vld [vmem:[%s4 + $0x190] sm:$0xf]
        %v3182 = vld [vmem:[%s4 + $0x194] sm:$0xf]
        %v3183 = vld [vmem:[%s4 + $0x198] sm:$0xf]
        %v3184 = vld [vmem:[%s4 + $0x19c] sm:$0xf]
        %v3185 = vld [vmem:[%s4 + $0x1a0] sm:$0xf]
        %v3186 = vld [vmem:[%s4 + $0x1a4] sm:$0xf]
        %v3187 = vld [vmem:[%s4 + $0x1a8] sm:$0xf]
        %v3188 = vld [vmem:[%s4 + $0x1ac] sm:$0xf]
        %v3189 = vpack.c.b16 %v3032, %v3025
        %v3190 = vpack.c.b16 %v3033, %v3026
        %v3191 = vpack.c.b16 %v3034, %v3027
        %v3192 = vpack.c.b16 %v3035, %v3028
        %v3193 = vpack.c.b16 %v3036, %v3029
        %v3194 = vpack.c.b16 %v3037, %v3030
        %v3195 = vpack.c.b16 %v3038, %v3031
        %v3196 = vpack.c.b16 %v3046, %v3039
        %v3197 = vpack.c.b16 %v3047, %v3040
        %v3198 = vpack.c.b16 %v3048, %v3041
        %v3199 = vpack.c.b16 %v3049, %v3042
        %v3200 = vpack.c.b16 %v3050, %v3043
        %v3201 = vpack.c.b16 %v3051, %v3044
        %v3202 = vpack.c.b16 %v3052, %v3045
        %v3203 = vpack.c.b16 %v3060, %v3053
        %v3204 = vpack.c.b16 %v3061, %v3054
        %v3205 = vpack.c.b16 %v3062, %v3055
        %v3206 = vpack.c.b16 %v3063, %v3056
        %v3207 = vpack.c.b16 %v3064, %v3057
        %v3208 = vpack.c.b16 %v3065, %v3058
        %v3209 = vpack.c.b16 %v3066, %v3059
        %v3210 = vpack.c.b16 %v3074, %v3067
        %v3211 = vpack.c.b16 %v3075, %v3068
        %v3212 = vpack.c.b16 %v3076, %v3069
        %v3213 = vpack.c.b16 %v3077, %v3070
        %v3214 = vpack.c.b16 %v3078, %v3071
        %v3215 = vpack.c.b16 %v3079, %v3072
        %v3216 = vpack.c.b16 %v3080, %v3073
        %v3349 = vunpack.c.l.b16 %v3081
        %v3350 = vunpack.c.l.b16 %v3082
        %v3351 = vunpack.c.l.b16 %v3083
        %v3352 = vunpack.c.l.b16 %v3084
        %v3353 = vunpack.c.l.b16 %v3085
        %v3354 = vunpack.c.l.b16 %v3086
        %v3355 = vunpack.c.l.b16 %v3087
        %v3356 = vunpack.c.l.b16 %v3088
        %v3357 = vunpack.c.l.b16 %v3089
        %v3358 = vunpack.c.l.b16 %v3090
        %v3359 = vunpack.c.l.b16 %v3091
        %v3360 = vunpack.c.l.b16 %v3092
        %v3361 = vunpack.c.l.b16 %v3093
        %v3362 = vunpack.c.l.b16 %v3094
        %v3363 = vunpack.c.l.b16 %v3095
        %v3364 = vunpack.c.l.b16 %v3096
        %v3365 = vunpack.c.l.b16 %v3097
        %v3366 = vunpack.c.l.b16 %v3098
        %v3367 = vunpack.c.l.b16 %v3099
        %v3368 = vunpack.c.l.b16 %v3100
        %v3369 = vunpack.c.l.b16 %v3101
        %v3370 = vunpack.c.l.b16 %v3102
        %v3371 = vunpack.c.l.b16 %v3103
        %v3372 = vunpack.c.l.b16 %v3104
        %v3373 = vunpack.c.l.b16 %v3105
        %v3374 = vunpack.c.l.b16 %v3106
        %v3375 = vunpack.c.l.b16 %v3107
        %v3376 = vunpack.c.l.b16 %v3108
        %v3377 = vunpack.c.l.b16 %v3109
        %v3378 = vunpack.c.l.b16 %v3110
        %v3379 = vunpack.c.l.b16 %v3111
        %v3380 = vunpack.c.l.b16 %v3112
        %v3381 = vunpack.c.l.b16 %v3113
        %v3382 = vunpack.c.l.b16 %v3114
        %v3383 = vunpack.c.l.b16 %v3115
        %v3384 = vunpack.c.l.b16 %v3116
        %v3385 = vunpack.c.l.b16 %v3117
        %v3386 = vunpack.c.l.b16 %v3118
        %v3387 = vunpack.c.l.b16 %v3119
        %v3388 = vunpack.c.l.b16 %v3120
        %v3389 = vunpack.c.l.b16 %v3121
        %v3390 = vunpack.c.l.b16 %v3122
        %v3391 = vunpack.c.l.b16 %v3123
        %v3392 = vunpack.c.l.b16 %v3124
        %v3393 = vunpack.c.l.b16 %v3125
        %v3394 = vunpack.c.l.b16 %v3126
        %v3395 = vunpack.c.l.b16 %v3127
        %v3396 = vunpack.c.l.b16 %v3128
        %v3397 = vunpack.c.l.b16 %v3129
        %v3398 = vunpack.c.l.b16 %v3130
        %v3399 = vunpack.c.l.b16 %v3131
        %v3400 = vunpack.c.l.b16 %v3132
        %v3401 = vunpack.c.l.b16 %v3133
        %v3402 = vunpack.c.l.b16 %v3134
        %v3403 = vunpack.c.l.b16 %v3135
        %v3404 = vunpack.c.l.b16 %v3136
        %v3405 = vunpack.c.l.b16 %v3137
        %v3406 = vunpack.c.l.b16 %v3138
        %v3407 = vunpack.c.l.b16 %v3139
        %v3408 = vunpack.c.l.b16 %v3140
        %v3409 = vunpack.c.l.b16 %v3141
        %v3410 = vunpack.c.l.b16 %v3142
        %v3411 = vunpack.c.l.b16 %v3143
        %v3412 = vunpack.c.l.b16 %v3144
        %v3413 = vunpack.c.l.b16 %v3145
        %v3414 = vunpack.c.l.b16 %v3146
        %v3415 = vunpack.c.l.b16 %v3147
        %v3416 = vunpack.c.l.b16 %v3148
        %v3417 = vunpack.c.l.b16 %v3149
        %v3418 = vunpack.c.l.b16 %v3150
        %v3419 = vunpack.c.l.b16 %v3151
        %v3420 = vunpack.c.l.b16 %v3152
        %v3421 = vunpack.c.l.b16 %v3153
        %v3422 = vunpack.c.l.b16 %v3154
        %v3423 = vunpack.c.l.b16 %v3155
        %v3424 = vunpack.c.l.b16 %v3156
        %v3425 = vunpack.c.l.b16 %v3157
        %v3426 = vunpack.c.l.b16 %v3158
        %v3427 = vunpack.c.l.b16 %v3159
        %v3428 = vunpack.c.l.b16 %v3160
        %v3429 = vunpack.c.l.b16 %v3161
        %v3430 = vunpack.c.l.b16 %v3162
        %v3431 = vunpack.c.l.b16 %v3163
        %v3432 = vunpack.c.l.b16 %v3164
        %v3433 = vunpack.c.l.b16 %v3165
        %v3434 = vunpack.c.l.b16 %v3166
        %v3435 = vunpack.c.l.b16 %v3167
        %v3436 = vunpack.c.l.b16 %v3168
        %v3437 = vunpack.c.l.b16 %v3169
        %v3438 = vunpack.c.l.b16 %v3170
        %v3439 = vunpack.c.l.b16 %v3171
        %v3440 = vunpack.c.l.b16 %v3172
        %v3441 = vunpack.c.l.b16 %v3173
        %v3442 = vunpack.c.l.b16 %v3174
        %v3443 = vunpack.c.l.b16 %v3175
        %v3444 = vunpack.c.l.b16 %v3176
        %v3445 = vunpack.c.l.b16 %v3177
        %v3446 = vunpack.c.l.b16 %v3178
        %v3447 = vunpack.c.l.b16 %v3179
        %v3448 = vunpack.c.l.b16 %v3180
        %v3449 = vunpack.c.l.b16 %v3181
        %v3450 = vunpack.c.l.b16 %v3182
        %v3451 = vunpack.c.l.b16 %v3183
        %v3452 = vunpack.c.l.b16 %v3184
        %v3453 = vunpack.c.l.b16 %v3185
        %v3454 = vunpack.c.l.b16 %v3186
        %v3455 = vunpack.c.l.b16 %v3187
        %v3456 = vunpack.c.l.b16 %v3188
        %v3457 = vpack.c.b16 %v3350, %v3349
        %v3458 = vpack.c.b16 %v3352, %v3351
        %v3459 = vpack.c.b16 %v3354, %v3353
        %v3460 = vpack.c.b16 %v3356, %v3355
        %v3461 = vpack.c.b16 %v3358, %v3357
        %v3462 = vpack.c.b16 %v3360, %v3359
        %v3463 = vpack.c.b16 %v3362, %v3361
        %v3464 = vpack.c.b16 %v3364, %v3363
        %v3465 = vpack.c.b16 %v3366, %v3365
        %v3466 = vpack.c.b16 %v3368, %v3367
        %v3467 = vpack.c.b16 %v3370, %v3369
        %v3468 = vpack.c.b16 %v3372, %v3371
        %v3469 = vpack.c.b16 %v3374, %v3373
        %v3470 = vpack.c.b16 %v3376, %v3375
        %v3471 = vpack.c.b16 %v3378, %v3377
        %v3472 = vpack.c.b16 %v3380, %v3379
        %v3473 = vpack.c.b16 %v3382, %v3381
        %v3474 = vpack.c.b16 %v3384, %v3383
        %v3475 = vpack.c.b16 %v3386, %v3385
        %v3476 = vpack.c.b16 %v3388, %v3387
        %v3477 = vpack.c.b16 %v3390, %v3389
        %v3478 = vpack.c.b16 %v3392, %v3391
        %v3479 = vpack.c.b16 %v3394, %v3393
        %v3480 = vpack.c.b16 %v3396, %v3395
        %v3481 = vpack.c.b16 %v3398, %v3397
        %v3482 = vpack.c.b16 %v3400, %v3399
        %v3483 = vpack.c.b16 %v3402, %v3401
        %v3484 = vpack.c.b16 %v3404, %v3403
        %v3485 = vpack.c.b16 %v3406, %v3405
        %v3486 = vpack.c.b16 %v3408, %v3407
        %v3487 = vpack.c.b16 %v3410, %v3409
        %v3488 = vpack.c.b16 %v3412, %v3411
        %v3489 = vpack.c.b16 %v3414, %v3413
        %v3490 = vpack.c.b16 %v3416, %v3415
        %v3491 = vpack.c.b16 %v3418, %v3417
        %v3492 = vpack.c.b16 %v3420, %v3419
        %v3493 = vpack.c.b16 %v3422, %v3421
        %v3494 = vpack.c.b16 %v3424, %v3423
        %v3495 = vpack.c.b16 %v3426, %v3425
        %v3496 = vpack.c.b16 %v3428, %v3427
        %v3497 = vpack.c.b16 %v3430, %v3429
        %v3498 = vpack.c.b16 %v3432, %v3431
        %v3499 = vpack.c.b16 %v3434, %v3433
        %v3500 = vpack.c.b16 %v3436, %v3435
        %v3501 = vpack.c.b16 %v3438, %v3437
        %v3502 = vpack.c.b16 %v3440, %v3439
        %v3503 = vpack.c.b16 %v3442, %v3441
        %v3504 = vpack.c.b16 %v3444, %v3443
        %v3505 = vpack.c.b16 %v3446, %v3445
        %v3506 = vpack.c.b16 %v3448, %v3447
        %v3507 = vpack.c.b16 %v3450, %v3449
        %v3508 = vpack.c.b16 %v3452, %v3451
        %v3509 = vpack.c.b16 %v3454, %v3453
        %v3510 = vpack.c.b16 %v3456, %v3455
        %v3566 = vsel %vm1728, %v3195, 0
        %v3569 = vsel %vm1728, %v3202, 0
        %v3572 = vsel %vm1728, %v3209, 0
        %v3575 = vsel %vm1728, %v3216, 0
        %3577 = vmatprep.subr.bf16.mxu0 0
        %3578 = vmatpush1.bf16.msra.mxu0 %v3457
        %3579 = vmatprep.subr.bf16.mxu0 0
        %3580 = vmatpush1.bf16.msra.mxu0 %v3458
        %3581 = vmatprep.subr.bf16.mxu0 0
        %3582 = vmatpush1.bf16.msra.mxu0 %v3459
        %3583 = vmatprep.subr.bf16.mxu0 0
        %3584 = vmatpush1.bf16.msra.mxu0 %v3460
        %3585 = vmatprep.subr.bf16.mxu0 0
        %3586 = vmatpush1.bf16.msra.mxu0 %v3461
        %3587 = vmatprep.subr.bf16.mxu0 0
        %3588 = vmatpush1.bf16.msra.mxu0 %v3462
        %3589 = vmatprep.subr.bf16.mxu0 0
        %3590 = vmatpush1.bf16.msra.mxu0 %v3463
        %3591 = vmatprep.subr.bf16.mxu0 0
        %3592 = vmatpush1.bf16.msra.mxu0 %v3464
        %3593 = vmatprep.subr.bf16.mxu0 0
        %3594 = vmatpush1.bf16.msra.mxu0 %v3465
        %3595 = vmatprep.subr.bf16.mxu0 0
        %3596 = vmatpush1.bf16.msra.mxu0 %v3466
        %3597 = vmatprep.subr.bf16.mxu0 0
        %3598 = vmatpush1.bf16.msra.mxu0 %v3467
        %3599 = vmatprep.subr.bf16.mxu0 0
        %3600 = vmatpush1.bf16.msra.mxu0 %v3468
        %3601 = vmatprep.subr.bf16.mxu0 0
        %3602 = vmatpush1.bf16.msra.mxu0 %v3469
        %3603 = vmatprep.subr.bf16.mxu0 0
        %3604 = vmatpush1.bf16.msra.mxu0 %v3470
        %3605 = vmatprep.subr.bf16.mxu0 0
        %3606 = vmatpush1.bf16.msra.mxu0 %v3471
        %3607 = vmatprep.subr.bf16.mxu0 0
        %3608 = vmatpush1.bf16.msra.mxu0 %v3472
        %3609 = vmatprep.mubr.bf16.mxu0 %v3190
        %3610 = vmatmul.mubr.bf16.gmra.mrb[0].mxu0 %v3189
        %v3611 = vpop.f32.mrb[0].mxu0
        %v3612 = vadd.f32 0.0, %v3611
        %v3613 = vpop.f32.mrb[0].mxu0
        %v3614 = vpop.f32.mrb[0].mxu0
        %v3615 = vadd.f32 0.0, %v3614
        %v3616 = vpop.f32.mrb[0].mxu0
        %3617 = vmatprep.mubr.bf16.mxu0 %v3197
        %3618 = vmatmul.mubr.bf16.gmra.mrb[0].mxu0 %v3196
        %v3619 = vpop.f32.mrb[0].mxu0
        %v3620 = vadd.f32 0.0, %v3619
        %v3621 = vpop.f32.mrb[0].mxu0
        %v3622 = vpop.f32.mrb[0].mxu0
        %v3623 = vadd.f32 0.0, %v3622
        %v3624 = vpop.f32.mrb[0].mxu0
        %3625 = vmatprep.mubr.bf16.mxu0 %v3204
        %3626 = vmatmul.mubr.bf16.gmra.mrb[0].mxu0 %v3203
        %v3627 = vpop.f32.mrb[0].mxu0
        %v3628 = vadd.f32 0.0, %v3627
        %v3629 = vpop.f32.mrb[0].mxu0
        %v3630 = vpop.f32.mrb[0].mxu0
        %v3631 = vadd.f32 0.0, %v3630
        %v3632 = vpop.f32.mrb[0].mxu0
        %3633 = vmatprep.mubr.bf16.mxu0 %v3211
        %3634 = vmatmul.mubr.bf16.gmra.mrb[0].mxu0 %v3210
        %v3635 = vpop.f32.mrb[0].mxu0
        %v3636 = vadd.f32 0.0, %v3635
        %v3637 = vpop.f32.mrb[0].mxu0
        %v3638 = vpop.f32.mrb[0].mxu0
        %v3639 = vadd.f32 0.0, %v3638
        %v3640 = vpop.f32.mrb[0].mxu0
        %3641 = vdwg.mxu0
        %3642 = vmatprep.subr.bf16.mxu0 0
        %3643 = vmatpush1.bf16.msra.mxu0 %v3473
        %3644 = vmatprep.subr.bf16.mxu0 0
        %3645 = vmatpush1.bf16.msra.mxu0 %v3474
        %3646 = vmatprep.subr.bf16.mxu0 0
        %3647 = vmatpush1.bf16.msra.mxu0 %v3475
        %3648 = vmatprep.subr.bf16.mxu0 0
        %3649 = vmatpush1.bf16.msra.mxu0 %v3476
        %3650 = vmatprep.subr.bf16.mxu0 0
        %3651 = vmatpush1.bf16.msra.mxu0 %v3477
        %3652 = vmatprep.subr.bf16.mxu0 0
        %3653 = vmatpush1.bf16.msra.mxu0 %v3478
        %3654 = vmatprep.subr.bf16.mxu0 0
        %3655 = vmatpush1.bf16.msra.mxu0 %v3479
        %3656 = vmatprep.subr.bf16.mxu0 0
        %3657 = vmatpush1.bf16.msra.mxu0 %v3480
        %3658 = vmatprep.subr.bf16.mxu0 0
        %3659 = vmatpush1.bf16.msra.mxu0 %v3481
        %3660 = vmatprep.subr.bf16.mxu0 0
        %3661 = vmatpush1.bf16.msra.mxu0 %v3482
        %3662 = vmatprep.subr.bf16.mxu0 0
        %3663 = vmatpush1.bf16.msra.mxu0 %v3483
        %3664 = vmatprep.subr.bf16.mxu0 0
        %3665 = vmatpush1.bf16.msra.mxu0 %v3484
        %3666 = vmatprep.subr.bf16.mxu0 0
        %3667 = vmatpush1.bf16.msra.mxu0 %v3485
        %3668 = vmatprep.subr.bf16.mxu0 0
        %3669 = vmatpush1.bf16.msra.mxu0 %v3486
        %3670 = vmatprep.subr.bf16.mxu0 0
        %3671 = vmatpush1.bf16.msra.mxu0 %v3487
        %3672 = vmatprep.subr.bf16.mxu0 0
        %3673 = vmatpush1.bf16.msra.mxu0 %v3488
        %3674 = vmatprep.mubr.bf16.mxu0 %v3192
        %3675 = vmatmul.mubr.bf16.gmra.mrb[0].mxu0 %v3191
        %v3676 = vpop.f32.mrb[0].mxu0
        %v3677 = vadd.f32 %v3612, %v3676
        %v3678 = vpop.f32.mrb[0].mxu0
        %v3679 = vpop.f32.mrb[0].mxu0
        %v3680 = vadd.f32 %v3615, %v3679
        %v3681 = vpop.f32.mrb[0].mxu0
        %3682 = vmatprep.mubr.bf16.mxu0 %v3199
        %3683 = vmatmul.mubr.bf16.gmra.mrb[0].mxu0 %v3198
        %v3684 = vpop.f32.mrb[0].mxu0
        %v3685 = vadd.f32 %v3620, %v3684
        %v3686 = vpop.f32.mrb[0].mxu0
        %v3687 = vpop.f32.mrb[0].mxu0
        %v3688 = vadd.f32 %v3623, %v3687
        %v3689 = vpop.f32.mrb[0].mxu0
        %3690 = vmatprep.mubr.bf16.mxu0 %v3206
        %3691 = vmatmul.mubr.bf16.gmra.mrb[0].mxu0 %v3205
        %v3692 = vpop.f32.mrb[0].mxu0
        %v3693 = vadd.f32 %v3628, %v3692
        %v3694 = vpop.f32.mrb[0].mxu0
        %v3695 = vpop.f32.mrb[0].mxu0
        %v3696 = vadd.f32 %v3631, %v3695
        %v3697 = vpop.f32.mrb[0].mxu0
        %3698 = vmatprep.mubr.bf16.mxu0 %v3213
        %3699 = vmatmul.mubr.bf16.gmra.mrb[0].mxu0 %v3212
        %v3700 = vpop.f32.mrb[0].mxu0
        %v3701 = vadd.f32 %v3636, %v3700
        %v3702 = vpop.f32.mrb[0].mxu0
        %v3703 = vpop.f32.mrb[0].mxu0
        %v3704 = vadd.f32 %v3639, %v3703
        %v3705 = vpop.f32.mrb[0].mxu0
        %3706 = vdwg.mxu0
        %3707 = vmatprep.subr.bf16.mxu0 0
        %3708 = vmatpush1.bf16.msra.mxu0 %v3489
        %3709 = vmatprep.subr.bf16.mxu0 0
        %3710 = vmatpush1.bf16.msra.mxu0 %v3490
        %3711 = vmatprep.subr.bf16.mxu0 0
        %3712 = vmatpush1.bf16.msra.mxu0 %v3491
        %3713 = vmatprep.subr.bf16.mxu0 0
        %3714 = vmatpush1.bf16.msra.mxu0 %v3492
        %3715 = vmatprep.subr.bf16.mxu0 0
        %3716 = vmatpush1.bf16.msra.mxu0 %v3493
        %3717 = vmatprep.subr.bf16.mxu0 0
        %3718 = vmatpush1.bf16.msra.mxu0 %v3494
        %3719 = vmatprep.subr.bf16.mxu0 0
        %3720 = vmatpush1.bf16.msra.mxu0 %v3495
        %3721 = vmatprep.subr.bf16.mxu0 0
        %3722 = vmatpush1.bf16.msra.mxu0 %v3496
        %3723 = vmatprep.subr.bf16.mxu0 0
        %3724 = vmatpush1.bf16.msra.mxu0 %v3497
        %3725 = vmatprep.subr.bf16.mxu0 0
        %3726 = vmatpush1.bf16.msra.mxu0 %v3498
        %3727 = vmatprep.subr.bf16.mxu0 0
        %3728 = vmatpush1.bf16.msra.mxu0 %v3499
        %3729 = vmatprep.subr.bf16.mxu0 0
        %3730 = vmatpush1.bf16.msra.mxu0 %v3500
        %3731 = vmatprep.subr.bf16.mxu0 0
        %3732 = vmatpush1.bf16.msra.mxu0 %v3501
        %3733 = vmatprep.subr.bf16.mxu0 0
        %3734 = vmatpush1.bf16.msra.mxu0 %v3502
        %3735 = vmatprep.subr.bf16.mxu0 0
        %3736 = vmatpush1.bf16.msra.mxu0 %v3503
        %3737 = vmatprep.subr.bf16.mxu0 0
        %3738 = vmatpush1.bf16.msra.mxu0 %v3504
        %3739 = vmatprep.mubr.bf16.mxu0 %v3194
        %3740 = vmatmul.mubr.bf16.gmra.mrb[0].mxu0 %v3193
        %v3741 = vpop.f32.mrb[0].mxu0
        %v3742 = vadd.f32 %v3677, %v3741
        %v3743 = vpop.f32.mrb[0].mxu0
        %v3744 = vpop.f32.mrb[0].mxu0
        %v3745 = vadd.f32 %v3680, %v3744
        %v3746 = vpop.f32.mrb[0].mxu0
        %3747 = vmatprep.mubr.bf16.mxu0 %v3201
        %3748 = vmatmul.mubr.bf16.gmra.mrb[0].mxu0 %v3200
        %v3749 = vpop.f32.mrb[0].mxu0
        %v3750 = vadd.f32 %v3685, %v3749
        %v3751 = vpop.f32.mrb[0].mxu0
        %v3752 = vpop.f32.mrb[0].mxu0
        %v3753 = vadd.f32 %v3688, %v3752
        %v3754 = vpop.f32.mrb[0].mxu0
        %3755 = vmatprep.mubr.bf16.mxu0 %v3208
        %3756 = vmatmul.mubr.bf16.gmra.mrb[0].mxu0 %v3207
        %v3757 = vpop.f32.mrb[0].mxu0
        %v3758 = vadd.f32 %v3693, %v3757
        %v3759 = vpop.f32.mrb[0].mxu0
        %v3760 = vpop.f32.mrb[0].mxu0
        %v3761 = vadd.f32 %v3696, %v3760
        %v3762 = vpop.f32.mrb[0].mxu0
        %3763 = vmatprep.mubr.bf16.mxu0 %v3215
        %3764 = vmatmul.mubr.bf16.gmra.mrb[0].mxu0 %v3214
        %v3765 = vpop.f32.mrb[0].mxu0
        %v3766 = vadd.f32 %v3701, %v3765
        %v3767 = vpop.f32.mrb[0].mxu0
        %v3768 = vpop.f32.mrb[0].mxu0
        %v3769 = vadd.f32 %v3704, %v3768
        %v3770 = vpop.f32.mrb[0].mxu0
        %3771 = vdwg.mxu0
        %3772 = vmatprep.subr.bf16.mxu0 0
        %3773 = vmatpush1.bf16.msra.mxu0 %v3505
        %3774 = vmatprep.subr.bf16.mxu0 0
        %3775 = vmatpush1.bf16.msra.mxu0 %v3506
        %3776 = vmatprep.subr.bf16.mxu0 0
        %3777 = vmatpush1.bf16.msra.mxu0 %v3507
        %3778 = vmatprep.subr.bf16.mxu0 0
        %3779 = vmatpush1.bf16.msra.mxu0 %v3508
        %3780 = vmatprep.subr.bf16.mxu0 0
        %3781 = vmatpush1.bf16.msra.mxu0 %v3509
        %3782 = vmatprep.subr.bf16.mxu0 0
        %3783 = vmatpush1.bf16.msra.mxu0 %v3510
        %3784 = vmatprep.subr.bf16.mxu0 0
        %3785 = vmatpush1.bf16.msra.mxu0 0
        %3786 = vmatprep.subr.bf16.mxu0 0
        %3787 = vmatpush1.bf16.msra.mxu0 0
        %3788 = vmatprep.subr.bf16.mxu0 0
        %3789 = vmatpush1.bf16.msra.mxu0 0
        %3790 = vmatprep.subr.bf16.mxu0 0
        %3791 = vmatpush1.bf16.msra.mxu0 0
        %3792 = vmatprep.subr.bf16.mxu0 0
        %3793 = vmatpush1.bf16.msra.mxu0 0
        %3794 = vmatprep.subr.bf16.mxu0 0
        %3795 = vmatpush1.bf16.msra.mxu0 0
        %3796 = vmatprep.subr.bf16.mxu0 0
        %3797 = vmatpush1.bf16.msra.mxu0 0
        %3798 = vmatprep.subr.bf16.mxu0 0
        %3799 = vmatpush1.bf16.msra.mxu0 0
        %3800 = vmatprep.subr.bf16.mxu0 0
        %3801 = vmatpush1.bf16.msra.mxu0 0
        %3802 = vmatprep.subr.bf16.mxu0 0
        %3803 = vmatpush1.bf16.msra.mxu0 0
        %3804 = vmatprep.mubr.bf16.mxu0 0
        %3805 = vmatmul.mubr.bf16.gmra.mrb[0].mxu0 %v3566
        %v3806 = vpop.f32.mrb[0].mxu0
        %v3807 = vadd.f32 %v3742, %v3806
        %v3808 = vpop.f32.mrb[0].mxu0
        %v3809 = vpop.f32.mrb[0].mxu0
        %v3810 = vadd.f32 %v3745, %v3809
        %v3811 = vpop.f32.mrb[0].mxu0
        %3812 = vmatprep.mubr.bf16.mxu0 0
        %3813 = vmatmul.mubr.bf16.gmra.mrb[0].mxu0 %v3569
        %v3814 = vpop.f32.mrb[0].mxu0
        %v3815 = vadd.f32 %v3750, %v3814
        %v3816 = vpop.f32.mrb[0].mxu0
        %v3817 = vpop.f32.mrb[0].mxu0
        %v3818 = vadd.f32 %v3753, %v3817
        %v3819 = vpop.f32.mrb[0].mxu0
        %3820 = vmatprep.mubr.bf16.mxu0 0
        %3821 = vmatmul.mubr.bf16.gmra.mrb[0].mxu0 %v3572
        %v3822 = vpop.f32.mrb[0].mxu0
        %v3823 = vadd.f32 %v3758, %v3822
        %v3824 = vpop.f32.mrb[0].mxu0
        %v3825 = vpop.f32.mrb[0].mxu0
        %v3826 = vadd.f32 %v3761, %v3825
        %v3827 = vpop.f32.mrb[0].mxu0
        %3828 = vmatprep.mubr.bf16.mxu0 0
        %3829 = vmatmul.mubr.bf16.gmra.mrb[0].mxu0 %v3575
        %v3830 = vpop.f32.mrb[0].mxu0
        %v3831 = vadd.f32 %v3766, %v3830
        %v3832 = vpop.f32.mrb[0].mxu0
        %v3833 = vpop.f32.mrb[0].mxu0
        %v3834 = vadd.f32 %v3769, %v3833
        %v3835 = vpop.f32.mrb[0].mxu0
        %3836 = vdwg.mxu0
        %v3837 = vld [vmem:[%s7] sm:$0x1]
        %v3839 = vlaneseq
        %v3840 = vshrl.u32 %v3839, 7
        %v3841 = vsub.s32 0, %v3840
        %v3842 = vrot.slane %v3837, %v3841
        %v3844 = vmul.f32 %v3807, %v3842
        %v3845 = vmul.f32 %v3810, %v3842
        %v3846 = vmul.f32 %v3815, %v3842
        %v3847 = vmul.f32 %v3818, %v3842
        %v3848 = vmul.f32 %v3823, %v3842
        %v3849 = vmul.f32 %v3826, %v3842
        %v3850 = vmul.f32 %v3831, %v3842
        %v3851 = vmul.f32 %v3834, %v3842
        %v3852 = vld [vmem:[%s8] sm:$0x1]
        %v3854 = vlaneseq
        %v3855 = vshrl.u32 %v3854, 7
        %v3856 = vsub.s32 0, %v3855
        %v3857 = vrot.slane %v3852, %v3856
        %v3859 = vadd.f32 %v3844, %v3857
        %v3860 = vadd.f32 %v3845, %v3857
        %v3861 = vadd.f32 %v3846, %v3857
        %v3862 = vadd.f32 %v3847, %v3857
        %v3863 = vadd.f32 %v3848, %v3857
        %v3864 = vadd.f32 %v3849, %v3857
        %v3865 = vadd.f32 %v3850, %v3857
        %v3866 = vadd.f32 %v3851, %v3857
        %v3867 = vmax.f32 %v3859, 0.0
        %v3868 = vmax.f32 %v3860, 0.0
        %v3869 = vmax.f32 %v3861, 0.0
        %v3870 = vmax.f32 %v3862, 0.0
        %v3871 = vmax.f32 %v3863, 0.0
        %v3872 = vmax.f32 %v3864, 0.0
        %v3873 = vmax.f32 %v3865, 0.0
        %v3874 = vmax.f32 %v3866, 0.0
        %v3875 = vpack.c.bf16 %v3868, %v3867
        %v3876 = vpack.c.bf16 %v3870, %v3869
        %v3877 = vpack.c.bf16 %v3872, %v3871
        %v3878 = vpack.c.bf16 %v3874, %v3873
        %v3879 = vld [vmem:[%s5] sm:$0xf]
        %v3880 = vld [vmem:[%s5 + $0x4] sm:$0xf]
        %v3881 = vld [vmem:[%s5 + $0x8] sm:$0xf]
        %v3882 = vld [vmem:[%s5 + $0xc] sm:$0xf]
        %v3887 = vunpack.c.l.b16 %v3879
        %v3888 = vunpack.c.l.b16 %v3880
        %v3889 = vunpack.c.l.b16 %v3881
        %v3890 = vunpack.c.l.b16 %v3882
        %v3891 = vpack.c.b16 %v3888, %v3887
        %v3892 = vpack.c.b16 %v3890, %v3889
        %v3896 = vsel %vm1686, %v3875, 0
        %v3899 = vsel %vm1686, %v3876, 0
        %v3902 = vsel %vm1686, %v3877, 0
        %v3905 = vsel %vm1686, %v3878, 0
        %3907 = vmatprep.subr.bf16.mxu0 0
        %3908 = vmatpush1.bf16.msra.mxu0 %v3891
        %3909 = vmatprep.subr.bf16.mxu0 0
        %3910 = vmatpush1.bf16.msra.mxu0 %v3892
        %3911 = vmatprep.subr.bf16.mxu0 0
        %3912 = vmatpush1.bf16.msra.mxu0 0
        %3913 = vmatprep.subr.bf16.mxu0 0
        %3914 = vmatpush1.bf16.msra.mxu0 0
        %3915 = vmatprep.subr.bf16.mxu0 0
        %3916 = vmatpush1.bf16.msra.mxu0 0
        %3917 = vmatprep.subr.bf16.mxu0 0
        %3918 = vmatpush1.bf16.msra.mxu0 0
        %3919 = vmatprep.subr.bf16.mxu0 0
        %3920 = vmatpush1.bf16.msra.mxu0 0
        %3921 = vmatprep.subr.bf16.mxu0 0
        %3922 = vmatpush1.bf16.msra.mxu0 0
        %3923 = vmatprep.subr.bf16.mxu0 0
        %3924 = vmatpush1.bf16.msra.mxu0 0
        %3925 = vmatprep.subr.bf16.mxu0 0
        %3926 = vmatpush1.bf16.msra.mxu0 0
        %3927 = vmatprep.subr.bf16.mxu0 0
        %3928 = vmatpush1.bf16.msra.mxu0 0
        %3929 = vmatprep.subr.bf16.mxu0 0
        %3930 = vmatpush1.bf16.msra.mxu0 0
        %3931 = vmatprep.subr.bf16.mxu0 0
        %3932 = vmatpush1.bf16.msra.mxu0 0
        %3933 = vmatprep.subr.bf16.mxu0 0
        %3934 = vmatpush1.bf16.msra.mxu0 0
        %3935 = vmatprep.subr.bf16.mxu0 0
        %3936 = vmatpush1.bf16.msra.mxu0 0
        %3937 = vmatprep.subr.bf16.mxu0 0
        %3938 = vmatpush1.bf16.msra.mxu0 0
        %3939 = vmatprep.mubr.bf16.mxu0 0
        %3940 = vmatmul.mubr.bf16.gmra.mrb[0].mxu0 %v3896
        %v3941 = vpop.f32.mrb[0].mxu0
        %v3942 = vadd.f32 0.0, %v3941
        %v3943 = vpop.f32.mrb[0].mxu0
        %v3944 = vpop.f32.mrb[0].mxu0
        %v3945 = vadd.f32 0.0, %v3944
        %v3946 = vpop.f32.mrb[0].mxu0
        %3947 = vmatprep.mubr.bf16.mxu0 0
        %3948 = vmatmul.mubr.bf16.gmra.mrb[0].mxu0 %v3899
        %v3949 = vpop.f32.mrb[0].mxu0
        %v3950 = vadd.f32 0.0, %v3949
        %v3951 = vpop.f32.mrb[0].mxu0
        %v3952 = vpop.f32.mrb[0].mxu0
        %v3953 = vadd.f32 0.0, %v3952
        %v3954 = vpop.f32.mrb[0].mxu0
        %3955 = vmatprep.mubr.bf16.mxu0 0
        %3956 = vmatmul.mubr.bf16.gmra.mrb[0].mxu0 %v3902
        %v3957 = vpop.f32.mrb[0].mxu0
        %v3958 = vadd.f32 0.0, %v3957
        %v3959 = vpop.f32.mrb[0].mxu0
        %v3960 = vpop.f32.mrb[0].mxu0
        %v3961 = vadd.f32 0.0, %v3960
        %v3962 = vpop.f32.mrb[0].mxu0
        %3963 = vmatprep.mubr.bf16.mxu0 0
        %3964 = vmatmul.mubr.bf16.gmra.mrb[0].mxu0 %v3905
        %v3965 = vpop.f32.mrb[0].mxu0
        %v3966 = vadd.f32 0.0, %v3965
        %v3967 = vpop.f32.mrb[0].mxu0
        %v3968 = vpop.f32.mrb[0].mxu0
        %v3969 = vadd.f32 0.0, %v3968
        %v3970 = vpop.f32.mrb[0].mxu0
        %3971 = vdwg.mxu0
        %v3972 = vld [vmem:[%s9] sm:$0x1]
        %v3974 = vlaneseq
        %v3975 = vshrl.u32 %v3974, 7
        %v3976 = vsub.s32 0, %v3975
        %v3977 = vrot.slane %v3972, %v3976
        %v3979 = vmul.f32 %v3942, %v3977
        %v3980 = vmul.f32 %v3945, %v3977
        %v3981 = vmul.f32 %v3950, %v3977
        %v3982 = vmul.f32 %v3953, %v3977
        %v3983 = vmul.f32 %v3958, %v3977
        %v3984 = vmul.f32 %v3961, %v3977
        %v3985 = vmul.f32 %v3966, %v3977
        %v3986 = vmul.f32 %v3969, %v3977
        %v3987 = vld [vmem:[%s10] sm:$0x1]
        %v3989 = vlaneseq
        %v3990 = vshrl.u32 %v3989, 7
        %v3991 = vsub.s32 0, %v3990
        %v3992 = vrot.slane %v3987, %v3991
        %v3994 = vadd.f32 %v3979, %v3992
        %v3995 = vadd.f32 %v3980, %v3992
        %v3996 = vadd.f32 %v3981, %v3992
        %v3997 = vadd.f32 %v3982, %v3992
        %v3998 = vadd.f32 %v3983, %v3992
        %v3999 = vadd.f32 %v3984, %v3992
        %v4000 = vadd.f32 %v3985, %v3992
        %v4001 = vadd.f32 %v3986, %v3992
        %v4002 = vld [vmem:[%s582] sm:$0xf]
        %v4003 = vld [vmem:[%s582 + $0x4] sm:$0xf]
        %v4004 = vld [vmem:[%s582 + $0x8] sm:$0xf]
        %v4005 = vld [vmem:[%s582 + $0xc] sm:$0xf]
        %v4006 = vld [vmem:[%s582 + $0x10] sm:$0xf]
        %v4007 = vld [vmem:[%s582 + $0x14] sm:$0xf]
        %v4008 = vld [vmem:[%s582 + $0x18] sm:$0xf]
        %v4009 = vld [vmem:[%s582 + $0x1c] sm:$0xf]
        %v4010 = vld [vmem:[%s6] sm:$0xf]
        %v4011 = vld [vmem:[%s6 + $0x4] sm:$0xf]
        %v4020 = vunpack.c.l.b16 %v4002
        %v4021 = vunpack.c.l.b16 %v4003
        %v4022 = vunpack.c.l.b16 %v4004
        %v4023 = vunpack.c.l.b16 %v4005
        %v4024 = vunpack.c.l.b16 %v4006
        %v4025 = vunpack.c.l.b16 %v4007
        %v4026 = vunpack.c.l.b16 %v4008
        %v4027 = vunpack.c.l.b16 %v4009
        %v4028 = vpack.c.b16 %v4021, %v4020
        %v4029 = vpack.c.b16 %v4023, %v4022
        %v4030 = vpack.c.b16 %v4025, %v4024
        %v4031 = vpack.c.b16 %v4027, %v4026
        %v4034 = vunpack.c.l.b16 %v4010
        %v4035 = vunpack.c.l.b16 %v4011
        %v4036 = vpack.c.b16 %v4035, %v4034
        %vm4038 = vcmask 130048
        %v4040 = vsel %vm4038, %v4028, 0
        %v4043 = vsel %vm4038, %v4029, 0
        %v4046 = vsel %vm4038, %v4030, 0
        %v4049 = vsel %vm4038, %v4031, 0
        %4051 = vmatprep.subr.bf16.mxu0 0
        %4052 = vmatpush1.bf16.msra.mxu0 %v4036
        %4053 = vmatprep.subr.bf16.mxu0 0
        %4054 = vmatpush1.bf16.msra.mxu0 0
        %4055 = vmatprep.subr.bf16.mxu0 0
        %4056 = vmatpush1.bf16.msra.mxu0 0
        %4057 = vmatprep.subr.bf16.mxu0 0
        %4058 = vmatpush1.bf16.msra.mxu0 0
        %4059 = vmatprep.subr.bf16.mxu0 0
        %4060 = vmatpush1.bf16.msra.mxu0 0
        %4061 = vmatprep.subr.bf16.mxu0 0
        %4062 = vmatpush1.bf16.msra.mxu0 0
        %4063 = vmatprep.subr.bf16.mxu0 0
        %4064 = vmatpush1.bf16.msra.mxu0 0
        %4065 = vmatprep.subr.bf16.mxu0 0
        %4066 = vmatpush1.bf16.msra.mxu0 0
        %4067 = vmatprep.subr.bf16.mxu0 0
        %4068 = vmatpush1.bf16.msra.mxu0 0
        %4069 = vmatprep.subr.bf16.mxu0 0
        %4070 = vmatpush1.bf16.msra.mxu0 0
        %4071 = vmatprep.subr.bf16.mxu0 0
        %4072 = vmatpush1.bf16.msra.mxu0 0
        %4073 = vmatprep.subr.bf16.mxu0 0
        %4074 = vmatpush1.bf16.msra.mxu0 0
        %4075 = vmatprep.subr.bf16.mxu0 0
        %4076 = vmatpush1.bf16.msra.mxu0 0
        %4077 = vmatprep.subr.bf16.mxu0 0
        %4078 = vmatpush1.bf16.msra.mxu0 0
        %4079 = vmatprep.subr.bf16.mxu0 0
        %4080 = vmatpush1.bf16.msra.mxu0 0
        %4081 = vmatprep.subr.bf16.mxu0 0
        %4082 = vmatpush1.bf16.msra.mxu0 0
        %4083 = vmatprep.mubr.bf16.mxu0 0
        %4084 = vmatmul.mubr.bf16.gmra.mrb[0].mxu0 %v4040
        %v4085 = vpop.f32.mrb[0].mxu0
        %v4086 = vadd.f32 0.0, %v4085
        %v4087 = vpop.f32.mrb[0].mxu0
        %v4088 = vpop.f32.mrb[0].mxu0
        %v4089 = vadd.f32 0.0, %v4088
        %v4090 = vpop.f32.mrb[0].mxu0
        %4091 = vmatprep.mubr.bf16.mxu0 0
        %4092 = vmatmul.mubr.bf16.gmra.mrb[0].mxu0 %v4043
        %v4093 = vpop.f32.mrb[0].mxu0
        %v4094 = vadd.f32 0.0, %v4093
        %v4095 = vpop.f32.mrb[0].mxu0
        %v4096 = vpop.f32.mrb[0].mxu0
        %v4097 = vadd.f32 0.0, %v4096
        %v4098 = vpop.f32.mrb[0].mxu0
        %4099 = vmatprep.mubr.bf16.mxu0 0
        %4100 = vmatmul.mubr.bf16.gmra.mrb[0].mxu0 %v4046
        %v4101 = vpop.f32.mrb[0].mxu0
        %v4102 = vadd.f32 0.0, %v4101
        %v4103 = vpop.f32.mrb[0].mxu0
        %v4104 = vpop.f32.mrb[0].mxu0
        %v4105 = vadd.f32 0.0, %v4104
        %v4106 = vpop.f32.mrb[0].mxu0
        %4107 = vmatprep.mubr.bf16.mxu0 0
        %4108 = vmatmul.mubr.bf16.gmra.mrb[0].mxu0 %v4049
        %v4109 = vpop.f32.mrb[0].mxu0
        %v4110 = vadd.f32 0.0, %v4109
        %v4111 = vpop.f32.mrb[0].mxu0
        %v4112 = vpop.f32.mrb[0].mxu0
        %v4113 = vadd.f32 0.0, %v4112
        %v4114 = vpop.f32.mrb[0].mxu0
        %4115 = vdwg.mxu0
        %v4116 = vld [vmem:[%s11] sm:$0x1]
        %v4118 = vlaneseq
        %v4119 = vshrl.u32 %v4118, 7
        %v4120 = vsub.s32 0, %v4119
        %v4121 = vrot.slane %v4116, %v4120
        %v4123 = vmul.f32 %v4086, %v4121
        %v4124 = vmul.f32 %v4089, %v4121
        %v4125 = vmul.f32 %v4094, %v4121
        %v4126 = vmul.f32 %v4097, %v4121
        %v4127 = vmul.f32 %v4102, %v4121
        %v4128 = vmul.f32 %v4105, %v4121
        %v4129 = vmul.f32 %v4110, %v4121
        %v4130 = vmul.f32 %v4113, %v4121
        %v4131 = vld [vmem:[%s12] sm:$0x1]
        %v4133 = vlaneseq
        %v4134 = vshrl.u32 %v4133, 7
        %v4135 = vsub.s32 0, %v4134
        %v4136 = vrot.slane %v4131, %v4135
        %v4138 = vadd.f32 %v4123, %v4136
        %v4139 = vadd.f32 %v4124, %v4136
        %v4140 = vadd.f32 %v4125, %v4136
        %v4141 = vadd.f32 %v4126, %v4136
        %v4142 = vadd.f32 %v4127, %v4136
        %v4143 = vadd.f32 %v4128, %v4136
        %v4144 = vadd.f32 %v4129, %v4136
        %v4145 = vadd.f32 %v4130, %v4136
        %v4146 = vadd.f32 %v4138, %v3994
        %v4147 = vadd.f32 %v4139, %v3995
        %v4148 = vadd.f32 %v4140, %v3996
        %v4149 = vadd.f32 %v4141, %v3997
        %v4150 = vadd.f32 %v4142, %v3998
        %v4151 = vadd.f32 %v4143, %v3999
        %v4152 = vadd.f32 %v4144, %v4000
        %v4153 = vadd.f32 %v4145, %v4001
        %4162 = vrot.lane.b32.xlu0 %v3994, 8
        %v4163 = vpop.permute.xlu0 %4162
        %4164 = vrot.lane.b32.xlu0 %v3995, 8
        %v4165 = vpop.permute.xlu0 %4164
        %4166 = vrot.lane.b32.xlu0 %v3996, 8
        %v4167 = vpop.permute.xlu0 %4166
        %4168 = vrot.lane.b32.xlu0 %v3997, 8
        %v4169 = vpop.permute.xlu0 %4168
        %4170 = vrot.lane.b32.xlu0 %v3998, 8
        %v4171 = vpop.permute.xlu0 %4170
        %4172 = vrot.lane.b32.xlu0 %v3999, 8
        %v4173 = vpop.permute.xlu0 %4172
        %4174 = vrot.lane.b32.xlu0 %v4000, 8
        %v4175 = vpop.permute.xlu0 %4174
        %4176 = vrot.lane.b32.xlu0 %v4001, 8
        %v4177 = vpop.permute.xlu0 %4176
        %v4186 = vsel %vm4038, %v4146, %v4138
        %v4187 = vsel %vm4038, %v4147, %v4139
        %v4188 = vsel %vm4038, %v4148, %v4140
        %v4189 = vsel %vm4038, %v4149, %v4141
        %v4190 = vsel %vm4038, %v4150, %v4142
        %v4191 = vsel %vm4038, %v4151, %v4143
        %v4192 = vsel %vm4038, %v4152, %v4144
        %v4193 = vsel %vm4038, %v4153, %v4145
        %vm4194 = vcmask 195584
        %v4195 = vsel %vm4194, %v4186, %v4163
        %v4196 = vsel %vm4194, %v4187, %v4165
        %v4197 = vsel %vm4194, %v4188, %v4167
        %v4198 = vsel %vm4194, %v4189, %v4169
        %v4199 = vsel %vm4194, %v4190, %v4171
        %v4200 = vsel %vm4194, %v4191, %v4173
        %v4201 = vsel %vm4194, %v4192, %v4175
        %v4202 = vsel %vm4194, %v4193, %v4177
        %v4203 = vmax.f32 %v4195, 0.0
        %v4204 = vmax.f32 %v4196, 0.0
        %v4205 = vmax.f32 %v4197, 0.0
        %v4206 = vmax.f32 %v4198, 0.0
        %v4207 = vmax.f32 %v4199, 0.0
        %v4208 = vmax.f32 %v4200, 0.0
        %v4209 = vmax.f32 %v4201, 0.0
        %v4210 = vmax.f32 %v4202, 0.0
        %v4211 = vpack.c.bf16 %v4204, %v4203
        %v4212 = vpack.c.bf16 %v4206, %v4205
        %v4213 = vpack.c.bf16 %v4208, %v4207
        %v4214 = vpack.c.bf16 %v4210, %v4209
        %v4219 = vunpack.c.l.b16 %v4211
        %v4220 = vunpack.c.h.b16 %v4211
        %v4221 = vunpack.c.l.b16 %v4212
        %v4222 = vunpack.c.h.b16 %v4212
        %v4223 = vunpack.c.l.b16 %v4213
        %v4224 = vunpack.c.h.b16 %v4213
        %v4225 = vunpack.c.l.b16 %v4214
        %v4226 = vunpack.c.h.b16 %v4214
        %v4227 = vpack.c.b16 %v4219, %v4219
        %v4228 = vpack.c.b16 %v4220, %v4220
        %v4229 = vpack.c.b16 %v4221, %v4221
        %v4230 = vpack.c.b16 %v4222, %v4222
        %v4231 = vpack.c.b16 %v4223, %v4223
        %v4232 = vpack.c.b16 %v4224, %v4224
        %v4233 = vpack.c.b16 %v4225, %v4225
        %v4234 = vpack.c.b16 %v4226, %v4226
        %vm4243 = vcmask 257024
        %4244 = vst.msk [vmem:[%s542] sm:$0xf] %vm4243, %v4227
        %4245 = vst.msk [vmem:[%s542 + $0x4] sm:$0xf] %vm4243, %v4228
        %4246 = vst.msk [vmem:[%s542 + $0x8] sm:$0xf] %vm4243, %v4229
        %4247 = vst.msk [vmem:[%s542 + $0xc] sm:$0xf] %vm4243, %v4230
        %4248 = vst.msk [vmem:[%s542 + $0x10] sm:$0xf] %vm4243, %v4231
        %4249 = vst.msk [vmem:[%s542 + $0x14] sm:$0xf] %vm4243, %v4232
        %4250 = vst.msk [vmem:[%s542 + $0x18] sm:$0xf] %vm4243, %v4233
        %4251 = vst.msk [vmem:[%s542 + $0x1c] sm:$0xf] %vm4243, %v4234
        %s4252 = sand.u32 %s354, 1
        %s4253 = scalar_lea.sflag [#allocation3], %s4252
        %s4254 = sand.u32 %s354, 1
        %s4255 = smul.addr %s4254, 32
        %s4256 = scalar_lea.vmem [#allocation2], %s4255
        // Predicated region
        $region73: #{bottleneck_forward.3} parent=71 // pred_check
          %p4257 = pneg %p364
        $region74: #{bottleneck_forward.3} parent=71 // pred_check_branch
          %4259 = sbr.rel (%p4257) target = $region76
        $region75: #{bottleneck_forward.3} parent=71 // pred_region
          %s4261 = ssub.s32 512, 512
          %4262 = vsyncadd %s4253, %s4261
          %s4263 = smul.addr %s32, 8
          %s4264 = smul.addr %s31, 64
          %s4265 = sadd.s32 %s4263, %s4264
          %s4266 = smul.addr %s4265, 64
          %s4267 = scalar_lea.hbm %s13, %s4266
          %s4268 = sshll.u32 %s4256, 4
          %s4269 = int_to_ptr.vmem [resolvable:$true] %s4268
          %4274 = dma.vmem_to_hbm [thread:$0]  %s4269, 512, %s4267, %s4253, 64, 64, 4
        $region76: #{bottleneck_forward.3} parent=71 // pred_fallthru
          _
      $region72: #{bottleneck_forward.3} parent=5 // pred_fallthru
        _
      %p4275 = scmp.le.s32.totalorder 2, %s22
      // Predicated region
      $region77: #{bottleneck_forward.3} parent=5 // pred_check
        %p4276 = pneg %p4275
      $region78: #{bottleneck_forward.3} parent=5 // pred_check_branch
        %4278 = sbr.rel (%p4276) target = $region80
      $region79: #{bottleneck_forward.3} parent=5 // pred_region
        %s4279 = ssub.s32 %s22, 2
        // Predicated region
        $region81: #{bottleneck_forward.3} parent=79 // pred_check
          %p4280 = pneg %p370
        $region82: #{bottleneck_forward.3} parent=79 // pred_check_branch
          %4282 = sbr.rel (%p4280) target = $region84
        $region83: #{bottleneck_forward.3} parent=79 // pred_region
          %s4283 = sand.u32 %s355, 1
          %s4284 = scalar_lea.sflag [#allocation3], %s4283
          %s4285 = sand.u32 %s355, 1
          %s4286 = smul.addr %s4285, 32
          %s4287 = scalar_lea.vmem [#allocation2], %s4286
          %4288 = dma.done %s4284, 512
        $region84: #{bottleneck_forward.3} parent=79 // pred_fallthru
          _
      $region80: #{bottleneck_forward.3} parent=5 // pred_fallthru
        _
    $region6: #{bottleneck_forward.3} parent=1 // loop_footer
      %s26 = sadd.s32 1, %s22
    $region7: #{bottleneck_forward.3} parent=1 // loop_footer_branch
      %21 = sbr.rel target = $region3
    $region8: #{bottleneck_forward.3} parent=1 // loop_exit
      _
    %4289 = vsyncpa [#allocation3], 1
    %s4290 = scalar_lea.sflag [#allocation3], 1
    %4291 = vsyncpa %s4290, 1

</llo_original>
